<compile_context>
chip_gen: v7x
topology: tpu7x:2x2x1
jax: 0.10.0
libtpu: 0.0.40
codegen_flags: <defaults>
</compile_context>

<pallas_src>
import numpy as np
import jax
import jax.numpy as jnp
from jax import lax
from jax.experimental import pallas as pl
from jax.experimental.pallas import tpu as pltpu


def _round_up(x, m):
    return ((x + m - 1) // m) * m


# ----------------------------- Pallas kernel --------------------------------
def _make_gmmnet_kernel(W, K, D, off_ld, off_lt):
    """W = padded lane width (>=128), K = n_components, D = data_dim.

    Head lane layout (width W):
      [0, K)            mixture-weight logits
      [K, K+K*D)        means
      [off_ld, off_lt)  log-diagonal of scale_tril
      [off_lt, ...)     strict-lower-triangle of scale_tril
    Output lane layout (width W):
      [0, K)            softmax weights
      [K, K+K*D)        means
      [off_ld, off_ld + K*D*D)   covariances (L @ L^T + 1e-4 I), row-major
    """

    def kernel(cond_ref, w_e0_ref, w_e12_ref, w_head_ref, sel_a_ref, sel_b_ref,
               b_all_ref, alpha_ref, out_ref):
        x = cond_ref[...]

        # ---- embedding network: 3 x (Linear + PReLU), all lane-dense ----
        h = jnp.dot(x, w_e0_ref[...],
                    preferred_element_type=jnp.float32) + b_all_ref[0:1, :]
        h = jnp.where(h > 0, h, alpha_ref[0] * h)

        h = jnp.dot(h, w_e12_ref[0:W, :],
                    preferred_element_type=jnp.float32) + b_all_ref[1:2, :]
        h = jnp.where(h > 0, h, alpha_ref[1] * h)

        h = jnp.dot(h, w_e12_ref[W:2 * W, :],
                    preferred_element_type=jnp.float32) + b_all_ref[2:3, :]
        h = jnp.where(h > 0, h, alpha_ref[2] * h)

        # ---- fused heads: ONE matmul -> (block_b, W) lane-dense slab ----
        heads = jnp.dot(h, w_head_ref[...],
                        preferred_element_type=jnp.float32) + b_all_ref[3:4, :]

        lane = lax.broadcasted_iota(jnp.int32, heads.shape, 1)

        # masked softmax over the K real logit lanes (exact divide, not approx)
        is_logit = lane < K
        logits = jnp.where(is_logit, heads, -jnp.inf)
        m = jnp.max(logits, axis=-1, keepdims=True)
        e = jnp.exp(logits - m)                       # padded lanes -> exp(-inf) = 0
        denom = jnp.sum(e, axis=-1, keepdims=True)
        sm = e / denom

        # scale_tril values: exp() only on the log-diagonal lanes
        is_ld = (lane >= off_ld) & (lane < off_lt)
        lvals = jnp.where(is_ld, jnp.exp(heads), heads)

        # covars = L @ L^T via 0/1 lane-selection matmuls (exact under HIGHEST):
        #   a[:, m*W + p] = L[k, i, m],  b[:, m*W + p] = L[k, j, m]
        # with p = off_ld + k*D*D + i*D + j; sum the D aligned 128-wide groups.
        a = jnp.dot(lvals, sel_a_ref[...], preferred_element_type=jnp.float32,
                    precision=lax.Precision.HIGHEST)
        b = jnp.dot(lvals, sel_b_ref[...], preferred_element_type=jnp.float32,
                    precision=lax.Precision.HIGHEST)
        prod = a * b
        cov = prod[:, 0:W]
        for g in range(1, D):
            cov = cov + prod[:, g * W:(g + 1) * W]
        cov = cov + b_all_ref[4:5, :]                 # + 1e-4 on diagonal lanes

        # assemble final slab: weights | means | covariances
        out_ref[...] = jnp.where(lane < K, sm,
                                 jnp.where(lane < off_ld, heads, cov))

    return kernel


# ------------------------------ wrapper --------------------------------------
def gmmnet_forward(conditional, params, *, n_components, data_dim, block_b=None):
    B, C = conditional.shape
    K, D = n_components, data_dim
    V = params["w_e0"].shape[1]
    T = D * (D - 1) // 2
    cov_dim = K * D * (D + 1) // 2
    head_w = K + K * D + cov_dim            # real head columns (logits|means|covar elems)
    off_ld = K + K * D                      # first log-diag lane / first covar output lane
    off_lt = off_ld + K * D                 # first lower-tri lane
    # one padded lane width used everywhere -> every matmul / bias is lane-dense
    W = _round_up(max(V, head_w, off_ld + K * D * D), 128)

    f32 = jnp.float32
    pad2 = lambda a, r, c: jnp.pad(a.astype(f32), ((0, r - a.shape[0]), (0, c - a.shape[1])))

    # ---- pack parameters (few lane-dense VMEM arrays + one SMEM vector) ----
    w_e0 = pad2(params["w_e0"], C, W)                                       # (C, W)
    w_e12 = jnp.concatenate([pad2(params["w_e1"], W, W),
                             pad2(params["w_e2"], W, W)], axis=0)           # (2W, W)
    w_head = pad2(jnp.concatenate([params["w_w"], params["w_m"], params["w_c"]],
                                  axis=1), W, W)                            # (W, W)

    eps_row = np.zeros((1, W), np.float32)
    for k in range(K):
        for i in range(D):
            eps_row[0, off_ld + k * D * D + i * D + i] = 1e-4
    b_all = jnp.concatenate(
        [pad2(params["b_e0"], 1, W), pad2(params["b_e1"], 1, W),
         pad2(params["b_e2"], 1, W),
         pad2(jnp.concatenate([params["b_w"], params["b_m"], params["b_c"]], axis=1), 1, W),
         jnp.asarray(eps_row)], axis=0)                                     # (5, W)

    alphas = jnp.concatenate([params["a_e0"].reshape(-1),
                              params["a_e1"].reshape(-1),
                              params["a_e2"].reshape(-1)]).astype(f32)      # (3,) -> SMEM

    # ---- 0/1 selection matrices for the in-kernel L @ L^T epilogue ----
    l_rows, l_cols = np.tril_indices(D, -1)     # row-major, matches torch.tril_indices
    lane_of_L = np.full((K, D, D), -1, dtype=np.int64)
    for k in range(K):
        for i in range(D):
            lane_of_L[k, i, i] = off_ld + k * D + i                 # exp(log_diag) lane
        for t in range(T):
            lane_of_L[k, l_rows[t], l_cols[t]] = off_lt + k * T + t  # lower-tri lane
    sel_a = np.zeros((W, D * W), np.float32)
    sel_b = np.zeros((W, D * W), np.float32)
    for k in range(K):
        for i in range(D):
            for j in range(D):
                p = off_ld + k * D * D + i * D + j
                for m in range(D):
                    ra, rb = lane_of_L[k, i, m], lane_of_L[k, j, m]
                    if ra >= 0 and rb >= 0:      # both factors structurally nonzero
                        sel_a[ra, m * W + p] = 1.0
                        sel_b[rb, m * W + p] = 1.0
    sel_a = jnp.asarray(sel_a)
    sel_b = jnp.asarray(sel_b)

    # ---- batch tiling (tail-safe) ----
    if block_b is None:
        # Aim for >=4 grid steps (feeds both v7x TensorCores; harmless on
        # v5e/v6e) and cap at 2048 rows so the per-step covar temporaries
        # (block_b x D*W f32) stay far below the VMEM limit on all generations.
        block_b = min(2048, max(8, _round_up(-(-B // 4), 8)))
    block_b = max(8, _round_up(int(block_b), 8))
    n_blocks = -(-B // block_b)
    B_pad = n_blocks * block_b
    cond = conditional.astype(f32)
    if B_pad != B:
        cond = jnp.pad(cond, ((0, B_pad - B), (0, 0)))

    # Rough per-step VMEM (double-buffered cond/out + covar temporaries); keep
    # well under the 32 MiB scoped limit (and v7x's 64 MiB physical VMEM).
    est_bytes = 4 * block_b * (2 * C + 4 * W + 3 * D * W)
    assert est_bytes < 24 * 1024 * 1024, "block_b too large for VMEM budget"

    kernel = _make_gmmnet_kernel(W, K, D, off_ld, off_lt)
    full = lambda arr: pl.BlockSpec(arr.shape, lambda i, _a=arr: (0,) * _a.ndim)

    slab = pl.pallas_call(
        kernel,
        out_shape=jax.ShapeDtypeStruct((B_pad, W), jnp.float32),
        grid_spec=pltpu.PrefetchScalarGridSpec(
            num_scalar_prefetch=0,
            grid=(n_blocks,),
            in_specs=[
                pl.BlockSpec((block_b, C), lambda i: (i, 0)),         # conditional
                full(w_e0),                                           # (C, W)
                full(w_e12),                                          # (2W, W)
                full(w_head),                                         # (W, W)
                full(sel_a),                                          # (W, D*W)
                full(sel_b),                                          # (W, D*W)
                full(b_all),                                          # (5, W)
                pl.BlockSpec(memory_space=pltpu.MemorySpace.SMEM),    # alphas (3,)
            ],
            out_specs=pl.BlockSpec((block_b, W), lambda i: (i, 0)),
        ),
        compiler_params=pltpu.CompilerParams(
            dimension_semantics=("parallel",),
            vmem_limit_bytes=32 * 1024 * 1024),
    )(cond, w_e0, w_e12, w_head, sel_a, sel_b, b_all, alphas)

    # Only trivial slices/reshapes of the single lane-dense slab remain here.
    weights = slab[:B, :K]
    means = slab[:B, K:K + K * D].reshape(B, K, D)
    covars = slab[:B, off_ld:off_ld + K * D * D].reshape(B, K, D, D)
    return weights, means, covars


# ----------------------- deterministic parameter init ------------------------
def init_params(key, conditional_dim, vec_dim, n_components, data_dim):
    K, D, V, C = n_components, data_dim, vec_dim, conditional_dim
    cov_dim = K * D * (D + 1) // 2

    def linear(k, fan_in, fan_out):
        kw, kb = jax.random.split(k)
        bound = 1.0 / np.sqrt(fan_in)
        w = jax.random.uniform(kw, (fan_in, fan_out), jnp.float32, -bound, bound)
        b = jax.random.uniform(kb, (1, fan_out), jnp.float32, -bound, bound)
        return w, b

    keys = jax.random.split(key, 6)
    p = {}
    p["w_e0"], p["b_e0"] = linear(keys[0], C, V)
    p["w_e1"], p["b_e1"] = linear(keys[1], V, V)
    p["w_e2"], p["b_e2"] = linear(keys[2], V, V)
    p["w_w"],  p["b_w"]  = linear(keys[3], V, K)
    p["w_m"],  p["b_m"]  = linear(keys[4], V, K * D)
    p["w_c"],  p["b_c"]  = linear(keys[5], V, cov_dim)
    # nn.PReLU() default init = 0.25 (one parameter per activation instance)
    for n in ("a_e0", "a_e1", "a_e2"):
        p[n] = jnp.full((1, 1), 0.25, jnp.float32)
    return p


# ------------------------------ pure-JAX reference ---------------------------
def reference_forward(conditional, p, *, n_components, data_dim):
    prelu = lambda h, a: jnp.where(h > 0, h, a * h)
    h = prelu(conditional @ p["w_e0"] + p["b_e0"], p["a_e0"])
    h = prelu(h @ p["w_e1"] + p["b_e1"], p["a_e1"])
    h = prelu(h @ p["w_e2"] + p["b_e2"], p["a_e2"])
    weights = jax.nn.softmax(h @ p["w_w"] + p["b_w"], axis=-1)
    B = conditional.shape[0]
    K, D = n_components, data_dim
    means = (h @ p["w_m"] + p["b_m"]).reshape(B, K, D)
    ce = h @ p["w_c"] + p["b_c"]
    log_diag = ce[:, : K * D].reshape(B, K, D)
    lower = ce[:, K * D:].reshape(B, K, D * (D - 1) // 2)
    L = jnp.zeros((B, K, D, D), jnp.float32)
    L = L.at[:, :, np.arange(D), np.arange(D)].set(jnp.exp(log_diag))
    lr, lc = np.tril_indices(D, -1)   # same row-major order as torch.tril_indices
    L = L.at[:, :, lr, lc].set(lower)
    covars = jnp.einsum("bkij,bklj->bkil", L, L,
                        precision="highest") + jnp.eye(D) * 1e-4
    return weights, means, covars


# ---------------------------------- main --------------------------------------
if __name__ == "__main__":
    B = 16
    n_components, data_dim, conditional_dim, vec_dim = 4, 3, 5, 32

    key = jax.random.PRNGKey(0)
    k_param, k_data = jax.random.split(key)
    params = init_params(k_param, conditional_dim, vec_dim, n_components, data_dim)
    conditional = jax.random.normal(k_data, (B, conditional_dim), jnp.float32)

    weights, means, covars = gmmnet_forward(
        conditional, params, n_components=n_components, data_dim=data_dim)
    jax.block_until_ready((weights, means, covars))

    w_ref, m_ref, c_ref = reference_forward(
        conditional, params, n_components=n_components, data_dim=data_dim)
    np.testing.assert_allclose(np.asarray(weights), np.asarray(w_ref), rtol=1e-5, atol=1e-5)
    np.testing.assert_allclose(np.asarray(means),   np.asarray(m_ref), rtol=1e-5, atol=1e-5)
    np.testing.assert_allclose(np.asarray(covars),  np.asarray(c_ref), rtol=1e-5, atol=1e-5)

    print("KERNEL_OK")
</pallas_src>

<mosaic_0001>
module attributes {stable_mosaic.version = 11 : i64} {
  func.func @kernel(%arg0: i32, %arg1: memref<8x5xf32, #tpu.memory_space<vmem>>, %arg2: memref<5x128xf32, #tpu.memory_space<vmem>>, %arg3: memref<256x128xf32, #tpu.memory_space<vmem>>, %arg4: memref<128x128xf32, #tpu.memory_space<vmem>>, %arg5: memref<128x384xf32, #tpu.memory_space<vmem>>, %arg6: memref<128x384xf32, #tpu.memory_space<vmem>>, %arg7: memref<5x128xf32, #tpu.memory_space<vmem>>, %arg8: memref<3xf32, #tpu.memory_space<smem>>, %arg9: memref<8x128xf32, #tpu.memory_space<vmem>>) attributes {dimension_semantics = [#tpu.dimension_semantics<parallel>], iteration_bounds = array<i64: 2>, scalar_prefetch = 0 : i64, scratch_operands = 0 : i64, tpu.core_type = #tpu.core_type<tc>, window_params = [{transform_indices = @transform_0, window_bounds = array<i64: 8, 5>}, {pipeline_mode = #tpu.pipeline_mode<synchronous>, transform_indices = @transform_1, window_bounds = array<i64: 5, 128>}, {pipeline_mode = #tpu.pipeline_mode<synchronous>, transform_indices = @transform_2, window_bounds = array<i64: 256, 128>}, {pipeline_mode = #tpu.pipeline_mode<synchronous>, transform_indices = @transform_3, window_bounds = array<i64: 128, 128>}, {pipeline_mode = #tpu.pipeline_mode<synchronous>, transform_indices = @transform_4, window_bounds = array<i64: 128, 384>}, {pipeline_mode = #tpu.pipeline_mode<synchronous>, transform_indices = @transform_5, window_bounds = array<i64: 128, 384>}, {pipeline_mode = #tpu.pipeline_mode<synchronous>, transform_indices = @transform_6, window_bounds = array<i64: 5, 128>}, {transform_indices = @transform_7, window_bounds = array<i64: 3>}, {transform_indices = @transform_8, window_bounds = array<i64: 8, 128>}]} {
    %c0 = arith.constant 0 : index
    %c0_0 = arith.constant 0 : index
    %0 = vector.load %arg1[%c0, %c0_0] : memref<8x5xf32, #tpu.memory_space<vmem>>, vector<8x5xf32>
    %c0_1 = arith.constant 0 : index
    %c0_2 = arith.constant 0 : index
    %1 = vector.load %arg2[%c0_1, %c0_2] : memref<5x128xf32, #tpu.memory_space<vmem>>, vector<5x128xf32>
    %cst = arith.constant dense<0.000000e+00> : vector<8x128xf32>
    %2 = tpu.matmul %0, %1, %cst {dimension_numbers = #tpu.dot_dimension_numbers<[1], [0], [0], [1], [0, 0, 1, 1], [], []>} : vector<8x5xf32>, vector<5x128xf32>, vector<8x128xf32> -> vector<8x128xf32>
    %c0_3 = arith.constant 0 : index
    %c0_4 = arith.constant 0 : index
    %3 = vector.load %arg7[%c0_3, %c0_4] : memref<5x128xf32, #tpu.memory_space<vmem>>, vector<1x128xf32>
    %4 = vector.broadcast %3 : vector<1x128xf32> to vector<8x128xf32>
    %5 = arith.addf %2, %4 : vector<8x128xf32>
    %cst_5 = arith.constant 0.000000e+00 : f32
    %6 = vector.broadcast %cst_5 : f32 to vector<8x128xf32>
    %7 = arith.cmpf ogt, %5, %6 : vector<8x128xf32>
    %c0_6 = arith.constant 0 : index
    %8 = memref.load %arg8[%c0_6] : memref<3xf32, #tpu.memory_space<smem>>
    %9 = vector.broadcast %8 : f32 to vector<8x128xf32>
    %10 = arith.mulf %9, %5 : vector<8x128xf32>
    %11 = arith.select %7, %5, %10 : vector<8x128xi1>, vector<8x128xf32>
    %c0_7 = arith.constant 0 : index
    %c0_8 = arith.constant 0 : index
    %12 = vector.load %arg3[%c0_7, %c0_8] : memref<256x128xf32, #tpu.memory_space<vmem>>, vector<128x128xf32>
    %cst_9 = arith.constant dense<0.000000e+00> : vector<8x128xf32>
    %13 = tpu.matmul %11, %12, %cst_9 {dimension_numbers = #tpu.dot_dimension_numbers<[1], [0], [0], [1], [0, 0, 1, 1], [], []>} : vector<8x128xf32>, vector<128x128xf32>, vector<8x128xf32> -> vector<8x128xf32>
    %c1 = arith.constant 1 : index
    %c0_10 = arith.constant 0 : index
    %14 = vector.load %arg7[%c1, %c0_10] : memref<5x128xf32, #tpu.memory_space<vmem>>, vector<1x128xf32>
    %15 = vector.broadcast %14 : vector<1x128xf32> to vector<8x128xf32>
    %16 = arith.addf %13, %15 : vector<8x128xf32>
    %cst_11 = arith.constant 0.000000e+00 : f32
    %17 = vector.broadcast %cst_11 : f32 to vector<8x128xf32>
    %18 = arith.cmpf ogt, %16, %17 : vector<8x128xf32>
    %c1_12 = arith.constant 1 : index
    %19 = memref.load %arg8[%c1_12] : memref<3xf32, #tpu.memory_space<smem>>
    %20 = vector.broadcast %19 : f32 to vector<8x128xf32>
    %21 = arith.mulf %20, %16 : vector<8x128xf32>
    %22 = arith.select %18, %16, %21 : vector<8x128xi1>, vector<8x128xf32>
    %c128 = arith.constant 128 : index
    %c0_13 = arith.constant 0 : index
    %23 = vector.load %arg3[%c128, %c0_13] : memref<256x128xf32, #tpu.memory_space<vmem>>, vector<128x128xf32>
    %cst_14 = arith.constant dense<0.000000e+00> : vector<8x128xf32>
    %24 = tpu.matmul %22, %23, %cst_14 {dimension_numbers = #tpu.dot_dimension_numbers<[1], [0], [0], [1], [0, 0, 1, 1], [], []>} : vector<8x128xf32>, vector<128x128xf32>, vector<8x128xf32> -> vector<8x128xf32>
    %c2 = arith.constant 2 : index
    %c0_15 = arith.constant 0 : index
    %25 = vector.load %arg7[%c2, %c0_15] : memref<5x128xf32, #tpu.memory_space<vmem>>, vector<1x128xf32>
    %26 = vector.broadcast %25 : vector<1x128xf32> to vector<8x128xf32>
    %27 = arith.addf %24, %26 : vector<8x128xf32>
    %cst_16 = arith.constant 0.000000e+00 : f32
    %28 = vector.broadcast %cst_16 : f32 to vector<8x128xf32>
    %29 = arith.cmpf ogt, %27, %28 : vector<8x128xf32>
    %c2_17 = arith.constant 2 : index
    %30 = memref.load %arg8[%c2_17] : memref<3xf32, #tpu.memory_space<smem>>
    %31 = vector.broadcast %30 : f32 to vector<8x128xf32>
    %32 = arith.mulf %31, %27 : vector<8x128xf32>
    %33 = arith.select %29, %27, %32 : vector<8x128xi1>, vector<8x128xf32>
    %c0_18 = arith.constant 0 : index
    %c0_19 = arith.constant 0 : index
    %34 = vector.load %arg4[%c0_18, %c0_19] : memref<128x128xf32, #tpu.memory_space<vmem>>, vector<128x128xf32>
    %cst_20 = arith.constant dense<0.000000e+00> : vector<8x128xf32>
    %35 = tpu.matmul %33, %34, %cst_20 {dimension_numbers = #tpu.dot_dimension_numbers<[1], [0], [0], [1], [0, 0, 1, 1], [], []>} : vector<8x128xf32>, vector<128x128xf32>, vector<8x128xf32> -> vector<8x128xf32>
    %c3 = arith.constant 3 : index
    %c0_21 = arith.constant 0 : index
    %36 = vector.load %arg7[%c3, %c0_21] : memref<5x128xf32, #tpu.memory_space<vmem>>, vector<1x128xf32>
    %37 = vector.broadcast %36 : vector<1x128xf32> to vector<8x128xf32>
    %38 = arith.addf %35, %37 : vector<8x128xf32>
    %39 = tpu.iota {dimensions = array<i32: 1>} : vector<8x128xi32>
    %c4_i32 = arith.constant 4 : i32
    %40 = vector.broadcast %c4_i32 : i32 to vector<8x128xi32>
    %41 = arith.cmpi slt, %39, %40 : vector<8x128xi32>
    %cst_22 = arith.constant 0xFF800000 : f32
    %42 = vector.broadcast %cst_22 : f32 to vector<8x128xf32>
    %43 = arith.select %41, %38, %42 : vector<8x128xi1>, vector<8x128xf32>
    %cst_23 = arith.constant dense<0xFF800000> : vector<8xf32>
    %44 = vector.multi_reduction <maximumf>, %43, %cst_23 [1] : vector<8x128xf32> to vector<8xf32>
    %45 = vector.shape_cast %44 : vector<8xf32> to vector<8x1xf32>
    %46 = vector.broadcast %45 : vector<8x1xf32> to vector<8x128xf32>
    %47 = arith.subf %43, %46 : vector<8x128xf32>
    %48 = math.exp %47 : vector<8x128xf32>
    %cst_24 = arith.constant dense<0.000000e+00> : vector<8xf32>
    %49 = vector.multi_reduction <add>, %48, %cst_24 [1] : vector<8x128xf32> to vector<8xf32>
    %50 = vector.shape_cast %49 : vector<8xf32> to vector<8x1xf32>
    %51 = vector.broadcast %50 : vector<8x1xf32> to vector<8x128xf32>
    %52 = arith.divf %48, %51 : vector<8x128xf32>
    %c16_i32 = arith.constant 16 : i32
    %53 = vector.broadcast %c16_i32 : i32 to vector<8x128xi32>
    %54 = arith.cmpi sge, %39, %53 : vector<8x128xi32>
    %c28_i32 = arith.constant 28 : i32
    %55 = vector.broadcast %c28_i32 : i32 to vector<8x128xi32>
    %56 = arith.cmpi slt, %39, %55 : vector<8x128xi32>
    %57 = arith.andi %54, %56 : vector<8x128xi1>
    %58 = math.exp %38 : vector<8x128xf32>
    %59 = arith.select %57, %58, %38 : vector<8x128xi1>, vector<8x128xf32>
    %c0_25 = arith.constant 0 : index
    %c0_26 = arith.constant 0 : index
    %60 = vector.load %arg5[%c0_25, %c0_26] : memref<128x384xf32, #tpu.memory_space<vmem>>, vector<128x384xf32>
    %cst_27 = arith.constant dense<0.000000e+00> : vector<8x384xf32>
    %61 = tpu.matmul %59, %60, %cst_27 {dimension_numbers = #tpu.dot_dimension_numbers<[1], [0], [0], [1], [0, 0, 1, 1], [], []>, precision = #tpu.contract_precision<fp32>} : vector<8x128xf32>, vector<128x384xf32>, vector<8x384xf32> -> vector<8x384xf32>
    %c0_28 = arith.constant 0 : index
    %c0_29 = arith.constant 0 : index
    %62 = vector.load %arg6[%c0_28, %c0_29] : memref<128x384xf32, #tpu.memory_space<vmem>>, vector<128x384xf32>
    %cst_30 = arith.constant dense<0.000000e+00> : vector<8x384xf32>
    %63 = tpu.matmul %59, %62, %cst_30 {dimension_numbers = #tpu.dot_dimension_numbers<[1], [0], [0], [1], [0, 0, 1, 1], [], []>, precision = #tpu.contract_precision<fp32>} : vector<8x128xf32>, vector<128x384xf32>, vector<8x384xf32> -> vector<8x384xf32>
    %64 = arith.mulf %61, %63 : vector<8x384xf32>
    %65 = vector.extract_strided_slice %64 {offsets = [0, 0], sizes = [8, 128], strides = [1, 1]} : vector<8x384xf32> to vector<8x128xf32>
    %66 = vector.extract_strided_slice %64 {offsets = [0, 128], sizes = [8, 128], strides = [1, 1]} : vector<8x384xf32> to vector<8x128xf32>
    %67 = arith.addf %65, %66 : vector<8x128xf32>
    %68 = vector.extract_strided_slice %64 {offsets = [0, 256], sizes = [8, 128], strides = [1, 1]} : vector<8x384xf32> to vector<8x128xf32>
    %69 = arith.addf %67, %68 : vector<8x128xf32>
    %c4 = arith.constant 4 : index
    %c0_31 = arith.constant 0 : index
    %70 = vector.load %arg7[%c4, %c0_31] : memref<5x128xf32, #tpu.memory_space<vmem>>, vector<1x128xf32>
    %71 = vector.broadcast %70 : vector<1x128xf32> to vector<8x128xf32>
    %72 = arith.addf %69, %71 : vector<8x128xf32>
    %c4_i32_32 = arith.constant 4 : i32
    %73 = vector.broadcast %c4_i32_32 : i32 to vector<8x128xi32>
    %74 = arith.cmpi slt, %39, %73 : vector<8x128xi32>
    %c16_i32_33 = arith.constant 16 : i32
    %75 = vector.broadcast %c16_i32_33 : i32 to vector<8x128xi32>
    %76 = arith.cmpi slt, %39, %75 : vector<8x128xi32>
    %77 = arith.select %76, %38, %72 : vector<8x128xi1>, vector<8x128xf32>
    %78 = arith.select %74, %52, %77 : vector<8x128xi1>, vector<8x128xf32>
    %c0_34 = arith.constant 0 : index
    %c0_35 = arith.constant 0 : index
    %79 = vector.load %arg9[%c0_34, %c0_35] : memref<8x128xf32, #tpu.memory_space<vmem>>, vector<8x128xf32>
    tpu.vector_store %arg9[%c0_34, %c0_35], %78 {strides = array<i32>} : memref<8x128xf32, #tpu.memory_space<vmem>>, vector<8x128xf32>,
    return
  }
  func.func @transform_0(%arg0: i32) -> (i32, i32) {
    %c0_i32 = arith.constant 0 : i32
    %c0_i32_0 = arith.constant 0 : i32
    return %arg0, %c0_i32 : i32, i32
  }
  func.func @transform_1(%arg0: i32) -> (i32, i32) {
    %c0_i32 = arith.constant 0 : i32
    %c0_i32_0 = arith.constant 0 : i32
    %c0_i32_1 = arith.constant 0 : i32
    return %c0_i32, %c0_i32_0 : i32, i32
  }
  func.func @transform_2(%arg0: i32) -> (i32, i32) {
    %c0_i32 = arith.constant 0 : i32
    %c0_i32_0 = arith.constant 0 : i32
    %c0_i32_1 = arith.constant 0 : i32
    return %c0_i32, %c0_i32_0 : i32, i32
  }
  func.func @transform_3(%arg0: i32) -> (i32, i32) {
    %c0_i32 = arith.constant 0 : i32
    %c0_i32_0 = arith.constant 0 : i32
    %c0_i32_1 = arith.constant 0 : i32
    return %c0_i32, %c0_i32_0 : i32, i32
  }
  func.func @transform_4(%arg0: i32) -> (i32, i32) {
    %c0_i32 = arith.constant 0 : i32
    %c0_i32_0 = arith.constant 0 : i32
    %c0_i32_1 = arith.constant 0 : i32
    return %c0_i32, %c0_i32_0 : i32, i32
  }
  func.func @transform_5(%arg0: i32) -> (i32, i32) {
    %c0_i32 = arith.constant 0 : i32
    %c0_i32_0 = arith.constant 0 : i32
    %c0_i32_1 = arith.constant 0 : i32
    return %c0_i32, %c0_i32_0 : i32, i32
  }
  func.func @transform_6(%arg0: i32) -> (i32, i32) {
    %c0_i32 = arith.constant 0 : i32
    %c0_i32_0 = arith.constant 0 : i32
    %c0_i32_1 = arith.constant 0 : i32
    return %c0_i32, %c0_i32_0 : i32, i32
  }
  func.func @transform_7(%arg0: i32) -> i32 {
    %c0_i32 = arith.constant 0 : i32
    %c0_i32_0 = arith.constant 0 : i32
    return %c0_i32 : i32
  }
  func.func @transform_8(%arg0: i32) -> (i32, i32) {
    %c0_i32 = arith.constant 0 : i32
    %c0_i32_0 = arith.constant 0 : i32
    return %arg0, %c0_i32 : i32, i32
  }
}

</mosaic_0001>

<llo_original>
// kernel: tpu_custom_call.1
$region0: #{tpu_custom_call.1}
  #allocation0 [shape = 'u32[]', space=smem, size = 0x4, offset = 0x4, fixed_abs, tag = 'smem constant byte address 0x4 - core index']
  #allocation1 [shape = 'u32[144,128]{1,0:T(1,128)}', space=vmem, size = 0x12000, scoped, tag = 'internal scratch']
  %s0 = inlined_call_operand.vmem [shape: f32[16,5], index: 0, kind: input, shape index: {}]
  %s1 = inlined_call_operand.vmem [shape: f32[5,128], index: 1, kind: input, shape index: {}]
  %s2 = inlined_call_operand.hbm [shape: f32[256,128], index: 2, kind: input, shape index: {}]
  %s3 = inlined_call_operand.hbm [shape: f32[128,128], index: 3, kind: input, shape index: {}]
  %s4 = inlined_call_operand.hbm [shape: f32[128,384], index: 4, kind: input, shape index: {}]
  %s5 = inlined_call_operand.hbm [shape: f32[128,384], index: 5, kind: input, shape index: {}]
  %s6 = inlined_call_operand.vmem [shape: f32[5,128], index: 6, kind: input, shape index: {}]
  %s7 = inlined_call_operand.vmem [shape: f32[3], index: 7, kind: input, shape index: {}]
  %s8 = inlined_call_operand.hbm [shape: f32[16,128], index: 8, kind: output, shape index: {}]
  %s9 = sld [smem:[#allocation0]]
  $region85: #{tpu_custom_call.1} parent=0
    _
  %s11 = ssub.s32 1, %s9
  %s12 = scalar_select 0, %s11, %s9
  $region1: #{tpu_custom_call.1} parent=0
    #allocation2 [shape = 'u8[131072]{0}', space=vmem, size = 0x20000, scoped, tag = 'input window, operand 2, single buffered']
    #allocation3 [shape = 's32[2]{0}', space=sflag, size = 0x8, scoped, tag = 'scoped memory for tpu_custom_call.1']
    #allocation4 [shape = 's32[2]{0}', space=sflag, size = 0x8, scoped, tag = 'scoped memory for tpu_custom_call.1']
    #allocation5 [shape = 's32[2]{0}', space=sflag, size = 0x8, scoped, tag = 'scoped memory for tpu_custom_call.1']
    #allocation6 [shape = 'u8[65536]{0}', space=vmem, size = 0x10000, scoped, tag = 'input window, operand 3, single buffered']
    #allocation7 [shape = 's32[1]{0}', space=sflag, size = 0x4, scoped, tag = 'scoped memory for tpu_custom_call.1']
    #allocation8 [shape = 'u8[196608]{0}', space=vmem, size = 0x30000, scoped, tag = 'input window, operand 4, single buffered']
    #allocation9 [shape = 'u8[196608]{0}', space=vmem, size = 0x30000, scoped, tag = 'input window, operand 5, single buffered']
    #allocation10 [shape = 's32[1]{0}', space=sflag, size = 0x4, scoped, tag = 'scoped memory for tpu_custom_call.1']
    #allocation11 [shape = 'u8[512]{0}', space=smem, size = 0x200, scoped, tag = 'input window, operand 7, single buffered']
    #allocation12 [shape = 'u8[8192]{0}', space=vmem, size = 0x2000, scoped, tag = 'output window, operand 0']
    %13 = vsyncpa [#allocation3], 0
    %14 = vsyncpa [#allocation7], 0
    %15 = vsyncpa [#allocation10], 0
    %16 = vsyncpa [#allocation5], 0
    %17 = vsyncpa [#allocation4], 0
    %s18 = scalar_lea.sflag [#allocation4], 1
    %19 = vsyncpa %s18, 0
    loop: start=0, step=1, limit=4
    $region2: #{tpu_custom_call.1} parent=1 // loop_pre_header
      _
    $region3: #{tpu_custom_call.1} parent=1 // loop_header
      %s21 = sphi 0, %s25
      %p22 = scmp.ge.s32.totalorder %s21, 4
      %s31 = sphi 0, %s33
      %s34 = sphi 0, %s31
      %s35 = sphi 0, %s34
      %s51 = sphi 0, %s35
      %s55 = sphi 0, %s55
      %s57 = sphi 0, %s55
      %s58 = sphi 0, %s57
      %s72 = sphi 0, %s58
      %s76 = sphi 0, %s76
      %s78 = sphi 0, %s76
      %s79 = sphi 0, %s78
      %s93 = sphi 0, %s79
      %s97 = sphi 0, %s97
      %s99 = sphi 0, %s97
      %s100 = sphi 0, %s99
      %s114 = sphi 0, %s100
      %s118 = sphi 0, %s118
      %s120 = sphi 0, %s118
      %s121 = sphi 0, %s120
      %s135 = sphi 0, %s121
      %s139 = sphi 0, %s139
      %s141 = sphi 0, %s139
      %s142 = sphi 0, %s141
      %s156 = sphi 0, %s142
      %s160 = sphi 0, %s160
      %s162 = sphi 0, %s160
      %s163 = sphi 0, %s162
      %s177 = sphi 0, %s163
      %s181 = sphi 0, %s181
      %s183 = sphi 0, %s181
      %s184 = sphi 0, %s183
      %s198 = sphi 0, %s184
      %s204 = sphi 0, %s206
      %s207 = sphi 0, %s204
      %s208 = sphi 0, %s207
      %s224 = sphi 0, %s208
    $region4: #{tpu_custom_call.1} parent=1 // loop_header_branch
      %24 = sbr.rel (%p22) target = $region8
    $region5: #{tpu_custom_call.1} parent=1 // loop_body
      %s26 = ssub.s32 %s21, 1
      %s27 = ssub.s32 %s21, 2
      %s28 = sadd.s32 %s21, 1
      %s29 = ssub.s32 %s21, %s28
      %p30 = scmp.eq.s32.totalorder %s29, 0
      %s32 = sadd.s32 %s31, 1
      %s33 = scalar_select %p30, %s31, %s32
      %p36 = pneg %p30
      %p37 = scmp.eq.s32.totalorder %s21, 1
      %p38 = por %p36, %p37
      %p39 = scmp.ne.s32.totalorder %s31, %s34
      %p40 = scmp.eq.s32.totalorder %s21, 0
      %p41 = por %p39, %p40
      %p42 = scmp.ne.s32.totalorder %s31, %s34
      %p43 = scmp.eq.s32.totalorder %s26, 1
      %p44 = por %p42, %p43
      %p45 = scmp.ne.s32.totalorder %s34, %s35
      %p46 = scmp.eq.s32.totalorder %s26, 0
      %p47 = por %p45, %p46
      %p48 = scmp.ne.s32.totalorder %s34, %s35
      %p49 = scmp.eq.s32.totalorder %s27, 1
      %p50 = por %p48, %p49
      %p52 = scmp.ne.s32.totalorder %s35, %s51
      %p53 = scmp.eq.s32.totalorder %s27, 0
      %p54 = por %p52, %p53
      %s56 = sadd.s32 %s55, 1
      %p59 = scmp.eq.s32.totalorder %s21, 1
      %p60 = scmp.ne.s32.totalorder %s55, %s57
      %p61 = scmp.eq.s32.totalorder %s21, 0
      %p62 = por %p60, %p61
      %p63 = scmp.ne.s32.totalorder %s55, %s57
      %p64 = scmp.eq.s32.totalorder %s26, 1
      %p65 = por %p63, %p64
      %p66 = scmp.ne.s32.totalorder %s57, %s58
      %p67 = scmp.eq.s32.totalorder %s26, 0
      %p68 = por %p66, %p67
      %p69 = scmp.ne.s32.totalorder %s57, %s58
      %p70 = scmp.eq.s32.totalorder %s27, 1
      %p71 = por %p69, %p70
      %p73 = scmp.ne.s32.totalorder %s58, %s72
      %p74 = scmp.eq.s32.totalorder %s27, 0
      %p75 = por %p73, %p74
      %s77 = sadd.s32 %s76, 1
      %p80 = scmp.eq.s32.totalorder %s21, 1
      %p81 = scmp.ne.s32.totalorder %s76, %s78
      %p82 = scmp.eq.s32.totalorder %s21, 0
      %p83 = por %p81, %p82
      %p84 = scmp.ne.s32.totalorder %s76, %s78
      %p85 = scmp.eq.s32.totalorder %s26, 1
      %p86 = por %p84, %p85
      %p87 = scmp.ne.s32.totalorder %s78, %s79
      %p88 = scmp.eq.s32.totalorder %s26, 0
      %p89 = por %p87, %p88
      %p90 = scmp.ne.s32.totalorder %s78, %s79
      %p91 = scmp.eq.s32.totalorder %s27, 1
      %p92 = por %p90, %p91
      %p94 = scmp.ne.s32.totalorder %s79, %s93
      %p95 = scmp.eq.s32.totalorder %s27, 0
      %p96 = por %p94, %p95
      %s98 = sadd.s32 %s97, 1
      %p101 = scmp.eq.s32.totalorder %s21, 1
      %p102 = scmp.ne.s32.totalorder %s97, %s99
      %p103 = scmp.eq.s32.totalorder %s21, 0
      %p104 = por %p102, %p103
      %p105 = scmp.ne.s32.totalorder %s97, %s99
      %p106 = scmp.eq.s32.totalorder %s26, 1
      %p107 = por %p105, %p106
      %p108 = scmp.ne.s32.totalorder %s99, %s100
      %p109 = scmp.eq.s32.totalorder %s26, 0
      %p110 = por %p108, %p109
      %p111 = scmp.ne.s32.totalorder %s99, %s100
      %p112 = scmp.eq.s32.totalorder %s27, 1
      %p113 = por %p111, %p112
      %p115 = scmp.ne.s32.totalorder %s100, %s114
      %p116 = scmp.eq.s32.totalorder %s27, 0
      %p117 = por %p115, %p116
      %s119 = sadd.s32 %s118, 1
      %p122 = scmp.eq.s32.totalorder %s21, 1
      %p123 = scmp.ne.s32.totalorder %s118, %s120
      %p124 = scmp.eq.s32.totalorder %s21, 0
      %p125 = por %p123, %p124
      %p126 = scmp.ne.s32.totalorder %s118, %s120
      %p127 = scmp.eq.s32.totalorder %s26, 1
      %p128 = por %p126, %p127
      %p129 = scmp.ne.s32.totalorder %s120, %s121
      %p130 = scmp.eq.s32.totalorder %s26, 0
      %p131 = por %p129, %p130
      %p132 = scmp.ne.s32.totalorder %s120, %s121
      %p133 = scmp.eq.s32.totalorder %s27, 1
      %p134 = por %p132, %p133
      %p136 = scmp.ne.s32.totalorder %s121, %s135
      %p137 = scmp.eq.s32.totalorder %s27, 0
      %p138 = por %p136, %p137
      %s140 = sadd.s32 %s139, 1
      %p143 = scmp.eq.s32.totalorder %s21, 1
      %p144 = scmp.ne.s32.totalorder %s139, %s141
      %p145 = scmp.eq.s32.totalorder %s21, 0
      %p146 = por %p144, %p145
      %p147 = scmp.ne.s32.totalorder %s139, %s141
      %p148 = scmp.eq.s32.totalorder %s26, 1
      %p149 = por %p147, %p148
      %p150 = scmp.ne.s32.totalorder %s141, %s142
      %p151 = scmp.eq.s32.totalorder %s26, 0
      %p152 = por %p150, %p151
      %p153 = scmp.ne.s32.totalorder %s141, %s142
      %p154 = scmp.eq.s32.totalorder %s27, 1
      %p155 = por %p153, %p154
      %p157 = scmp.ne.s32.totalorder %s142, %s156
      %p158 = scmp.eq.s32.totalorder %s27, 0
      %p159 = por %p157, %p158
      %s161 = sadd.s32 %s160, 1
      %p164 = scmp.eq.s32.totalorder %s21, 1
      %p165 = scmp.ne.s32.totalorder %s160, %s162
      %p166 = scmp.eq.s32.totalorder %s21, 0
      %p167 = por %p165, %p166
      %p168 = scmp.ne.s32.totalorder %s160, %s162
      %p169 = scmp.eq.s32.totalorder %s26, 1
      %p170 = por %p168, %p169
      %p171 = scmp.ne.s32.totalorder %s162, %s163
      %p172 = scmp.eq.s32.totalorder %s26, 0
      %p173 = por %p171, %p172
      %p174 = scmp.ne.s32.totalorder %s162, %s163
      %p175 = scmp.eq.s32.totalorder %s27, 1
      %p176 = por %p174, %p175
      %p178 = scmp.ne.s32.totalorder %s163, %s177
      %p179 = scmp.eq.s32.totalorder %s27, 0
      %p180 = por %p178, %p179
      %s182 = sadd.s32 %s181, 1
      %p185 = scmp.eq.s32.totalorder %s21, 1
      %p186 = scmp.ne.s32.totalorder %s181, %s183
      %p187 = scmp.eq.s32.totalorder %s21, 0
      %p188 = por %p186, %p187
      %p189 = scmp.ne.s32.totalorder %s181, %s183
      %p190 = scmp.eq.s32.totalorder %s26, 1
      %p191 = por %p189, %p190
      %p192 = scmp.ne.s32.totalorder %s183, %s184
      %p193 = scmp.eq.s32.totalorder %s26, 0
      %p194 = por %p192, %p193
      %p195 = scmp.ne.s32.totalorder %s183, %s184
      %p196 = scmp.eq.s32.totalorder %s27, 1
      %p197 = por %p195, %p196
      %p199 = scmp.ne.s32.totalorder %s184, %s198
      %p200 = scmp.eq.s32.totalorder %s27, 0
      %p201 = por %p199, %p200
      %s202 = ssub.s32 %s21, %s28
      %p203 = scmp.eq.s32.totalorder %s202, 0
      %s205 = sadd.s32 %s204, 1
      %s206 = scalar_select %p203, %s204, %s205
      %p209 = pneg %p203
      %p210 = scmp.eq.s32.totalorder %s21, 1
      %p211 = por %p209, %p210
      %p212 = scmp.ne.s32.totalorder %s204, %s207
      %p213 = scmp.eq.s32.totalorder %s21, 0
      %p214 = por %p212, %p213
      %p215 = scmp.ne.s32.totalorder %s204, %s207
      %p216 = scmp.eq.s32.totalorder %s26, 1
      %p217 = por %p215, %p216
      %p218 = scmp.ne.s32.totalorder %s207, %s208
      %p219 = scmp.eq.s32.totalorder %s26, 0
      %p220 = por %p218, %p219
      %p221 = scmp.ne.s32.totalorder %s207, %s208
      %p222 = scmp.eq.s32.totalorder %s27, 1
      %p223 = por %p221, %p222
      %p225 = scmp.ne.s32.totalorder %s208, %s224
      %p226 = scmp.eq.s32.totalorder %s27, 0
      %p227 = por %p225, %p226
      %p228 = scmp.le.s32.totalorder 1, %s21
      %p229 = scmp.lt.s32.totalorder %s21, 3
      %p230 = pnand %p228, %p229
      %p231 = pneg %p230
      // Predicated region
      $region9: #{tpu_custom_call.1} parent=5 // pred_check
        _
      $region10: #{tpu_custom_call.1} parent=5 // pred_check_branch
        %233 = sbr.rel (%p230) target = $region12
      $region11: #{tpu_custom_call.1} parent=5 // pred_region
        %s234 = ssub.s32 %s21, 1
        // Predicated region
        $region13: #{tpu_custom_call.1} parent=11 // pred_check
          %p235 = pneg %p68
        $region14: #{tpu_custom_call.1} parent=11 // pred_check_branch
          %237 = sbr.rel (%p235) target = $region16
        $region15: #{tpu_custom_call.1} parent=11 // pred_region
          _
        $region16: #{tpu_custom_call.1} parent=11 // pred_fallthru
          _
        // Predicated region
        $region17: #{tpu_custom_call.1} parent=11 // pred_check
          %p238 = pneg %p89
        $region18: #{tpu_custom_call.1} parent=11 // pred_check_branch
          %240 = sbr.rel (%p238) target = $region20
        $region19: #{tpu_custom_call.1} parent=11 // pred_region
          %s242 = ssub.s32 4096, 4096
          %243 = vsyncadd [#allocation3], %s242
          %s244 = sshll.u32 [#allocation2], 4
          %s245 = int_to_ptr.vmem [resolvable:$true] %s244
          %250 = dma.hbm_to_vmem [thread:$0]  %s2, 4096, %s245, [#allocation3], 128, 128, 8
        $region20: #{tpu_custom_call.1} parent=11 // pred_fallthru
          _
        // Predicated region
        $region21: #{tpu_custom_call.1} parent=11 // pred_check
          %p251 = pneg %p110
        $region22: #{tpu_custom_call.1} parent=11 // pred_check_branch
          %253 = sbr.rel (%p251) target = $region24
        $region23: #{tpu_custom_call.1} parent=11 // pred_region
          %s255 = ssub.s32 2048, 2048
          %256 = vsyncadd [#allocation7], %s255
          %s257 = sshll.u32 [#allocation6], 4
          %s258 = int_to_ptr.vmem [resolvable:$true] %s257
          %263 = dma.hbm_to_vmem [thread:$0]  %s3, 2048, %s258, [#allocation7], 128, 128, 8
        $region24: #{tpu_custom_call.1} parent=11 // pred_fallthru
          _
        // Predicated region
        $region25: #{tpu_custom_call.1} parent=11 // pred_check
          %p264 = pneg %p131
        $region26: #{tpu_custom_call.1} parent=11 // pred_check_branch
          %266 = sbr.rel (%p264) target = $region28
        $region27: #{tpu_custom_call.1} parent=11 // pred_region
          %s268 = ssub.s32 6144, 6144
          %269 = vsyncadd [#allocation7], %s268
          %s270 = sshll.u32 [#allocation8], 4
          %s271 = int_to_ptr.vmem [resolvable:$true] %s270
          %276 = dma.hbm_to_vmem [thread:$0]  %s4, 6144, %s271, [#allocation7], 384, 384, 24
        $region28: #{tpu_custom_call.1} parent=11 // pred_fallthru
          _
        // Predicated region
        $region29: #{tpu_custom_call.1} parent=11 // pred_check
          %p277 = pneg %p152
        $region30: #{tpu_custom_call.1} parent=11 // pred_check_branch
          %279 = sbr.rel (%p277) target = $region32
        $region31: #{tpu_custom_call.1} parent=11 // pred_region
          %s281 = ssub.s32 6144, 6144
          %282 = vsyncadd [#allocation10], %s281
          %s283 = sshll.u32 [#allocation9], 4
          %s284 = int_to_ptr.vmem [resolvable:$true] %s283
          %289 = dma.hbm_to_vmem [thread:$0]  %s5, 6144, %s284, [#allocation10], 384, 384, 24
        $region32: #{tpu_custom_call.1} parent=11 // pred_fallthru
          _
        // Predicated region
        $region33: #{tpu_custom_call.1} parent=11 // pred_check
          %p290 = pneg %p173
        $region34: #{tpu_custom_call.1} parent=11 // pred_check_branch
          %292 = sbr.rel (%p290) target = $region36
        $region35: #{tpu_custom_call.1} parent=11 // pred_region
          _
        $region36: #{tpu_custom_call.1} parent=11 // pred_fallthru
          _
        // Predicated region
        $region37: #{tpu_custom_call.1} parent=11 // pred_check
          %p293 = pneg %p194
        $region38: #{tpu_custom_call.1} parent=11 // pred_check_branch
          %295 = sbr.rel (%p293) target = $region40
        $region39: #{tpu_custom_call.1} parent=11 // pred_region
          %s297 = ssub.s32 16, 16
          %298 = vsyncadd [#allocation5], %s297
          %s300 = sshll.u32 %s7, 4
          %s301 = int_to_ptr.vmem [resolvable:$true] %s300
          %303 = dma.vmem_to_smem %s301, 16, [#allocation11], [#allocation5]
        $region40: #{tpu_custom_call.1} parent=11 // pred_fallthru
          _
      $region12: #{tpu_custom_call.1} parent=5 // pred_fallthru
        _
      %p304 = scmp.lt.s32.totalorder %s21, 2
      // Predicated region
      $region41: #{tpu_custom_call.1} parent=5 // pred_check
        %p305 = pneg %p304
      $region42: #{tpu_custom_call.1} parent=5 // pred_check_branch
        %307 = sbr.rel (%p305) target = $region44
      $region43: #{tpu_custom_call.1} parent=5 // pred_region
        // Predicated region
        $region45: #{tpu_custom_call.1} parent=43 // pred_check
          %p308 = pneg %p41
        $region46: #{tpu_custom_call.1} parent=43 // pred_check_branch
          %310 = sbr.rel (%p308) target = $region48
        $region47: #{tpu_custom_call.1} parent=43 // pred_region
          %p311 = scmp.lt.s32.totalorder %s21, 1
          %s312 = scalar_select %p311, %s21, 1
          %s313 = smul.addr %s312, 8
          %s314 = scalar_lea.vmem %s0, %s313
        $region48: #{tpu_custom_call.1} parent=43 // pred_fallthru
          _
      $region44: #{tpu_custom_call.1} parent=5 // pred_fallthru
        _
      %p315 = scmp.le.s32.totalorder 1, %s21
      %p316 = scmp.lt.s32.totalorder %s21, 3
      %p317 = pnand %p315, %p316
      %p318 = pneg %p317
      // Predicated region
      $region49: #{tpu_custom_call.1} parent=5 // pred_check
        _
      $region50: #{tpu_custom_call.1} parent=5 // pred_check_branch
        %320 = sbr.rel (%p317) target = $region52
      $region51: #{tpu_custom_call.1} parent=5 // pred_region
        %s321 = ssub.s32 %s21, 1
        // Predicated region
        $region53: #{tpu_custom_call.1} parent=51 // pred_check
          %p322 = pneg %p89
        $region54: #{tpu_custom_call.1} parent=51 // pred_check_branch
          %324 = sbr.rel (%p322) target = $region56
        $region55: #{tpu_custom_call.1} parent=51 // pred_region
          %325 = dma.done [#allocation3], 4096
        $region56: #{tpu_custom_call.1} parent=51 // pred_fallthru
          _
        // Predicated region
        $region57: #{tpu_custom_call.1} parent=51 // pred_check
          %p326 = pneg %p110
        $region58: #{tpu_custom_call.1} parent=51 // pred_check_branch
          %328 = sbr.rel (%p326) target = $region60
        $region59: #{tpu_custom_call.1} parent=51 // pred_region
          %329 = dma.done [#allocation7], 2048
        $region60: #{tpu_custom_call.1} parent=51 // pred_fallthru
          _
        // Predicated region
        $region61: #{tpu_custom_call.1} parent=51 // pred_check
          %p330 = pneg %p131
        $region62: #{tpu_custom_call.1} parent=51 // pred_check_branch
          %332 = sbr.rel (%p330) target = $region64
        $region63: #{tpu_custom_call.1} parent=51 // pred_region
          %333 = dma.done [#allocation7], 6144
        $region64: #{tpu_custom_call.1} parent=51 // pred_fallthru
          _
        // Predicated region
        $region65: #{tpu_custom_call.1} parent=51 // pred_check
          %p334 = pneg %p152
        $region66: #{tpu_custom_call.1} parent=51 // pred_check_branch
          %336 = sbr.rel (%p334) target = $region68
        $region67: #{tpu_custom_call.1} parent=51 // pred_region
          %337 = dma.done [#allocation10], 6144
        $region68: #{tpu_custom_call.1} parent=51 // pred_fallthru
          _
        // Predicated region
        $region69: #{tpu_custom_call.1} parent=51 // pred_check
          %p338 = pneg %p194
        $region70: #{tpu_custom_call.1} parent=51 // pred_check_branch
          %340 = sbr.rel (%p338) target = $region72
        $region71: #{tpu_custom_call.1} parent=51 // pred_region
          %341 = dma.done [#allocation5], 16
        $region72: #{tpu_custom_call.1} parent=51 // pred_fallthru
          _
        %342 = sfence
        %p343 = scmp.lt.s32.totalorder %s26, 1
        %s344 = scalar_select %p343, %s26, 1
        %s345 = smul.addr %s344, 8
        %s346 = scalar_lea.vmem %s0, %s345
        %p347 = pneg %p47
        %p348 = pneg %p44
        %p349 = pneg %p68
        %p350 = pneg %p65
        %p351 = pneg %p89
        %p352 = pneg %p86
        %p353 = pneg %p110
        %p354 = pneg %p107
        %p355 = pneg %p131
        %p356 = pneg %p128
        %p357 = pneg %p152
        %p358 = pneg %p149
        %p359 = pneg %p173
        %p360 = pneg %p170
        %p361 = pneg %p194
        %p362 = pneg %p191
        %p363 = pneg %p220
        %p364 = pneg %p217
        %s365 = sand.u32 %s207, 1
        %s366 = scalar_lea.sflag [#allocation4], %s365
        %s367 = sand.u32 %s207, 1
        %s368 = smul.addr %s367, 8
        %s369 = scalar_lea.vmem [#allocation12], %s368
        %p370 = scmp.lt.s32.totalorder %s26, 1
        %s371 = scalar_select %p370, %s26, 1
        %s372 = smul.addr %s371, 8
        %s373 = scalar_lea.vmem %s0, %s372
        %v374 = vld [vmem:[%s373] sm:$0xff]
        %v375 = vld [vmem:[%s1] sm:$0x1f]
        %v376 = vld [vmem:[%s6] sm:$0x1]
        %v377 = vlaneseq
        %v378 = vshrl.u32 %v377, 7
        %v379 = vsub.s32 0, %v378
        %v380 = vrot.slane %v376, %v379
        %vm381 = vcmask 39936
        %v383 = vsel %vm381, %v374, 0
        %vm385 = vcmask 1044480
        %v387 = vsel %vm385, %v375, 0
        %389 = vmatprep.subr.mxu0 0.0
        %390 = vmatpush1.msra.mxu0 %v387
        %391 = vmatprep.subr.mxu0 0.0
        %392 = vmatpush1.msra.mxu0 0.0
        %393 = vmatprep.subr.mxu0 0.0
        %394 = vmatpush1.msra.mxu0 0.0
        %395 = vmatprep.subr.mxu0 0.0
        %396 = vmatpush1.msra.mxu0 0.0
        %397 = vmatprep.subr.mxu0 0.0
        %398 = vmatpush1.msra.mxu0 0.0
        %399 = vmatprep.subr.mxu0 0.0
        %400 = vmatpush1.msra.mxu0 0.0
        %401 = vmatprep.subr.mxu0 0.0
        %402 = vmatpush1.msra.mxu0 0.0
        %403 = vmatprep.subr.mxu0 0.0
        %404 = vmatpush1.msra.mxu0 0.0
        %405 = vmatprep.subr.mxu0 0.0
        %406 = vmatpush1.msra.mxu0 0.0
        %407 = vmatprep.subr.mxu0 0.0
        %408 = vmatpush1.msra.mxu0 0.0
        %409 = vmatprep.subr.mxu0 0.0
        %410 = vmatpush1.msra.mxu0 0.0
        %411 = vmatprep.subr.mxu0 0.0
        %412 = vmatpush1.msra.mxu0 0.0
        %413 = vmatprep.subr.mxu0 0.0
        %414 = vmatpush1.msra.mxu0 0.0
        %415 = vmatprep.subr.mxu0 0.0
        %416 = vmatpush1.msra.mxu0 0.0
        %417 = vmatprep.subr.mxu0 0.0
        %418 = vmatpush1.msra.mxu0 0.0
        %419 = vmatprep.subr.mxu0 0.0
        %420 = vmatpush1.msra.mxu0 0.0
        %421 = vmatprep.subr.mxu0 0.0
        %422 = vmatpush1.msra.mxu0 0.0
        %423 = vmatprep.subr.mxu0 0.0
        %424 = vmatpush1.msra.mxu0 0.0
        %425 = vmatprep.subr.mxu0 0.0
        %426 = vmatpush1.msra.mxu0 0.0
        %427 = vmatprep.subr.mxu0 0.0
        %428 = vmatpush1.msra.mxu0 0.0
        %429 = vmatprep.subr.mxu0 0.0
        %430 = vmatpush1.msra.mxu0 0.0
        %431 = vmatprep.subr.mxu0 0.0
        %432 = vmatpush1.msra.mxu0 0.0
        %433 = vmatprep.subr.mxu0 0.0
        %434 = vmatpush1.msra.mxu0 0.0
        %435 = vmatprep.subr.mxu0 0.0
        %436 = vmatpush1.msra.mxu0 0.0
        %437 = vmatprep.subr.mxu0 0.0
        %438 = vmatpush1.msra.mxu0 0.0
        %439 = vmatprep.subr.mxu0 0.0
        %440 = vmatpush1.msra.mxu0 0.0
        %441 = vmatprep.subr.mxu0 0.0
        %442 = vmatpush1.msra.mxu0 0.0
        %443 = vmatprep.subr.mxu0 0.0
        %444 = vmatpush1.msra.mxu0 0.0
        %445 = vmatprep.subr.mxu0 0.0
        %446 = vmatpush1.msra.mxu0 0.0
        %447 = vmatprep.subr.mxu0 0.0
        %448 = vmatpush1.msra.mxu0 0.0
        %449 = vmatprep.subr.mxu0 0.0
        %450 = vmatpush1.msra.mxu0 0.0
        %451 = vmatprep.subr.mxu0 0.0
        %452 = vmatpush1.msra.mxu0 0.0
        %453 = vmatprep.mubr.f32.mxu0 0.0
        %454 = vmatmul.mubr.f32.gmra.mrb[0].mxu0 %v383
        %v455 = vpop.f32.mrb[0].mxu0
        %v456 = vadd.f32 %v380, %v455
        %v457 = vpop.f32.mrb[0].mxu0
        %458 = vdwg.mxu0
        %vm459 = vcmp.gt.f32.partialorder %v456, 0.0
        %s460 = sld [smem:[#allocation11]]
        %v461 = vstv %s460
        %v462 = vmul.f32 %v461, %v456
        %v463 = vsel %vm459, %v456, %v462
        %v464 = vld [vmem:[#allocation2] sm:$0xff]
        %v465 = vld [vmem:[#allocation2 + $0x8] sm:$0xff]
        %v466 = vld [vmem:[#allocation2 + $0x10] sm:$0xff]
        %v467 = vld [vmem:[#allocation2 + $0x18] sm:$0xff]
        %v468 = vld [vmem:[#allocation2 + $0x20] sm:$0xff]
        %v469 = vld [vmem:[#allocation2 + $0x28] sm:$0xff]
        %v470 = vld [vmem:[#allocation2 + $0x30] sm:$0xff]
        %v471 = vld [vmem:[#allocation2 + $0x38] sm:$0xff]
        %v472 = vld [vmem:[#allocation2 + $0x40] sm:$0xff]
        %v473 = vld [vmem:[#allocation2 + $0x48] sm:$0xff]
        %v474 = vld [vmem:[#allocation2 + $0x50] sm:$0xff]
        %v475 = vld [vmem:[#allocation2 + $0x58] sm:$0xff]
        %v476 = vld [vmem:[#allocation2 + $0x60] sm:$0xff]
        %v477 = vld [vmem:[#allocation2 + $0x68] sm:$0xff]
        %v478 = vld [vmem:[#allocation2 + $0x70] sm:$0xff]
        %v479 = vld [vmem:[#allocation2 + $0x78] sm:$0xff]
        %v480 = vld [vmem:[%s6 + $0x1] sm:$0x1]
        %v481 = vlaneseq
        %v482 = vshrl.u32 %v481, 7
        %v483 = vsub.s32 0, %v482
        %v484 = vrot.slane %v480, %v483
        %485 = vmatprep.subr.mxu0 0.0
        %486 = vmatpush1.msra.mxu0 %v464
        %487 = vmatprep.subr.mxu0 0.0
        %488 = vmatpush1.msra.mxu0 %v465
        %489 = vmatprep.subr.mxu0 0.0
        %490 = vmatpush1.msra.mxu0 %v466
        %491 = vmatprep.subr.mxu0 0.0
        %492 = vmatpush1.msra.mxu0 %v467
        %493 = vmatprep.subr.mxu0 0.0
        %494 = vmatpush1.msra.mxu0 %v468
        %495 = vmatprep.subr.mxu0 0.0
        %496 = vmatpush1.msra.mxu0 %v469
        %497 = vmatprep.subr.mxu0 0.0
        %498 = vmatpush1.msra.mxu0 %v470
        %499 = vmatprep.subr.mxu0 0.0
        %500 = vmatpush1.msra.mxu0 %v471
        %501 = vmatprep.subr.mxu0 0.0
        %502 = vmatpush1.msra.mxu0 %v472
        %503 = vmatprep.subr.mxu0 0.0
        %504 = vmatpush1.msra.mxu0 %v473
        %505 = vmatprep.subr.mxu0 0.0
        %506 = vmatpush1.msra.mxu0 %v474
        %507 = vmatprep.subr.mxu0 0.0
        %508 = vmatpush1.msra.mxu0 %v475
        %509 = vmatprep.subr.mxu0 0.0
        %510 = vmatpush1.msra.mxu0 %v476
        %511 = vmatprep.subr.mxu0 0.0
        %512 = vmatpush1.msra.mxu0 %v477
        %513 = vmatprep.subr.mxu0 0.0
        %514 = vmatpush1.msra.mxu0 %v478
        %515 = vmatprep.subr.mxu0 0.0
        %516 = vmatpush1.msra.mxu0 %v479
        %517 = vmatprep.subr.mxu0 0.0
        %518 = vmatpush1.msra.mxu0 0.0
        %519 = vmatprep.subr.mxu0 0.0
        %520 = vmatpush1.msra.mxu0 0.0
        %521 = vmatprep.subr.mxu0 0.0
        %522 = vmatpush1.msra.mxu0 0.0
        %523 = vmatprep.subr.mxu0 0.0
        %524 = vmatpush1.msra.mxu0 0.0
        %525 = vmatprep.subr.mxu0 0.0
        %526 = vmatpush1.msra.mxu0 0.0
        %527 = vmatprep.subr.mxu0 0.0
        %528 = vmatpush1.msra.mxu0 0.0
        %529 = vmatprep.subr.mxu0 0.0
        %530 = vmatpush1.msra.mxu0 0.0
        %531 = vmatprep.subr.mxu0 0.0
        %532 = vmatpush1.msra.mxu0 0.0
        %533 = vmatprep.subr.mxu0 0.0
        %534 = vmatpush1.msra.mxu0 0.0
        %535 = vmatprep.subr.mxu0 0.0
        %536 = vmatpush1.msra.mxu0 0.0
        %537 = vmatprep.subr.mxu0 0.0
        %538 = vmatpush1.msra.mxu0 0.0
        %539 = vmatprep.subr.mxu0 0.0
        %540 = vmatpush1.msra.mxu0 0.0
        %541 = vmatprep.subr.mxu0 0.0
        %542 = vmatpush1.msra.mxu0 0.0
        %543 = vmatprep.subr.mxu0 0.0
        %544 = vmatpush1.msra.mxu0 0.0
        %545 = vmatprep.subr.mxu0 0.0
        %546 = vmatpush1.msra.mxu0 0.0
        %547 = vmatprep.subr.mxu0 0.0
        %548 = vmatpush1.msra.mxu0 0.0
        %549 = vmatprep.mubr.f32.mxu0 0.0
        %550 = vmatmul.mubr.f32.gmra.mrb[0].mxu0 %v463
        %v551 = vpop.f32.mrb[0].mxu0
        %v552 = vadd.f32 %v484, %v551
        %v553 = vpop.f32.mrb[0].mxu0
        %554 = vdwg.mxu0
        %vm555 = vcmp.gt.f32.partialorder %v552, 0.0
        %s556 = sld [smem:[#allocation11 + $0x1]]
        %v557 = vstv %s556
        %v558 = vmul.f32 %v557, %v552
        %v559 = vsel %vm555, %v552, %v558
        %v560 = vld [vmem:[#allocation2 + $0x80] sm:$0xff]
        %v561 = vld [vmem:[#allocation2 + $0x88] sm:$0xff]
        %v562 = vld [vmem:[#allocation2 + $0x90] sm:$0xff]
        %v563 = vld [vmem:[#allocation2 + $0x98] sm:$0xff]
        %v564 = vld [vmem:[#allocation2 + $0xa0] sm:$0xff]
        %v565 = vld [vmem:[#allocation2 + $0xa8] sm:$0xff]
        %v566 = vld [vmem:[#allocation2 + $0xb0] sm:$0xff]
        %v567 = vld [vmem:[#allocation2 + $0xb8] sm:$0xff]
        %v568 = vld [vmem:[#allocation2 + $0xc0] sm:$0xff]
        %v569 = vld [vmem:[#allocation2 + $0xc8] sm:$0xff]
        %v570 = vld [vmem:[#allocation2 + $0xd0] sm:$0xff]
        %v571 = vld [vmem:[#allocation2 + $0xd8] sm:$0xff]
        %v572 = vld [vmem:[#allocation2 + $0xe0] sm:$0xff]
        %v573 = vld [vmem:[#allocation2 + $0xe8] sm:$0xff]
        %v574 = vld [vmem:[#allocation2 + $0xf0] sm:$0xff]
        %v575 = vld [vmem:[#allocation2 + $0xf8] sm:$0xff]
        %v576 = vld [vmem:[%s6 + $0x2] sm:$0x1]
        %v577 = vlaneseq
        %v578 = vshrl.u32 %v577, 7
        %v579 = vsub.s32 0, %v578
        %v580 = vrot.slane %v576, %v579
        %581 = vmatprep.subr.mxu0 0.0
        %582 = vmatpush1.msra.mxu0 %v560
        %583 = vmatprep.subr.mxu0 0.0
        %584 = vmatpush1.msra.mxu0 %v561
        %585 = vmatprep.subr.mxu0 0.0
        %586 = vmatpush1.msra.mxu0 %v562
        %587 = vmatprep.subr.mxu0 0.0
        %588 = vmatpush1.msra.mxu0 %v563
        %589 = vmatprep.subr.mxu0 0.0
        %590 = vmatpush1.msra.mxu0 %v564
        %591 = vmatprep.subr.mxu0 0.0
        %592 = vmatpush1.msra.mxu0 %v565
        %593 = vmatprep.subr.mxu0 0.0
        %594 = vmatpush1.msra.mxu0 %v566
        %595 = vmatprep.subr.mxu0 0.0
        %596 = vmatpush1.msra.mxu0 %v567
        %597 = vmatprep.subr.mxu0 0.0
        %598 = vmatpush1.msra.mxu0 %v568
        %599 = vmatprep.subr.mxu0 0.0
        %600 = vmatpush1.msra.mxu0 %v569
        %601 = vmatprep.subr.mxu0 0.0
        %602 = vmatpush1.msra.mxu0 %v570
        %603 = vmatprep.subr.mxu0 0.0
        %604 = vmatpush1.msra.mxu0 %v571
        %605 = vmatprep.subr.mxu0 0.0
        %606 = vmatpush1.msra.mxu0 %v572
        %607 = vmatprep.subr.mxu0 0.0
        %608 = vmatpush1.msra.mxu0 %v573
        %609 = vmatprep.subr.mxu0 0.0
        %610 = vmatpush1.msra.mxu0 %v574
        %611 = vmatprep.subr.mxu0 0.0
        %612 = vmatpush1.msra.mxu0 %v575
        %613 = vmatprep.subr.mxu0 0.0
        %614 = vmatpush1.msra.mxu0 0.0
        %615 = vmatprep.subr.mxu0 0.0
        %616 = vmatpush1.msra.mxu0 0.0
        %617 = vmatprep.subr.mxu0 0.0
        %618 = vmatpush1.msra.mxu0 0.0
        %619 = vmatprep.subr.mxu0 0.0
        %620 = vmatpush1.msra.mxu0 0.0
        %621 = vmatprep.subr.mxu0 0.0
        %622 = vmatpush1.msra.mxu0 0.0
        %623 = vmatprep.subr.mxu0 0.0
        %624 = vmatpush1.msra.mxu0 0.0
        %625 = vmatprep.subr.mxu0 0.0
        %626 = vmatpush1.msra.mxu0 0.0
        %627 = vmatprep.subr.mxu0 0.0
        %628 = vmatpush1.msra.mxu0 0.0
        %629 = vmatprep.subr.mxu0 0.0
        %630 = vmatpush1.msra.mxu0 0.0
        %631 = vmatprep.subr.mxu0 0.0
        %632 = vmatpush1.msra.mxu0 0.0
        %633 = vmatprep.subr.mxu0 0.0
        %634 = vmatpush1.msra.mxu0 0.0
        %635 = vmatprep.subr.mxu0 0.0
        %636 = vmatpush1.msra.mxu0 0.0
        %637 = vmatprep.subr.mxu0 0.0
        %638 = vmatpush1.msra.mxu0 0.0
        %639 = vmatprep.subr.mxu0 0.0
        %640 = vmatpush1.msra.mxu0 0.0
        %641 = vmatprep.subr.mxu0 0.0
        %642 = vmatpush1.msra.mxu0 0.0
        %643 = vmatprep.subr.mxu0 0.0
        %644 = vmatpush1.msra.mxu0 0.0
        %645 = vmatprep.mubr.f32.mxu0 0.0
        %646 = vmatmul.mubr.f32.gmra.mrb[0].mxu0 %v559
        %v647 = vpop.f32.mrb[0].mxu0
        %v648 = vadd.f32 %v580, %v647
        %v649 = vpop.f32.mrb[0].mxu0
        %650 = vdwg.mxu0
        %vm651 = vcmp.gt.f32.partialorder %v648, 0.0
        %s652 = sld [smem:[#allocation11 + $0x2]]
        %v653 = vstv %s652
        %v654 = vmul.f32 %v653, %v648
        %v655 = vsel %vm651, %v648, %v654
        %v656 = vld [vmem:[#allocation6] sm:$0xff]
        %v657 = vld [vmem:[#allocation6 + $0x8] sm:$0xff]
        %v658 = vld [vmem:[#allocation6 + $0x10] sm:$0xff]
        %v659 = vld [vmem:[#allocation6 + $0x18] sm:$0xff]
        %v660 = vld [vmem:[#allocation6 + $0x20] sm:$0xff]
        %v661 = vld [vmem:[#allocation6 + $0x28] sm:$0xff]
        %v662 = vld [vmem:[#allocation6 + $0x30] sm:$0xff]
        %v663 = vld [vmem:[#allocation6 + $0x38] sm:$0xff]
        %v664 = vld [vmem:[#allocation6 + $0x40] sm:$0xff]
        %v665 = vld [vmem:[#allocation6 + $0x48] sm:$0xff]
        %v666 = vld [vmem:[#allocation6 + $0x50] sm:$0xff]
        %v667 = vld [vmem:[#allocation6 + $0x58] sm:$0xff]
        %v668 = vld [vmem:[#allocation6 + $0x60] sm:$0xff]
        %v669 = vld [vmem:[#allocation6 + $0x68] sm:$0xff]
        %v670 = vld [vmem:[#allocation6 + $0x70] sm:$0xff]
        %v671 = vld [vmem:[#allocation6 + $0x78] sm:$0xff]
        %v672 = vld [vmem:[%s6 + $0x3] sm:$0x1]
        %v673 = vlaneseq
        %v674 = vshrl.u32 %v673, 7
        %v675 = vsub.s32 0, %v674
        %v676 = vrot.slane %v672, %v675
        %677 = vmatprep.subr.mxu0 0.0
        %678 = vmatpush1.msra.mxu0 %v656
        %679 = vmatprep.subr.mxu0 0.0
        %680 = vmatpush1.msra.mxu0 %v657
        %681 = vmatprep.subr.mxu0 0.0
        %682 = vmatpush1.msra.mxu0 %v658
        %683 = vmatprep.subr.mxu0 0.0
        %684 = vmatpush1.msra.mxu0 %v659
        %685 = vmatprep.subr.mxu0 0.0
        %686 = vmatpush1.msra.mxu0 %v660
        %687 = vmatprep.subr.mxu0 0.0
        %688 = vmatpush1.msra.mxu0 %v661
        %689 = vmatprep.subr.mxu0 0.0
        %690 = vmatpush1.msra.mxu0 %v662
        %691 = vmatprep.subr.mxu0 0.0
        %692 = vmatpush1.msra.mxu0 %v663
        %693 = vmatprep.subr.mxu0 0.0
        %694 = vmatpush1.msra.mxu0 %v664
        %695 = vmatprep.subr.mxu0 0.0
        %696 = vmatpush1.msra.mxu0 %v665
        %697 = vmatprep.subr.mxu0 0.0
        %698 = vmatpush1.msra.mxu0 %v666
        %699 = vmatprep.subr.mxu0 0.0
        %700 = vmatpush1.msra.mxu0 %v667
        %701 = vmatprep.subr.mxu0 0.0
        %702 = vmatpush1.msra.mxu0 %v668
        %703 = vmatprep.subr.mxu0 0.0
        %704 = vmatpush1.msra.mxu0 %v669
        %705 = vmatprep.subr.mxu0 0.0
        %706 = vmatpush1.msra.mxu0 %v670
        %707 = vmatprep.subr.mxu0 0.0
        %708 = vmatpush1.msra.mxu0 %v671
        %709 = vmatprep.subr.mxu0 0.0
        %710 = vmatpush1.msra.mxu0 0.0
        %711 = vmatprep.subr.mxu0 0.0
        %712 = vmatpush1.msra.mxu0 0.0
        %713 = vmatprep.subr.mxu0 0.0
        %714 = vmatpush1.msra.mxu0 0.0
        %715 = vmatprep.subr.mxu0 0.0
        %716 = vmatpush1.msra.mxu0 0.0
        %717 = vmatprep.subr.mxu0 0.0
        %718 = vmatpush1.msra.mxu0 0.0
        %719 = vmatprep.subr.mxu0 0.0
        %720 = vmatpush1.msra.mxu0 0.0
        %721 = vmatprep.subr.mxu0 0.0
        %722 = vmatpush1.msra.mxu0 0.0
        %723 = vmatprep.subr.mxu0 0.0
        %724 = vmatpush1.msra.mxu0 0.0
        %725 = vmatprep.subr.mxu0 0.0
        %726 = vmatpush1.msra.mxu0 0.0
        %727 = vmatprep.subr.mxu0 0.0
        %728 = vmatpush1.msra.mxu0 0.0
        %729 = vmatprep.subr.mxu0 0.0
        %730 = vmatpush1.msra.mxu0 0.0
        %731 = vmatprep.subr.mxu0 0.0
        %732 = vmatpush1.msra.mxu0 0.0
        %733 = vmatprep.subr.mxu0 0.0
        %734 = vmatpush1.msra.mxu0 0.0
        %735 = vmatprep.subr.mxu0 0.0
        %736 = vmatpush1.msra.mxu0 0.0
        %737 = vmatprep.subr.mxu0 0.0
        %738 = vmatpush1.msra.mxu0 0.0
        %739 = vmatprep.subr.mxu0 0.0
        %740 = vmatpush1.msra.mxu0 0.0
        %741 = vmatprep.mubr.f32.mxu0 0.0
        %742 = vmatmul.mubr.f32.gmra.mrb[0].mxu0 %v655
        %v743 = vpop.f32.mrb[0].mxu0
        %v744 = vadd.f32 %v676, %v743
        %v745 = vpop.f32.mrb[0].mxu0
        %746 = vdwg.mxu0
        %v747 = vlaneseq
        %v748 = vand.u32 %v747, 127
        %vm749 = vcmp.lt.s32.totalorder %v748, 4
        %v750 = vsel %vm749, %v744, -inf
        %751 = vmax.xlane.f32.xlu0 %v750
        %v752 = vpop.xlane.xlu0 %751
        %v753 = vsub.f32 %v750, %v752
        %v754 = vmul.f32 %v753, 1.442695
        %v755 = vpow.pop %v754
        %756 = vadd.xlane.f32.xlu0 %v755
        %v757 = vpop.xlane.xlu0 %756
        %v758 = vrcp.pop %v757
        %v759 = vmul.f32 %v755, %v758
        %vm760 = vcmp.ge.s32.totalorder %v748, 16
        %vm761 = vcmp.lt.s32.totalorder %v748, 28
        %vm762 = vmand %vm760, %vm761
        %v763 = vmul.f32 %v744, 1.442695
        %v764 = vpow.pop %v763
        %v765 = vsel %vm762, %v764, %v744
        %v766 = vld [vmem:[#allocation8] sm:$0xff]
        %v767 = vld [vmem:[#allocation8 + $0x8] sm:$0xff]
        %v768 = vld [vmem:[#allocation8 + $0x10] sm:$0xff]
        %v769 = vld [vmem:[#allocation8 + $0x18] sm:$0xff]
        %v770 = vld [vmem:[#allocation8 + $0x20] sm:$0xff]
        %v771 = vld [vmem:[#allocation8 + $0x28] sm:$0xff]
        %v772 = vld [vmem:[#allocation8 + $0x30] sm:$0xff]
        %v773 = vld [vmem:[#allocation8 + $0x38] sm:$0xff]
        %v774 = vld [vmem:[#allocation8 + $0x40] sm:$0xff]
        %v775 = vld [vmem:[#allocation8 + $0x48] sm:$0xff]
        %v776 = vld [vmem:[#allocation8 + $0x50] sm:$0xff]
        %v777 = vld [vmem:[#allocation8 + $0x58] sm:$0xff]
        %v778 = vld [vmem:[#allocation8 + $0x60] sm:$0xff]
        %v779 = vld [vmem:[#allocation8 + $0x68] sm:$0xff]
        %v780 = vld [vmem:[#allocation8 + $0x70] sm:$0xff]
        %v781 = vld [vmem:[#allocation8 + $0x78] sm:$0xff]
        %v782 = vld [vmem:[#allocation8 + $0x80] sm:$0xff]
        %v783 = vld [vmem:[#allocation8 + $0x88] sm:$0xff]
        %v784 = vld [vmem:[#allocation8 + $0x90] sm:$0xff]
        %v785 = vld [vmem:[#allocation8 + $0x98] sm:$0xff]
        %v786 = vld [vmem:[#allocation8 + $0xa0] sm:$0xff]
        %v787 = vld [vmem:[#allocation8 + $0xa8] sm:$0xff]
        %v788 = vld [vmem:[#allocation8 + $0xb0] sm:$0xff]
        %v789 = vld [vmem:[#allocation8 + $0xb8] sm:$0xff]
        %v790 = vld [vmem:[#allocation8 + $0xc0] sm:$0xff]
        %v791 = vld [vmem:[#allocation8 + $0xc8] sm:$0xff]
        %v792 = vld [vmem:[#allocation8 + $0xd0] sm:$0xff]
        %v793 = vld [vmem:[#allocation8 + $0xd8] sm:$0xff]
        %v794 = vld [vmem:[#allocation8 + $0xe0] sm:$0xff]
        %v795 = vld [vmem:[#allocation8 + $0xe8] sm:$0xff]
        %v796 = vld [vmem:[#allocation8 + $0xf0] sm:$0xff]
        %v797 = vld [vmem:[#allocation8 + $0xf8] sm:$0xff]
        %v798 = vld [vmem:[#allocation8 + $0x100] sm:$0xff]
        %v799 = vld [vmem:[#allocation8 + $0x108] sm:$0xff]
        %v800 = vld [vmem:[#allocation8 + $0x110] sm:$0xff]
        %v801 = vld [vmem:[#allocation8 + $0x118] sm:$0xff]
        %v802 = vld [vmem:[#allocation8 + $0x120] sm:$0xff]
        %v803 = vld [vmem:[#allocation8 + $0x128] sm:$0xff]
        %v804 = vld [vmem:[#allocation8 + $0x130] sm:$0xff]
        %v805 = vld [vmem:[#allocation8 + $0x138] sm:$0xff]
        %v806 = vld [vmem:[#allocation8 + $0x140] sm:$0xff]
        %v807 = vld [vmem:[#allocation8 + $0x148] sm:$0xff]
        %v808 = vld [vmem:[#allocation8 + $0x150] sm:$0xff]
        %v809 = vld [vmem:[#allocation8 + $0x158] sm:$0xff]
        %v810 = vld [vmem:[#allocation8 + $0x160] sm:$0xff]
        %v811 = vld [vmem:[#allocation8 + $0x168] sm:$0xff]
        %v812 = vld [vmem:[#allocation8 + $0x170] sm:$0xff]
        %v813 = vld [vmem:[#allocation8 + $0x178] sm:$0xff]
        %v814 = vand.u32 %v767, 4294901760
        %815 = vmatprep.subr.mxu0 %v814
        %v816 = vand.u32 %v766, 4294901760
        %817 = vmatpush1.msra.mxu0 %v816
        %v818 = vand.u32 %v770, 4294901760
        %819 = vmatprep.subr.mxu0 %v818
        %v820 = vand.u32 %v769, 4294901760
        %821 = vmatpush1.msra.mxu0 %v820
        %v822 = vand.u32 %v773, 4294901760
        %823 = vmatprep.subr.mxu0 %v822
        %v824 = vand.u32 %v772, 4294901760
        %825 = vmatpush1.msra.mxu0 %v824
        %v826 = vand.u32 %v776, 4294901760
        %827 = vmatprep.subr.mxu0 %v826
        %v828 = vand.u32 %v775, 4294901760
        %829 = vmatpush1.msra.mxu0 %v828
        %v830 = vand.u32 %v779, 4294901760
        %831 = vmatprep.subr.mxu0 %v830
        %v832 = vand.u32 %v778, 4294901760
        %833 = vmatpush1.msra.mxu0 %v832
        %v834 = vand.u32 %v782, 4294901760
        %835 = vmatprep.subr.mxu0 %v834
        %v836 = vand.u32 %v781, 4294901760
        %837 = vmatpush1.msra.mxu0 %v836
        %v838 = vand.u32 %v785, 4294901760
        %839 = vmatprep.subr.mxu0 %v838
        %v840 = vand.u32 %v784, 4294901760
        %841 = vmatpush1.msra.mxu0 %v840
        %v842 = vand.u32 %v788, 4294901760
        %843 = vmatprep.subr.mxu0 %v842
        %v844 = vand.u32 %v787, 4294901760
        %845 = vmatpush1.msra.mxu0 %v844
        %v846 = vand.u32 %v791, 4294901760
        %847 = vmatprep.subr.mxu0 %v846
        %v848 = vand.u32 %v790, 4294901760
        %849 = vmatpush1.msra.mxu0 %v848
        %v850 = vand.u32 %v794, 4294901760
        %851 = vmatprep.subr.mxu0 %v850
        %v852 = vand.u32 %v793, 4294901760
        %853 = vmatpush1.msra.mxu0 %v852
        %v854 = vand.u32 %v797, 4294901760
        %855 = vmatprep.subr.mxu0 %v854
        %v856 = vand.u32 %v796, 4294901760
        %857 = vmatpush1.msra.mxu0 %v856
        %v858 = vand.u32 %v800, 4294901760
        %859 = vmatprep.subr.mxu0 %v858
        %v860 = vand.u32 %v799, 4294901760
        %861 = vmatpush1.msra.mxu0 %v860
        %v862 = vand.u32 %v803, 4294901760
        %863 = vmatprep.subr.mxu0 %v862
        %v864 = vand.u32 %v802, 4294901760
        %865 = vmatpush1.msra.mxu0 %v864
        %v866 = vand.u32 %v806, 4294901760
        %867 = vmatprep.subr.mxu0 %v866
        %v868 = vand.u32 %v805, 4294901760
        %869 = vmatpush1.msra.mxu0 %v868
        %v870 = vand.u32 %v809, 4294901760
        %871 = vmatprep.subr.mxu0 %v870
        %v872 = vand.u32 %v808, 4294901760
        %873 = vmatpush1.msra.mxu0 %v872
        %v874 = vand.u32 %v812, 4294901760
        %875 = vmatprep.subr.mxu0 %v874
        %v876 = vand.u32 %v811, 4294901760
        %877 = vmatpush1.msra.mxu0 %v876
        %878 = vmatprep.subr.mxu0 0.0
        %879 = vmatpush1.msra.mxu0 0.0
        %880 = vmatprep.subr.mxu0 0.0
        %881 = vmatpush1.msra.mxu0 0.0
        %882 = vmatprep.subr.mxu0 0.0
        %883 = vmatpush1.msra.mxu0 0.0
        %884 = vmatprep.subr.mxu0 0.0
        %885 = vmatpush1.msra.mxu0 0.0
        %886 = vmatprep.subr.mxu0 0.0
        %887 = vmatpush1.msra.mxu0 0.0
        %888 = vmatprep.subr.mxu0 0.0
        %889 = vmatpush1.msra.mxu0 0.0
        %890 = vmatprep.subr.mxu0 0.0
        %891 = vmatpush1.msra.mxu0 0.0
        %892 = vmatprep.subr.mxu0 0.0
        %893 = vmatpush1.msra.mxu0 0.0
        %894 = vmatprep.subr.mxu0 0.0
        %895 = vmatpush1.msra.mxu0 0.0
        %896 = vmatprep.subr.mxu0 0.0
        %897 = vmatpush1.msra.mxu0 0.0
        %898 = vmatprep.subr.mxu0 0.0
        %899 = vmatpush1.msra.mxu0 0.0
        %900 = vmatprep.subr.mxu0 0.0
        %901 = vmatpush1.msra.mxu0 0.0
        %902 = vmatprep.subr.mxu0 0.0
        %903 = vmatpush1.msra.mxu0 0.0
        %904 = vmatprep.subr.mxu0 0.0
        %905 = vmatpush1.msra.mxu0 0.0
        %906 = vmatprep.subr.mxu0 0.0
        %907 = vmatpush1.msra.mxu0 0.0
        %908 = vmatprep.subr.mxu0 0.0
        %909 = vmatpush1.msra.mxu0 0.0
        %910 = vmatprep.mubr.f32.mxu0 0.0
        %v911 = vand.u32 %v765, 4294901760
        %v912 = vsub.f32 %v765, %v911
        %v913 = vand.u32 %v912, 4294901760
        %v914 = vsub.f32 %v912, %v913
        %v915 = vand.u32 %v914, 4294901760
        %916 = vmatmul.mubr.f32.gmra.mrb[0].mxu0 %v915
        %v917 = vpop.f32.mrb[0].mxu0
        %v918 = vadd.f32 0.0, %v917
        %v919 = vpop.f32.mrb[0].mxu0
        %v920 = vadd.f32 0.0, %v919
        %921 = vdwg.mxu0
        %v922 = vand.u32 %v767, 4294901760
        %v923 = vsub.f32 %v767, %v922
        %v924 = vand.u32 %v923, 4294901760
        %v925 = vsub.f32 %v923, %v924
        %v926 = vand.u32 %v925, 4294901760
        %927 = vmatprep.subr.mxu0 %v926
        %v928 = vand.u32 %v766, 4294901760
        %v929 = vsub.f32 %v766, %v928
        %v930 = vand.u32 %v929, 4294901760
        %v931 = vsub.f32 %v929, %v930
        %v932 = vand.u32 %v931, 4294901760
        %933 = vmatpush1.msra.mxu0 %v932
        %v934 = vand.u32 %v770, 4294901760
        %v935 = vsub.f32 %v770, %v934
        %v936 = vand.u32 %v935, 4294901760
        %v937 = vsub.f32 %v935, %v936
        %v938 = vand.u32 %v937, 4294901760
        %939 = vmatprep.subr.mxu0 %v938
        %v940 = vand.u32 %v769, 4294901760
        %v941 = vsub.f32 %v769, %v940
        %v942 = vand.u32 %v941, 4294901760
        %v943 = vsub.f32 %v941, %v942
        %v944 = vand.u32 %v943, 4294901760
        %945 = vmatpush1.msra.mxu0 %v944
        %v946 = vand.u32 %v773, 4294901760
        %v947 = vsub.f32 %v773, %v946
        %v948 = vand.u32 %v947, 4294901760
        %v949 = vsub.f32 %v947, %v948
        %v950 = vand.u32 %v949, 4294901760
        %951 = vmatprep.subr.mxu0 %v950
        %v952 = vand.u32 %v772, 4294901760
        %v953 = vsub.f32 %v772, %v952
        %v954 = vand.u32 %v953, 4294901760
        %v955 = vsub.f32 %v953, %v954
        %v956 = vand.u32 %v955, 4294901760
        %957 = vmatpush1.msra.mxu0 %v956
        %v958 = vand.u32 %v776, 4294901760
        %v959 = vsub.f32 %v776, %v958
        %v960 = vand.u32 %v959, 4294901760
        %v961 = vsub.f32 %v959, %v960
        %v962 = vand.u32 %v961, 4294901760
        %963 = vmatprep.subr.mxu0 %v962
        %v964 = vand.u32 %v775, 4294901760
        %v965 = vsub.f32 %v775, %v964
        %v966 = vand.u32 %v965, 4294901760
        %v967 = vsub.f32 %v965, %v966
        %v968 = vand.u32 %v967, 4294901760
        %969 = vmatpush1.msra.mxu0 %v968
        %v970 = vand.u32 %v779, 4294901760
        %v971 = vsub.f32 %v779, %v970
        %v972 = vand.u32 %v971, 4294901760
        %v973 = vsub.f32 %v971, %v972
        %v974 = vand.u32 %v973, 4294901760
        %975 = vmatprep.subr.mxu0 %v974
        %v976 = vand.u32 %v778, 4294901760
        %v977 = vsub.f32 %v778, %v976
        %v978 = vand.u32 %v977, 4294901760
        %v979 = vsub.f32 %v977, %v978
        %v980 = vand.u32 %v979, 4294901760
        %981 = vmatpush1.msra.mxu0 %v980
        %v982 = vand.u32 %v782, 4294901760
        %v983 = vsub.f32 %v782, %v982
        %v984 = vand.u32 %v983, 4294901760
        %v985 = vsub.f32 %v983, %v984
        %v986 = vand.u32 %v985, 4294901760
        %987 = vmatprep.subr.mxu0 %v986
        %v988 = vand.u32 %v781, 4294901760
        %v989 = vsub.f32 %v781, %v988
        %v990 = vand.u32 %v989, 4294901760
        %v991 = vsub.f32 %v989, %v990
        %v992 = vand.u32 %v991, 4294901760
        %993 = vmatpush1.msra.mxu0 %v992
        %v994 = vand.u32 %v785, 4294901760
        %v995 = vsub.f32 %v785, %v994
        %v996 = vand.u32 %v995, 4294901760
        %v997 = vsub.f32 %v995, %v996
        %v998 = vand.u32 %v997, 4294901760
        %999 = vmatprep.subr.mxu0 %v998
        %v1000 = vand.u32 %v784, 4294901760
        %v1001 = vsub.f32 %v784, %v1000
        %v1002 = vand.u32 %v1001, 4294901760
        %v1003 = vsub.f32 %v1001, %v1002
        %v1004 = vand.u32 %v1003, 4294901760
        %1005 = vmatpush1.msra.mxu0 %v1004
        %v1006 = vand.u32 %v788, 4294901760
        %v1007 = vsub.f32 %v788, %v1006
        %v1008 = vand.u32 %v1007, 4294901760
        %v1009 = vsub.f32 %v1007, %v1008
        %v1010 = vand.u32 %v1009, 4294901760
        %1011 = vmatprep.subr.mxu0 %v1010
        %v1012 = vand.u32 %v787, 4294901760
        %v1013 = vsub.f32 %v787, %v1012
        %v1014 = vand.u32 %v1013, 4294901760
        %v1015 = vsub.f32 %v1013, %v1014
        %v1016 = vand.u32 %v1015, 4294901760
        %1017 = vmatpush1.msra.mxu0 %v1016
        %v1018 = vand.u32 %v791, 4294901760
        %v1019 = vsub.f32 %v791, %v1018
        %v1020 = vand.u32 %v1019, 4294901760
        %v1021 = vsub.f32 %v1019, %v1020
        %v1022 = vand.u32 %v1021, 4294901760
        %1023 = vmatprep.subr.mxu0 %v1022
        %v1024 = vand.u32 %v790, 4294901760
        %v1025 = vsub.f32 %v790, %v1024
        %v1026 = vand.u32 %v1025, 4294901760
        %v1027 = vsub.f32 %v1025, %v1026
        %v1028 = vand.u32 %v1027, 4294901760
        %1029 = vmatpush1.msra.mxu0 %v1028
        %v1030 = vand.u32 %v794, 4294901760
        %v1031 = vsub.f32 %v794, %v1030
        %v1032 = vand.u32 %v1031, 4294901760
        %v1033 = vsub.f32 %v1031, %v1032
        %v1034 = vand.u32 %v1033, 4294901760
        %1035 = vmatprep.subr.mxu0 %v1034
        %v1036 = vand.u32 %v793, 4294901760
        %v1037 = vsub.f32 %v793, %v1036
        %v1038 = vand.u32 %v1037, 4294901760
        %v1039 = vsub.f32 %v1037, %v1038
        %v1040 = vand.u32 %v1039, 4294901760
        %1041 = vmatpush1.msra.mxu0 %v1040
        %v1042 = vand.u32 %v797, 4294901760
        %v1043 = vsub.f32 %v797, %v1042
        %v1044 = vand.u32 %v1043, 4294901760
        %v1045 = vsub.f32 %v1043, %v1044
        %v1046 = vand.u32 %v1045, 4294901760
        %1047 = vmatprep.subr.mxu0 %v1046
        %v1048 = vand.u32 %v796, 4294901760
        %v1049 = vsub.f32 %v796, %v1048
        %v1050 = vand.u32 %v1049, 4294901760
        %v1051 = vsub.f32 %v1049, %v1050
        %v1052 = vand.u32 %v1051, 4294901760
        %1053 = vmatpush1.msra.mxu0 %v1052
        %v1054 = vand.u32 %v800, 4294901760
        %v1055 = vsub.f32 %v800, %v1054
        %v1056 = vand.u32 %v1055, 4294901760
        %v1057 = vsub.f32 %v1055, %v1056
        %v1058 = vand.u32 %v1057, 4294901760
        %1059 = vmatprep.subr.mxu0 %v1058
        %v1060 = vand.u32 %v799, 4294901760
        %v1061 = vsub.f32 %v799, %v1060
        %v1062 = vand.u32 %v1061, 4294901760
        %v1063 = vsub.f32 %v1061, %v1062
        %v1064 = vand.u32 %v1063, 4294901760
        %1065 = vmatpush1.msra.mxu0 %v1064
        %v1066 = vand.u32 %v803, 4294901760
        %v1067 = vsub.f32 %v803, %v1066
        %v1068 = vand.u32 %v1067, 4294901760
        %v1069 = vsub.f32 %v1067, %v1068
        %v1070 = vand.u32 %v1069, 4294901760
        %1071 = vmatprep.subr.mxu0 %v1070
        %v1072 = vand.u32 %v802, 4294901760
        %v1073 = vsub.f32 %v802, %v1072
        %v1074 = vand.u32 %v1073, 4294901760
        %v1075 = vsub.f32 %v1073, %v1074
        %v1076 = vand.u32 %v1075, 4294901760
        %1077 = vmatpush1.msra.mxu0 %v1076
        %v1078 = vand.u32 %v806, 4294901760
        %v1079 = vsub.f32 %v806, %v1078
        %v1080 = vand.u32 %v1079, 4294901760
        %v1081 = vsub.f32 %v1079, %v1080
        %v1082 = vand.u32 %v1081, 4294901760
        %1083 = vmatprep.subr.mxu0 %v1082
        %v1084 = vand.u32 %v805, 4294901760
        %v1085 = vsub.f32 %v805, %v1084
        %v1086 = vand.u32 %v1085, 4294901760
        %v1087 = vsub.f32 %v1085, %v1086
        %v1088 = vand.u32 %v1087, 4294901760
        %1089 = vmatpush1.msra.mxu0 %v1088
        %v1090 = vand.u32 %v809, 4294901760
        %v1091 = vsub.f32 %v809, %v1090
        %v1092 = vand.u32 %v1091, 4294901760
        %v1093 = vsub.f32 %v1091, %v1092
        %v1094 = vand.u32 %v1093, 4294901760
        %1095 = vmatprep.subr.mxu0 %v1094
        %v1096 = vand.u32 %v808, 4294901760
        %v1097 = vsub.f32 %v808, %v1096
        %v1098 = vand.u32 %v1097, 4294901760
        %v1099 = vsub.f32 %v1097, %v1098
        %v1100 = vand.u32 %v1099, 4294901760
        %1101 = vmatpush1.msra.mxu0 %v1100
        %v1102 = vand.u32 %v812, 4294901760
        %v1103 = vsub.f32 %v812, %v1102
        %v1104 = vand.u32 %v1103, 4294901760
        %v1105 = vsub.f32 %v1103, %v1104
        %v1106 = vand.u32 %v1105, 4294901760
        %1107 = vmatprep.subr.mxu0 %v1106
        %v1108 = vand.u32 %v811, 4294901760
        %v1109 = vsub.f32 %v811, %v1108
        %v1110 = vand.u32 %v1109, 4294901760
        %v1111 = vsub.f32 %v1109, %v1110
        %v1112 = vand.u32 %v1111, 4294901760
        %1113 = vmatpush1.msra.mxu0 %v1112
        %1114 = vmatprep.subr.mxu0 0.0
        %1115 = vmatpush1.msra.mxu0 0.0
        %1116 = vmatprep.subr.mxu0 0.0
        %1117 = vmatpush1.msra.mxu0 0.0
        %1118 = vmatprep.subr.mxu0 0.0
        %1119 = vmatpush1.msra.mxu0 0.0
        %1120 = vmatprep.subr.mxu0 0.0
        %1121 = vmatpush1.msra.mxu0 0.0
        %1122 = vmatprep.subr.mxu0 0.0
        %1123 = vmatpush1.msra.mxu0 0.0
        %1124 = vmatprep.subr.mxu0 0.0
        %1125 = vmatpush1.msra.mxu0 0.0
        %1126 = vmatprep.subr.mxu0 0.0
        %1127 = vmatpush1.msra.mxu0 0.0
        %1128 = vmatprep.subr.mxu0 0.0
        %1129 = vmatpush1.msra.mxu0 0.0
        %1130 = vmatprep.subr.mxu0 0.0
        %1131 = vmatpush1.msra.mxu0 0.0
        %1132 = vmatprep.subr.mxu0 0.0
        %1133 = vmatpush1.msra.mxu0 0.0
        %1134 = vmatprep.subr.mxu0 0.0
        %1135 = vmatpush1.msra.mxu0 0.0
        %1136 = vmatprep.subr.mxu0 0.0
        %1137 = vmatpush1.msra.mxu0 0.0
        %1138 = vmatprep.subr.mxu0 0.0
        %1139 = vmatpush1.msra.mxu0 0.0
        %1140 = vmatprep.subr.mxu0 0.0
        %1141 = vmatpush1.msra.mxu0 0.0
        %1142 = vmatprep.subr.mxu0 0.0
        %1143 = vmatpush1.msra.mxu0 0.0
        %1144 = vmatprep.subr.mxu0 0.0
        %1145 = vmatpush1.msra.mxu0 0.0
        %1146 = vmatprep.mubr.f32.mxu0 0.0
        %v1147 = vand.u32 %v765, 4294901760
        %1148 = vmatmul.mubr.f32.gmra.mrb[0].mxu0 %v1147
        %v1149 = vpop.f32.mrb[0].mxu0
        %v1150 = vadd.f32 %v918, %v1149
        %v1151 = vpop.f32.mrb[0].mxu0
        %v1152 = vadd.f32 %v920, %v1151
        %1153 = vdwg.mxu0
        %v1154 = vand.u32 %v767, 4294901760
        %v1155 = vsub.f32 %v767, %v1154
        %1156 = vmatprep.subr.mxu0 %v1155
        %v1157 = vand.u32 %v766, 4294901760
        %v1158 = vsub.f32 %v766, %v1157
        %1159 = vmatpush1.msra.mxu0 %v1158
        %v1160 = vand.u32 %v770, 4294901760
        %v1161 = vsub.f32 %v770, %v1160
        %1162 = vmatprep.subr.mxu0 %v1161
        %v1163 = vand.u32 %v769, 4294901760
        %v1164 = vsub.f32 %v769, %v1163
        %1165 = vmatpush1.msra.mxu0 %v1164
        %v1166 = vand.u32 %v773, 4294901760
        %v1167 = vsub.f32 %v773, %v1166
        %1168 = vmatprep.subr.mxu0 %v1167
        %v1169 = vand.u32 %v772, 4294901760
        %v1170 = vsub.f32 %v772, %v1169
        %1171 = vmatpush1.msra.mxu0 %v1170
        %v1172 = vand.u32 %v776, 4294901760
        %v1173 = vsub.f32 %v776, %v1172
        %1174 = vmatprep.subr.mxu0 %v1173
        %v1175 = vand.u32 %v775, 4294901760
        %v1176 = vsub.f32 %v775, %v1175
        %1177 = vmatpush1.msra.mxu0 %v1176
        %v1178 = vand.u32 %v779, 4294901760
        %v1179 = vsub.f32 %v779, %v1178
        %1180 = vmatprep.subr.mxu0 %v1179
        %v1181 = vand.u32 %v778, 4294901760
        %v1182 = vsub.f32 %v778, %v1181
        %1183 = vmatpush1.msra.mxu0 %v1182
        %v1184 = vand.u32 %v782, 4294901760
        %v1185 = vsub.f32 %v782, %v1184
        %1186 = vmatprep.subr.mxu0 %v1185
        %v1187 = vand.u32 %v781, 4294901760
        %v1188 = vsub.f32 %v781, %v1187
        %1189 = vmatpush1.msra.mxu0 %v1188
        %v1190 = vand.u32 %v785, 4294901760
        %v1191 = vsub.f32 %v785, %v1190
        %1192 = vmatprep.subr.mxu0 %v1191
        %v1193 = vand.u32 %v784, 4294901760
        %v1194 = vsub.f32 %v784, %v1193
        %1195 = vmatpush1.msra.mxu0 %v1194
        %v1196 = vand.u32 %v788, 4294901760
        %v1197 = vsub.f32 %v788, %v1196
        %1198 = vmatprep.subr.mxu0 %v1197
        %v1199 = vand.u32 %v787, 4294901760
        %v1200 = vsub.f32 %v787, %v1199
        %1201 = vmatpush1.msra.mxu0 %v1200
        %v1202 = vand.u32 %v791, 4294901760
        %v1203 = vsub.f32 %v791, %v1202
        %1204 = vmatprep.subr.mxu0 %v1203
        %v1205 = vand.u32 %v790, 4294901760
        %v1206 = vsub.f32 %v790, %v1205
        %1207 = vmatpush1.msra.mxu0 %v1206
        %v1208 = vand.u32 %v794, 4294901760
        %v1209 = vsub.f32 %v794, %v1208
        %1210 = vmatprep.subr.mxu0 %v1209
        %v1211 = vand.u32 %v793, 4294901760
        %v1212 = vsub.f32 %v793, %v1211
        %1213 = vmatpush1.msra.mxu0 %v1212
        %v1214 = vand.u32 %v797, 4294901760
        %v1215 = vsub.f32 %v797, %v1214
        %1216 = vmatprep.subr.mxu0 %v1215
        %v1217 = vand.u32 %v796, 4294901760
        %v1218 = vsub.f32 %v796, %v1217
        %1219 = vmatpush1.msra.mxu0 %v1218
        %v1220 = vand.u32 %v800, 4294901760
        %v1221 = vsub.f32 %v800, %v1220
        %1222 = vmatprep.subr.mxu0 %v1221
        %v1223 = vand.u32 %v799, 4294901760
        %v1224 = vsub.f32 %v799, %v1223
        %1225 = vmatpush1.msra.mxu0 %v1224
        %v1226 = vand.u32 %v803, 4294901760
        %v1227 = vsub.f32 %v803, %v1226
        %1228 = vmatprep.subr.mxu0 %v1227
        %v1229 = vand.u32 %v802, 4294901760
        %v1230 = vsub.f32 %v802, %v1229
        %1231 = vmatpush1.msra.mxu0 %v1230
        %v1232 = vand.u32 %v806, 4294901760
        %v1233 = vsub.f32 %v806, %v1232
        %1234 = vmatprep.subr.mxu0 %v1233
        %v1235 = vand.u32 %v805, 4294901760
        %v1236 = vsub.f32 %v805, %v1235
        %1237 = vmatpush1.msra.mxu0 %v1236
        %v1238 = vand.u32 %v809, 4294901760
        %v1239 = vsub.f32 %v809, %v1238
        %1240 = vmatprep.subr.mxu0 %v1239
        %v1241 = vand.u32 %v808, 4294901760
        %v1242 = vsub.f32 %v808, %v1241
        %1243 = vmatpush1.msra.mxu0 %v1242
        %v1244 = vand.u32 %v812, 4294901760
        %v1245 = vsub.f32 %v812, %v1244
        %1246 = vmatprep.subr.mxu0 %v1245
        %v1247 = vand.u32 %v811, 4294901760
        %v1248 = vsub.f32 %v811, %v1247
        %1249 = vmatpush1.msra.mxu0 %v1248
        %1250 = vmatprep.subr.mxu0 0.0
        %1251 = vmatpush1.msra.mxu0 0.0
        %1252 = vmatprep.subr.mxu0 0.0
        %1253 = vmatpush1.msra.mxu0 0.0
        %1254 = vmatprep.subr.mxu0 0.0
        %1255 = vmatpush1.msra.mxu0 0.0
        %1256 = vmatprep.subr.mxu0 0.0
        %1257 = vmatpush1.msra.mxu0 0.0
        %1258 = vmatprep.subr.mxu0 0.0
        %1259 = vmatpush1.msra.mxu0 0.0
        %1260 = vmatprep.subr.mxu0 0.0
        %1261 = vmatpush1.msra.mxu0 0.0
        %1262 = vmatprep.subr.mxu0 0.0
        %1263 = vmatpush1.msra.mxu0 0.0
        %1264 = vmatprep.subr.mxu0 0.0
        %1265 = vmatpush1.msra.mxu0 0.0
        %1266 = vmatprep.subr.mxu0 0.0
        %1267 = vmatpush1.msra.mxu0 0.0
        %1268 = vmatprep.subr.mxu0 0.0
        %1269 = vmatpush1.msra.mxu0 0.0
        %1270 = vmatprep.subr.mxu0 0.0
        %1271 = vmatpush1.msra.mxu0 0.0
        %1272 = vmatprep.subr.mxu0 0.0
        %1273 = vmatpush1.msra.mxu0 0.0
        %1274 = vmatprep.subr.mxu0 0.0
        %1275 = vmatpush1.msra.mxu0 0.0
        %1276 = vmatprep.subr.mxu0 0.0
        %1277 = vmatpush1.msra.mxu0 0.0
        %1278 = vmatprep.subr.mxu0 0.0
        %1279 = vmatpush1.msra.mxu0 0.0
        %1280 = vmatprep.subr.mxu0 0.0
        %1281 = vmatpush1.msra.mxu0 0.0
        %1282 = vmatprep.mubr.f32.mxu0 0.0
        %v1283 = vand.u32 %v765, 4294901760
        %v1284 = vsub.f32 %v765, %v1283
        %1285 = vmatmul.mubr.f32.gmra.mrb[0].mxu0 %v1284
        %v1286 = vpop.f32.mrb[0].mxu0
        %v1287 = vadd.f32 %v1150, %v1286
        %v1288 = vpop.f32.mrb[0].mxu0
        %v1289 = vadd.f32 %v1152, %v1288
        %1290 = vdwg.mxu0
        %v1291 = vand.u32 %v767, 4294901760
        %1292 = vmatprep.subr.mxu0 %v1291
        %v1293 = vand.u32 %v766, 4294901760
        %1294 = vmatpush1.msra.mxu0 %v1293
        %v1295 = vand.u32 %v770, 4294901760
        %1296 = vmatprep.subr.mxu0 %v1295
        %v1297 = vand.u32 %v769, 4294901760
        %1298 = vmatpush1.msra.mxu0 %v1297
        %v1299 = vand.u32 %v773, 4294901760
        %1300 = vmatprep.subr.mxu0 %v1299
        %v1301 = vand.u32 %v772, 4294901760
        %1302 = vmatpush1.msra.mxu0 %v1301
        %v1303 = vand.u32 %v776, 4294901760
        %1304 = vmatprep.subr.mxu0 %v1303
        %v1305 = vand.u32 %v775, 4294901760
        %1306 = vmatpush1.msra.mxu0 %v1305
        %v1307 = vand.u32 %v779, 4294901760
        %1308 = vmatprep.subr.mxu0 %v1307
        %v1309 = vand.u32 %v778, 4294901760
        %1310 = vmatpush1.msra.mxu0 %v1309
        %v1311 = vand.u32 %v782, 4294901760
        %1312 = vmatprep.subr.mxu0 %v1311
        %v1313 = vand.u32 %v781, 4294901760
        %1314 = vmatpush1.msra.mxu0 %v1313
        %v1315 = vand.u32 %v785, 4294901760
        %1316 = vmatprep.subr.mxu0 %v1315
        %v1317 = vand.u32 %v784, 4294901760
        %1318 = vmatpush1.msra.mxu0 %v1317
        %v1319 = vand.u32 %v788, 4294901760
        %1320 = vmatprep.subr.mxu0 %v1319
        %v1321 = vand.u32 %v787, 4294901760
        %1322 = vmatpush1.msra.mxu0 %v1321
        %v1323 = vand.u32 %v791, 4294901760
        %1324 = vmatprep.subr.mxu0 %v1323
        %v1325 = vand.u32 %v790, 4294901760
        %1326 = vmatpush1.msra.mxu0 %v1325
        %v1327 = vand.u32 %v794, 4294901760
        %1328 = vmatprep.subr.mxu0 %v1327
        %v1329 = vand.u32 %v793, 4294901760
        %1330 = vmatpush1.msra.mxu0 %v1329
        %v1331 = vand.u32 %v797, 4294901760
        %1332 = vmatprep.subr.mxu0 %v1331
        %v1333 = vand.u32 %v796, 4294901760
        %1334 = vmatpush1.msra.mxu0 %v1333
        %v1335 = vand.u32 %v800, 4294901760
        %1336 = vmatprep.subr.mxu0 %v1335
        %v1337 = vand.u32 %v799, 4294901760
        %1338 = vmatpush1.msra.mxu0 %v1337
        %v1339 = vand.u32 %v803, 4294901760
        %1340 = vmatprep.subr.mxu0 %v1339
        %v1341 = vand.u32 %v802, 4294901760
        %1342 = vmatpush1.msra.mxu0 %v1341
        %v1343 = vand.u32 %v806, 4294901760
        %1344 = vmatprep.subr.mxu0 %v1343
        %v1345 = vand.u32 %v805, 4294901760
        %1346 = vmatpush1.msra.mxu0 %v1345
        %v1347 = vand.u32 %v809, 4294901760
        %1348 = vmatprep.subr.mxu0 %v1347
        %v1349 = vand.u32 %v808, 4294901760
        %1350 = vmatpush1.msra.mxu0 %v1349
        %v1351 = vand.u32 %v812, 4294901760
        %1352 = vmatprep.subr.mxu0 %v1351
        %v1353 = vand.u32 %v811, 4294901760
        %1354 = vmatpush1.msra.mxu0 %v1353
        %1355 = vmatprep.subr.mxu0 0.0
        %1356 = vmatpush1.msra.mxu0 0.0
        %1357 = vmatprep.subr.mxu0 0.0
        %1358 = vmatpush1.msra.mxu0 0.0
        %1359 = vmatprep.subr.mxu0 0.0
        %1360 = vmatpush1.msra.mxu0 0.0
        %1361 = vmatprep.subr.mxu0 0.0
        %1362 = vmatpush1.msra.mxu0 0.0
        %1363 = vmatprep.subr.mxu0 0.0
        %1364 = vmatpush1.msra.mxu0 0.0
        %1365 = vmatprep.subr.mxu0 0.0
        %1366 = vmatpush1.msra.mxu0 0.0
        %1367 = vmatprep.subr.mxu0 0.0
        %1368 = vmatpush1.msra.mxu0 0.0
        %1369 = vmatprep.subr.mxu0 0.0
        %1370 = vmatpush1.msra.mxu0 0.0
        %1371 = vmatprep.subr.mxu0 0.0
        %1372 = vmatpush1.msra.mxu0 0.0
        %1373 = vmatprep.subr.mxu0 0.0
        %1374 = vmatpush1.msra.mxu0 0.0
        %1375 = vmatprep.subr.mxu0 0.0
        %1376 = vmatpush1.msra.mxu0 0.0
        %1377 = vmatprep.subr.mxu0 0.0
        %1378 = vmatpush1.msra.mxu0 0.0
        %1379 = vmatprep.subr.mxu0 0.0
        %1380 = vmatpush1.msra.mxu0 0.0
        %1381 = vmatprep.subr.mxu0 0.0
        %1382 = vmatpush1.msra.mxu0 0.0
        %1383 = vmatprep.subr.mxu0 0.0
        %1384 = vmatpush1.msra.mxu0 0.0
        %1385 = vmatprep.subr.mxu0 0.0
        %1386 = vmatpush1.msra.mxu0 0.0
        %1387 = vmatprep.mubr.f32.mxu0 0.0
        %v1388 = vand.u32 %v765, 4294901760
        %v1389 = vsub.f32 %v765, %v1388
        %v1390 = vand.u32 %v1389, 4294901760
        %1391 = vmatmul.mubr.f32.gmra.mrb[0].mxu0 %v1390
        %v1392 = vpop.f32.mrb[0].mxu0
        %v1393 = vadd.f32 %v1287, %v1392
        %v1394 = vpop.f32.mrb[0].mxu0
        %v1395 = vadd.f32 %v1289, %v1394
        %1396 = vdwg.mxu0
        %v1397 = vand.u32 %v767, 4294901760
        %v1398 = vsub.f32 %v767, %v1397
        %v1399 = vand.u32 %v1398, 4294901760
        %1400 = vmatprep.subr.mxu0 %v1399
        %v1401 = vand.u32 %v766, 4294901760
        %v1402 = vsub.f32 %v766, %v1401
        %v1403 = vand.u32 %v1402, 4294901760
        %1404 = vmatpush1.msra.mxu0 %v1403
        %v1405 = vand.u32 %v770, 4294901760
        %v1406 = vsub.f32 %v770, %v1405
        %v1407 = vand.u32 %v1406, 4294901760
        %1408 = vmatprep.subr.mxu0 %v1407
        %v1409 = vand.u32 %v769, 4294901760
        %v1410 = vsub.f32 %v769, %v1409
        %v1411 = vand.u32 %v1410, 4294901760
        %1412 = vmatpush1.msra.mxu0 %v1411
        %v1413 = vand.u32 %v773, 4294901760
        %v1414 = vsub.f32 %v773, %v1413
        %v1415 = vand.u32 %v1414, 4294901760
        %1416 = vmatprep.subr.mxu0 %v1415
        %v1417 = vand.u32 %v772, 4294901760
        %v1418 = vsub.f32 %v772, %v1417
        %v1419 = vand.u32 %v1418, 4294901760
        %1420 = vmatpush1.msra.mxu0 %v1419
        %v1421 = vand.u32 %v776, 4294901760
        %v1422 = vsub.f32 %v776, %v1421
        %v1423 = vand.u32 %v1422, 4294901760
        %1424 = vmatprep.subr.mxu0 %v1423
        %v1425 = vand.u32 %v775, 4294901760
        %v1426 = vsub.f32 %v775, %v1425
        %v1427 = vand.u32 %v1426, 4294901760
        %1428 = vmatpush1.msra.mxu0 %v1427
        %v1429 = vand.u32 %v779, 4294901760
        %v1430 = vsub.f32 %v779, %v1429
        %v1431 = vand.u32 %v1430, 4294901760
        %1432 = vmatprep.subr.mxu0 %v1431
        %v1433 = vand.u32 %v778, 4294901760
        %v1434 = vsub.f32 %v778, %v1433
        %v1435 = vand.u32 %v1434, 4294901760
        %1436 = vmatpush1.msra.mxu0 %v1435
        %v1437 = vand.u32 %v782, 4294901760
        %v1438 = vsub.f32 %v782, %v1437
        %v1439 = vand.u32 %v1438, 4294901760
        %1440 = vmatprep.subr.mxu0 %v1439
        %v1441 = vand.u32 %v781, 4294901760
        %v1442 = vsub.f32 %v781, %v1441
        %v1443 = vand.u32 %v1442, 4294901760
        %1444 = vmatpush1.msra.mxu0 %v1443
        %v1445 = vand.u32 %v785, 4294901760
        %v1446 = vsub.f32 %v785, %v1445
        %v1447 = vand.u32 %v1446, 4294901760
        %1448 = vmatprep.subr.mxu0 %v1447
        %v1449 = vand.u32 %v784, 4294901760
        %v1450 = vsub.f32 %v784, %v1449
        %v1451 = vand.u32 %v1450, 4294901760
        %1452 = vmatpush1.msra.mxu0 %v1451
        %v1453 = vand.u32 %v788, 4294901760
        %v1454 = vsub.f32 %v788, %v1453
        %v1455 = vand.u32 %v1454, 4294901760
        %1456 = vmatprep.subr.mxu0 %v1455
        %v1457 = vand.u32 %v787, 4294901760
        %v1458 = vsub.f32 %v787, %v1457
        %v1459 = vand.u32 %v1458, 4294901760
        %1460 = vmatpush1.msra.mxu0 %v1459
        %v1461 = vand.u32 %v791, 4294901760
        %v1462 = vsub.f32 %v791, %v1461
        %v1463 = vand.u32 %v1462, 4294901760
        %1464 = vmatprep.subr.mxu0 %v1463
        %v1465 = vand.u32 %v790, 4294901760
        %v1466 = vsub.f32 %v790, %v1465
        %v1467 = vand.u32 %v1466, 4294901760
        %1468 = vmatpush1.msra.mxu0 %v1467
        %v1469 = vand.u32 %v794, 4294901760
        %v1470 = vsub.f32 %v794, %v1469
        %v1471 = vand.u32 %v1470, 4294901760
        %1472 = vmatprep.subr.mxu0 %v1471
        %v1473 = vand.u32 %v793, 4294901760
        %v1474 = vsub.f32 %v793, %v1473
        %v1475 = vand.u32 %v1474, 4294901760
        %1476 = vmatpush1.msra.mxu0 %v1475
        %v1477 = vand.u32 %v797, 4294901760
        %v1478 = vsub.f32 %v797, %v1477
        %v1479 = vand.u32 %v1478, 4294901760
        %1480 = vmatprep.subr.mxu0 %v1479
        %v1481 = vand.u32 %v796, 4294901760
        %v1482 = vsub.f32 %v796, %v1481
        %v1483 = vand.u32 %v1482, 4294901760
        %1484 = vmatpush1.msra.mxu0 %v1483
        %v1485 = vand.u32 %v800, 4294901760
        %v1486 = vsub.f32 %v800, %v1485
        %v1487 = vand.u32 %v1486, 4294901760
        %1488 = vmatprep.subr.mxu0 %v1487
        %v1489 = vand.u32 %v799, 4294901760
        %v1490 = vsub.f32 %v799, %v1489
        %v1491 = vand.u32 %v1490, 4294901760
        %1492 = vmatpush1.msra.mxu0 %v1491
        %v1493 = vand.u32 %v803, 4294901760
        %v1494 = vsub.f32 %v803, %v1493
        %v1495 = vand.u32 %v1494, 4294901760
        %1496 = vmatprep.subr.mxu0 %v1495
        %v1497 = vand.u32 %v802, 4294901760
        %v1498 = vsub.f32 %v802, %v1497
        %v1499 = vand.u32 %v1498, 4294901760
        %1500 = vmatpush1.msra.mxu0 %v1499
        %v1501 = vand.u32 %v806, 4294901760
        %v1502 = vsub.f32 %v806, %v1501
        %v1503 = vand.u32 %v1502, 4294901760
        %1504 = vmatprep.subr.mxu0 %v1503
        %v1505 = vand.u32 %v805, 4294901760
        %v1506 = vsub.f32 %v805, %v1505
        %v1507 = vand.u32 %v1506, 4294901760
        %1508 = vmatpush1.msra.mxu0 %v1507
        %v1509 = vand.u32 %v809, 4294901760
        %v1510 = vsub.f32 %v809, %v1509
        %v1511 = vand.u32 %v1510, 4294901760
        %1512 = vmatprep.subr.mxu0 %v1511
        %v1513 = vand.u32 %v808, 4294901760
        %v1514 = vsub.f32 %v808, %v1513
        %v1515 = vand.u32 %v1514, 4294901760
        %1516 = vmatpush1.msra.mxu0 %v1515
        %v1517 = vand.u32 %v812, 4294901760
        %v1518 = vsub.f32 %v812, %v1517
        %v1519 = vand.u32 %v1518, 4294901760
        %1520 = vmatprep.subr.mxu0 %v1519
        %v1521 = vand.u32 %v811, 4294901760
        %v1522 = vsub.f32 %v811, %v1521
        %v1523 = vand.u32 %v1522, 4294901760
        %1524 = vmatpush1.msra.mxu0 %v1523
        %1525 = vmatprep.subr.mxu0 0.0
        %1526 = vmatpush1.msra.mxu0 0.0
        %1527 = vmatprep.subr.mxu0 0.0
        %1528 = vmatpush1.msra.mxu0 0.0
        %1529 = vmatprep.subr.mxu0 0.0
        %1530 = vmatpush1.msra.mxu0 0.0
        %1531 = vmatprep.subr.mxu0 0.0
        %1532 = vmatpush1.msra.mxu0 0.0
        %1533 = vmatprep.subr.mxu0 0.0
        %1534 = vmatpush1.msra.mxu0 0.0
        %1535 = vmatprep.subr.mxu0 0.0
        %1536 = vmatpush1.msra.mxu0 0.0
        %1537 = vmatprep.subr.mxu0 0.0
        %1538 = vmatpush1.msra.mxu0 0.0
        %1539 = vmatprep.subr.mxu0 0.0
        %1540 = vmatpush1.msra.mxu0 0.0
        %1541 = vmatprep.subr.mxu0 0.0
        %1542 = vmatpush1.msra.mxu0 0.0
        %1543 = vmatprep.subr.mxu0 0.0
        %1544 = vmatpush1.msra.mxu0 0.0
        %1545 = vmatprep.subr.mxu0 0.0
        %1546 = vmatpush1.msra.mxu0 0.0
        %1547 = vmatprep.subr.mxu0 0.0
        %1548 = vmatpush1.msra.mxu0 0.0
        %1549 = vmatprep.subr.mxu0 0.0
        %1550 = vmatpush1.msra.mxu0 0.0
        %1551 = vmatprep.subr.mxu0 0.0
        %1552 = vmatpush1.msra.mxu0 0.0
        %1553 = vmatprep.subr.mxu0 0.0
        %1554 = vmatpush1.msra.mxu0 0.0
        %1555 = vmatprep.subr.mxu0 0.0
        %1556 = vmatpush1.msra.mxu0 0.0
        %1557 = vmatprep.mubr.f32.mxu0 0.0
        %v1558 = vand.u32 %v765, 4294901760
        %1559 = vmatmul.mubr.f32.gmra.mrb[0].mxu0 %v1558
        %v1560 = vpop.f32.mrb[0].mxu0
        %v1561 = vadd.f32 %v1393, %v1560
        %v1562 = vpop.f32.mrb[0].mxu0
        %v1563 = vadd.f32 %v1395, %v1562
        %1564 = vdwg.mxu0
        %v1565 = vand.u32 %v767, 4294901760
        %1566 = vmatprep.subr.mxu0 %v1565
        %v1567 = vand.u32 %v766, 4294901760
        %1568 = vmatpush1.msra.mxu0 %v1567
        %v1569 = vand.u32 %v770, 4294901760
        %1570 = vmatprep.subr.mxu0 %v1569
        %v1571 = vand.u32 %v769, 4294901760
        %1572 = vmatpush1.msra.mxu0 %v1571
        %v1573 = vand.u32 %v773, 4294901760
        %1574 = vmatprep.subr.mxu0 %v1573
        %v1575 = vand.u32 %v772, 4294901760
        %1576 = vmatpush1.msra.mxu0 %v1575
        %v1577 = vand.u32 %v776, 4294901760
        %1578 = vmatprep.subr.mxu0 %v1577
        %v1579 = vand.u32 %v775, 4294901760
        %1580 = vmatpush1.msra.mxu0 %v1579
        %v1581 = vand.u32 %v779, 4294901760
        %1582 = vmatprep.subr.mxu0 %v1581
        %v1583 = vand.u32 %v778, 4294901760
        %1584 = vmatpush1.msra.mxu0 %v1583
        %v1585 = vand.u32 %v782, 4294901760
        %1586 = vmatprep.subr.mxu0 %v1585
        %v1587 = vand.u32 %v781, 4294901760
        %1588 = vmatpush1.msra.mxu0 %v1587
        %v1589 = vand.u32 %v785, 4294901760
        %1590 = vmatprep.subr.mxu0 %v1589
        %v1591 = vand.u32 %v784, 4294901760
        %1592 = vmatpush1.msra.mxu0 %v1591
        %v1593 = vand.u32 %v788, 4294901760
        %1594 = vmatprep.subr.mxu0 %v1593
        %v1595 = vand.u32 %v787, 4294901760
        %1596 = vmatpush1.msra.mxu0 %v1595
        %v1597 = vand.u32 %v791, 4294901760
        %1598 = vmatprep.subr.mxu0 %v1597
        %v1599 = vand.u32 %v790, 4294901760
        %1600 = vmatpush1.msra.mxu0 %v1599
        %v1601 = vand.u32 %v794, 4294901760
        %1602 = vmatprep.subr.mxu0 %v1601
        %v1603 = vand.u32 %v793, 4294901760
        %1604 = vmatpush1.msra.mxu0 %v1603
        %v1605 = vand.u32 %v797, 4294901760
        %1606 = vmatprep.subr.mxu0 %v1605
        %v1607 = vand.u32 %v796, 4294901760
        %1608 = vmatpush1.msra.mxu0 %v1607
        %v1609 = vand.u32 %v800, 4294901760
        %1610 = vmatprep.subr.mxu0 %v1609
        %v1611 = vand.u32 %v799, 4294901760
        %1612 = vmatpush1.msra.mxu0 %v1611
        %v1613 = vand.u32 %v803, 4294901760
        %1614 = vmatprep.subr.mxu0 %v1613
        %v1615 = vand.u32 %v802, 4294901760
        %1616 = vmatpush1.msra.mxu0 %v1615
        %v1617 = vand.u32 %v806, 4294901760
        %1618 = vmatprep.subr.mxu0 %v1617
        %v1619 = vand.u32 %v805, 4294901760
        %1620 = vmatpush1.msra.mxu0 %v1619
        %v1621 = vand.u32 %v809, 4294901760
        %1622 = vmatprep.subr.mxu0 %v1621
        %v1623 = vand.u32 %v808, 4294901760
        %1624 = vmatpush1.msra.mxu0 %v1623
        %v1625 = vand.u32 %v812, 4294901760
        %1626 = vmatprep.subr.mxu0 %v1625
        %v1627 = vand.u32 %v811, 4294901760
        %1628 = vmatpush1.msra.mxu0 %v1627
        %1629 = vmatprep.subr.mxu0 0.0
        %1630 = vmatpush1.msra.mxu0 0.0
        %1631 = vmatprep.subr.mxu0 0.0
        %1632 = vmatpush1.msra.mxu0 0.0
        %1633 = vmatprep.subr.mxu0 0.0
        %1634 = vmatpush1.msra.mxu0 0.0
        %1635 = vmatprep.subr.mxu0 0.0
        %1636 = vmatpush1.msra.mxu0 0.0
        %1637 = vmatprep.subr.mxu0 0.0
        %1638 = vmatpush1.msra.mxu0 0.0
        %1639 = vmatprep.subr.mxu0 0.0
        %1640 = vmatpush1.msra.mxu0 0.0
        %1641 = vmatprep.subr.mxu0 0.0
        %1642 = vmatpush1.msra.mxu0 0.0
        %1643 = vmatprep.subr.mxu0 0.0
        %1644 = vmatpush1.msra.mxu0 0.0
        %1645 = vmatprep.subr.mxu0 0.0
        %1646 = vmatpush1.msra.mxu0 0.0
        %1647 = vmatprep.subr.mxu0 0.0
        %1648 = vmatpush1.msra.mxu0 0.0
        %1649 = vmatprep.subr.mxu0 0.0
        %1650 = vmatpush1.msra.mxu0 0.0
        %1651 = vmatprep.subr.mxu0 0.0
        %1652 = vmatpush1.msra.mxu0 0.0
        %1653 = vmatprep.subr.mxu0 0.0
        %1654 = vmatpush1.msra.mxu0 0.0
        %1655 = vmatprep.subr.mxu0 0.0
        %1656 = vmatpush1.msra.mxu0 0.0
        %1657 = vmatprep.subr.mxu0 0.0
        %1658 = vmatpush1.msra.mxu0 0.0
        %1659 = vmatprep.subr.mxu0 0.0
        %1660 = vmatpush1.msra.mxu0 0.0
        %1661 = vmatprep.mubr.f32.mxu0 0.0
        %v1662 = vand.u32 %v765, 4294901760
        %1663 = vmatmul.mubr.f32.gmra.mrb[0].mxu0 %v1662
        %v1664 = vpop.f32.mrb[0].mxu0
        %v1665 = vadd.f32 %v1561, %v1664
        %v1666 = vpop.f32.mrb[0].mxu0
        %v1667 = vadd.f32 %v1563, %v1666
        %1668 = vdwg.mxu0
        %1669 = vmatprep.subr.mxu0 0.0
        %v1670 = vand.u32 %v768, 4294901760
        %1671 = vmatpush1.msra.mxu0 %v1670
        %1672 = vmatprep.subr.mxu0 0.0
        %v1673 = vand.u32 %v771, 4294901760
        %1674 = vmatpush1.msra.mxu0 %v1673
        %1675 = vmatprep.subr.mxu0 0.0
        %v1676 = vand.u32 %v774, 4294901760
        %1677 = vmatpush1.msra.mxu0 %v1676
        %1678 = vmatprep.subr.mxu0 0.0
        %v1679 = vand.u32 %v777, 4294901760
        %1680 = vmatpush1.msra.mxu0 %v1679
        %1681 = vmatprep.subr.mxu0 0.0
        %v1682 = vand.u32 %v780, 4294901760
        %1683 = vmatpush1.msra.mxu0 %v1682
        %1684 = vmatprep.subr.mxu0 0.0
        %v1685 = vand.u32 %v783, 4294901760
        %1686 = vmatpush1.msra.mxu0 %v1685
        %1687 = vmatprep.subr.mxu0 0.0
        %v1688 = vand.u32 %v786, 4294901760
        %1689 = vmatpush1.msra.mxu0 %v1688
        %1690 = vmatprep.subr.mxu0 0.0
        %v1691 = vand.u32 %v789, 4294901760
        %1692 = vmatpush1.msra.mxu0 %v1691
        %1693 = vmatprep.subr.mxu0 0.0
        %v1694 = vand.u32 %v792, 4294901760
        %1695 = vmatpush1.msra.mxu0 %v1694
        %1696 = vmatprep.subr.mxu0 0.0
        %v1697 = vand.u32 %v795, 4294901760
        %1698 = vmatpush1.msra.mxu0 %v1697
        %1699 = vmatprep.subr.mxu0 0.0
        %v1700 = vand.u32 %v798, 4294901760
        %1701 = vmatpush1.msra.mxu0 %v1700
        %1702 = vmatprep.subr.mxu0 0.0
        %v1703 = vand.u32 %v801, 4294901760
        %1704 = vmatpush1.msra.mxu0 %v1703
        %1705 = vmatprep.subr.mxu0 0.0
        %v1706 = vand.u32 %v804, 4294901760
        %1707 = vmatpush1.msra.mxu0 %v1706
        %1708 = vmatprep.subr.mxu0 0.0
        %v1709 = vand.u32 %v807, 4294901760
        %1710 = vmatpush1.msra.mxu0 %v1709
        %1711 = vmatprep.subr.mxu0 0.0
        %v1712 = vand.u32 %v810, 4294901760
        %1713 = vmatpush1.msra.mxu0 %v1712
        %1714 = vmatprep.subr.mxu0 0.0
        %v1715 = vand.u32 %v813, 4294901760
        %1716 = vmatpush1.msra.mxu0 %v1715
        %1717 = vmatprep.subr.mxu0 0.0
        %1718 = vmatpush1.msra.mxu0 0.0
        %1719 = vmatprep.subr.mxu0 0.0
        %1720 = vmatpush1.msra.mxu0 0.0
        %1721 = vmatprep.subr.mxu0 0.0
        %1722 = vmatpush1.msra.mxu0 0.0
        %1723 = vmatprep.subr.mxu0 0.0
        %1724 = vmatpush1.msra.mxu0 0.0
        %1725 = vmatprep.subr.mxu0 0.0
        %1726 = vmatpush1.msra.mxu0 0.0
        %1727 = vmatprep.subr.mxu0 0.0
        %1728 = vmatpush1.msra.mxu0 0.0
        %1729 = vmatprep.subr.mxu0 0.0
        %1730 = vmatpush1.msra.mxu0 0.0
        %1731 = vmatprep.subr.mxu0 0.0
        %1732 = vmatpush1.msra.mxu0 0.0
        %1733 = vmatprep.subr.mxu0 0.0
        %1734 = vmatpush1.msra.mxu0 0.0
        %1735 = vmatprep.subr.mxu0 0.0
        %1736 = vmatpush1.msra.mxu0 0.0
        %1737 = vmatprep.subr.mxu0 0.0
        %1738 = vmatpush1.msra.mxu0 0.0
        %1739 = vmatprep.subr.mxu0 0.0
        %1740 = vmatpush1.msra.mxu0 0.0
        %1741 = vmatprep.subr.mxu0 0.0
        %1742 = vmatpush1.msra.mxu0 0.0
        %1743 = vmatprep.subr.mxu0 0.0
        %1744 = vmatpush1.msra.mxu0 0.0
        %1745 = vmatprep.subr.mxu0 0.0
        %1746 = vmatpush1.msra.mxu0 0.0
        %1747 = vmatprep.subr.mxu0 0.0
        %1748 = vmatpush1.msra.mxu0 0.0
        %1749 = vmatprep.mubr.f32.mxu0 0.0
        %v1750 = vand.u32 %v765, 4294901760
        %v1751 = vsub.f32 %v765, %v1750
        %v1752 = vand.u32 %v1751, 4294901760
        %v1753 = vsub.f32 %v1751, %v1752
        %v1754 = vand.u32 %v1753, 4294901760
        %1755 = vmatmul.mubr.f32.gmra.mrb[0].mxu0 %v1754
        %v1756 = vpop.f32.mrb[0].mxu0
        %v1757 = vadd.f32 0.0, %v1756
        %v1758 = vpop.f32.mrb[0].mxu0
        %1759 = vdwg.mxu0
        %1760 = vmatprep.subr.mxu0 0.0
        %v1761 = vand.u32 %v768, 4294901760
        %v1762 = vsub.f32 %v768, %v1761
        %v1763 = vand.u32 %v1762, 4294901760
        %v1764 = vsub.f32 %v1762, %v1763
        %v1765 = vand.u32 %v1764, 4294901760
        %1766 = vmatpush1.msra.mxu0 %v1765
        %1767 = vmatprep.subr.mxu0 0.0
        %v1768 = vand.u32 %v771, 4294901760
        %v1769 = vsub.f32 %v771, %v1768
        %v1770 = vand.u32 %v1769, 4294901760
        %v1771 = vsub.f32 %v1769, %v1770
        %v1772 = vand.u32 %v1771, 4294901760
        %1773 = vmatpush1.msra.mxu0 %v1772
        %1774 = vmatprep.subr.mxu0 0.0
        %v1775 = vand.u32 %v774, 4294901760
        %v1776 = vsub.f32 %v774, %v1775
        %v1777 = vand.u32 %v1776, 4294901760
        %v1778 = vsub.f32 %v1776, %v1777
        %v1779 = vand.u32 %v1778, 4294901760
        %1780 = vmatpush1.msra.mxu0 %v1779
        %1781 = vmatprep.subr.mxu0 0.0
        %v1782 = vand.u32 %v777, 4294901760
        %v1783 = vsub.f32 %v777, %v1782
        %v1784 = vand.u32 %v1783, 4294901760
        %v1785 = vsub.f32 %v1783, %v1784
        %v1786 = vand.u32 %v1785, 4294901760
        %1787 = vmatpush1.msra.mxu0 %v1786
        %1788 = vmatprep.subr.mxu0 0.0
        %v1789 = vand.u32 %v780, 4294901760
        %v1790 = vsub.f32 %v780, %v1789
        %v1791 = vand.u32 %v1790, 4294901760
        %v1792 = vsub.f32 %v1790, %v1791
        %v1793 = vand.u32 %v1792, 4294901760
        %1794 = vmatpush1.msra.mxu0 %v1793
        %1795 = vmatprep.subr.mxu0 0.0
        %v1796 = vand.u32 %v783, 4294901760
        %v1797 = vsub.f32 %v783, %v1796
        %v1798 = vand.u32 %v1797, 4294901760
        %v1799 = vsub.f32 %v1797, %v1798
        %v1800 = vand.u32 %v1799, 4294901760
        %1801 = vmatpush1.msra.mxu0 %v1800
        %1802 = vmatprep.subr.mxu0 0.0
        %v1803 = vand.u32 %v786, 4294901760
        %v1804 = vsub.f32 %v786, %v1803
        %v1805 = vand.u32 %v1804, 4294901760
        %v1806 = vsub.f32 %v1804, %v1805
        %v1807 = vand.u32 %v1806, 4294901760
        %1808 = vmatpush1.msra.mxu0 %v1807
        %1809 = vmatprep.subr.mxu0 0.0
        %v1810 = vand.u32 %v789, 4294901760
        %v1811 = vsub.f32 %v789, %v1810
        %v1812 = vand.u32 %v1811, 4294901760
        %v1813 = vsub.f32 %v1811, %v1812
        %v1814 = vand.u32 %v1813, 4294901760
        %1815 = vmatpush1.msra.mxu0 %v1814
        %1816 = vmatprep.subr.mxu0 0.0
        %v1817 = vand.u32 %v792, 4294901760
        %v1818 = vsub.f32 %v792, %v1817
        %v1819 = vand.u32 %v1818, 4294901760
        %v1820 = vsub.f32 %v1818, %v1819
        %v1821 = vand.u32 %v1820, 4294901760
        %1822 = vmatpush1.msra.mxu0 %v1821
        %1823 = vmatprep.subr.mxu0 0.0
        %v1824 = vand.u32 %v795, 4294901760
        %v1825 = vsub.f32 %v795, %v1824
        %v1826 = vand.u32 %v1825, 4294901760
        %v1827 = vsub.f32 %v1825, %v1826
        %v1828 = vand.u32 %v1827, 4294901760
        %1829 = vmatpush1.msra.mxu0 %v1828
        %1830 = vmatprep.subr.mxu0 0.0
        %v1831 = vand.u32 %v798, 4294901760
        %v1832 = vsub.f32 %v798, %v1831
        %v1833 = vand.u32 %v1832, 4294901760
        %v1834 = vsub.f32 %v1832, %v1833
        %v1835 = vand.u32 %v1834, 4294901760
        %1836 = vmatpush1.msra.mxu0 %v1835
        %1837 = vmatprep.subr.mxu0 0.0
        %v1838 = vand.u32 %v801, 4294901760
        %v1839 = vsub.f32 %v801, %v1838
        %v1840 = vand.u32 %v1839, 4294901760
        %v1841 = vsub.f32 %v1839, %v1840
        %v1842 = vand.u32 %v1841, 4294901760
        %1843 = vmatpush1.msra.mxu0 %v1842
        %1844 = vmatprep.subr.mxu0 0.0
        %v1845 = vand.u32 %v804, 4294901760
        %v1846 = vsub.f32 %v804, %v1845
        %v1847 = vand.u32 %v1846, 4294901760
        %v1848 = vsub.f32 %v1846, %v1847
        %v1849 = vand.u32 %v1848, 4294901760
        %1850 = vmatpush1.msra.mxu0 %v1849
        %1851 = vmatprep.subr.mxu0 0.0
        %v1852 = vand.u32 %v807, 4294901760
        %v1853 = vsub.f32 %v807, %v1852
        %v1854 = vand.u32 %v1853, 4294901760
        %v1855 = vsub.f32 %v1853, %v1854
        %v1856 = vand.u32 %v1855, 4294901760
        %1857 = vmatpush1.msra.mxu0 %v1856
        %1858 = vmatprep.subr.mxu0 0.0
        %v1859 = vand.u32 %v810, 4294901760
        %v1860 = vsub.f32 %v810, %v1859
        %v1861 = vand.u32 %v1860, 4294901760
        %v1862 = vsub.f32 %v1860, %v1861
        %v1863 = vand.u32 %v1862, 4294901760
        %1864 = vmatpush1.msra.mxu0 %v1863
        %1865 = vmatprep.subr.mxu0 0.0
        %v1866 = vand.u32 %v813, 4294901760
        %v1867 = vsub.f32 %v813, %v1866
        %v1868 = vand.u32 %v1867, 4294901760
        %v1869 = vsub.f32 %v1867, %v1868
        %v1870 = vand.u32 %v1869, 4294901760
        %1871 = vmatpush1.msra.mxu0 %v1870
        %1872 = vmatprep.subr.mxu0 0.0
        %1873 = vmatpush1.msra.mxu0 0.0
        %1874 = vmatprep.subr.mxu0 0.0
        %1875 = vmatpush1.msra.mxu0 0.0
        %1876 = vmatprep.subr.mxu0 0.0
        %1877 = vmatpush1.msra.mxu0 0.0
        %1878 = vmatprep.subr.mxu0 0.0
        %1879 = vmatpush1.msra.mxu0 0.0
        %1880 = vmatprep.subr.mxu0 0.0
        %1881 = vmatpush1.msra.mxu0 0.0
        %1882 = vmatprep.subr.mxu0 0.0
        %1883 = vmatpush1.msra.mxu0 0.0
        %1884 = vmatprep.subr.mxu0 0.0
        %1885 = vmatpush1.msra.mxu0 0.0
        %1886 = vmatprep.subr.mxu0 0.0
        %1887 = vmatpush1.msra.mxu0 0.0
        %1888 = vmatprep.subr.mxu0 0.0
        %1889 = vmatpush1.msra.mxu0 0.0
        %1890 = vmatprep.subr.mxu0 0.0
        %1891 = vmatpush1.msra.mxu0 0.0
        %1892 = vmatprep.subr.mxu0 0.0
        %1893 = vmatpush1.msra.mxu0 0.0
        %1894 = vmatprep.subr.mxu0 0.0
        %1895 = vmatpush1.msra.mxu0 0.0
        %1896 = vmatprep.subr.mxu0 0.0
        %1897 = vmatpush1.msra.mxu0 0.0
        %1898 = vmatprep.subr.mxu0 0.0
        %1899 = vmatpush1.msra.mxu0 0.0
        %1900 = vmatprep.subr.mxu0 0.0
        %1901 = vmatpush1.msra.mxu0 0.0
        %1902 = vmatprep.subr.mxu0 0.0
        %1903 = vmatpush1.msra.mxu0 0.0
        %1904 = vmatprep.mubr.f32.mxu0 0.0
        %v1905 = vand.u32 %v765, 4294901760
        %1906 = vmatmul.mubr.f32.gmra.mrb[0].mxu0 %v1905
        %v1907 = vpop.f32.mrb[0].mxu0
        %v1908 = vadd.f32 %v1757, %v1907
        %v1909 = vpop.f32.mrb[0].mxu0
        %1910 = vdwg.mxu0
        %1911 = vmatprep.subr.mxu0 0.0
        %v1912 = vand.u32 %v768, 4294901760
        %v1913 = vsub.f32 %v768, %v1912
        %1914 = vmatpush1.msra.mxu0 %v1913
        %1915 = vmatprep.subr.mxu0 0.0
        %v1916 = vand.u32 %v771, 4294901760
        %v1917 = vsub.f32 %v771, %v1916
        %1918 = vmatpush1.msra.mxu0 %v1917
        %1919 = vmatprep.subr.mxu0 0.0
        %v1920 = vand.u32 %v774, 4294901760
        %v1921 = vsub.f32 %v774, %v1920
        %1922 = vmatpush1.msra.mxu0 %v1921
        %1923 = vmatprep.subr.mxu0 0.0
        %v1924 = vand.u32 %v777, 4294901760
        %v1925 = vsub.f32 %v777, %v1924
        %1926 = vmatpush1.msra.mxu0 %v1925
        %1927 = vmatprep.subr.mxu0 0.0
        %v1928 = vand.u32 %v780, 4294901760
        %v1929 = vsub.f32 %v780, %v1928
        %1930 = vmatpush1.msra.mxu0 %v1929
        %1931 = vmatprep.subr.mxu0 0.0
        %v1932 = vand.u32 %v783, 4294901760
        %v1933 = vsub.f32 %v783, %v1932
        %1934 = vmatpush1.msra.mxu0 %v1933
        %1935 = vmatprep.subr.mxu0 0.0
        %v1936 = vand.u32 %v786, 4294901760
        %v1937 = vsub.f32 %v786, %v1936
        %1938 = vmatpush1.msra.mxu0 %v1937
        %1939 = vmatprep.subr.mxu0 0.0
        %v1940 = vand.u32 %v789, 4294901760
        %v1941 = vsub.f32 %v789, %v1940
        %1942 = vmatpush1.msra.mxu0 %v1941
        %1943 = vmatprep.subr.mxu0 0.0
        %v1944 = vand.u32 %v792, 4294901760
        %v1945 = vsub.f32 %v792, %v1944
        %1946 = vmatpush1.msra.mxu0 %v1945
        %1947 = vmatprep.subr.mxu0 0.0
        %v1948 = vand.u32 %v795, 4294901760
        %v1949 = vsub.f32 %v795, %v1948
        %1950 = vmatpush1.msra.mxu0 %v1949
        %1951 = vmatprep.subr.mxu0 0.0
        %v1952 = vand.u32 %v798, 4294901760
        %v1953 = vsub.f32 %v798, %v1952
        %1954 = vmatpush1.msra.mxu0 %v1953
        %1955 = vmatprep.subr.mxu0 0.0
        %v1956 = vand.u32 %v801, 4294901760
        %v1957 = vsub.f32 %v801, %v1956
        %1958 = vmatpush1.msra.mxu0 %v1957
        %1959 = vmatprep.subr.mxu0 0.0
        %v1960 = vand.u32 %v804, 4294901760
        %v1961 = vsub.f32 %v804, %v1960
        %1962 = vmatpush1.msra.mxu0 %v1961
        %1963 = vmatprep.subr.mxu0 0.0
        %v1964 = vand.u32 %v807, 4294901760
        %v1965 = vsub.f32 %v807, %v1964
        %1966 = vmatpush1.msra.mxu0 %v1965
        %1967 = vmatprep.subr.mxu0 0.0
        %v1968 = vand.u32 %v810, 4294901760
        %v1969 = vsub.f32 %v810, %v1968
        %1970 = vmatpush1.msra.mxu0 %v1969
        %1971 = vmatprep.subr.mxu0 0.0
        %v1972 = vand.u32 %v813, 4294901760
        %v1973 = vsub.f32 %v813, %v1972
        %1974 = vmatpush1.msra.mxu0 %v1973
        %1975 = vmatprep.subr.mxu0 0.0
        %1976 = vmatpush1.msra.mxu0 0.0
        %1977 = vmatprep.subr.mxu0 0.0
        %1978 = vmatpush1.msra.mxu0 0.0
        %1979 = vmatprep.subr.mxu0 0.0
        %1980 = vmatpush1.msra.mxu0 0.0
        %1981 = vmatprep.subr.mxu0 0.0
        %1982 = vmatpush1.msra.mxu0 0.0
        %1983 = vmatprep.subr.mxu0 0.0
        %1984 = vmatpush1.msra.mxu0 0.0
        %1985 = vmatprep.subr.mxu0 0.0
        %1986 = vmatpush1.msra.mxu0 0.0
        %1987 = vmatprep.subr.mxu0 0.0
        %1988 = vmatpush1.msra.mxu0 0.0
        %1989 = vmatprep.subr.mxu0 0.0
        %1990 = vmatpush1.msra.mxu0 0.0
        %1991 = vmatprep.subr.mxu0 0.0
        %1992 = vmatpush1.msra.mxu0 0.0
        %1993 = vmatprep.subr.mxu0 0.0
        %1994 = vmatpush1.msra.mxu0 0.0
        %1995 = vmatprep.subr.mxu0 0.0
        %1996 = vmatpush1.msra.mxu0 0.0
        %1997 = vmatprep.subr.mxu0 0.0
        %1998 = vmatpush1.msra.mxu0 0.0
        %1999 = vmatprep.subr.mxu0 0.0
        %2000 = vmatpush1.msra.mxu0 0.0
        %2001 = vmatprep.subr.mxu0 0.0
        %2002 = vmatpush1.msra.mxu0 0.0
        %2003 = vmatprep.subr.mxu0 0.0
        %2004 = vmatpush1.msra.mxu0 0.0
        %2005 = vmatprep.subr.mxu0 0.0
        %2006 = vmatpush1.msra.mxu0 0.0
        %2007 = vmatprep.mubr.f32.mxu0 0.0
        %v2008 = vand.u32 %v765, 4294901760
        %v2009 = vsub.f32 %v765, %v2008
        %2010 = vmatmul.mubr.f32.gmra.mrb[0].mxu0 %v2009
        %v2011 = vpop.f32.mrb[0].mxu0
        %v2012 = vadd.f32 %v1908, %v2011
        %v2013 = vpop.f32.mrb[0].mxu0
        %2014 = vdwg.mxu0
        %2015 = vmatprep.subr.mxu0 0.0
        %v2016 = vand.u32 %v768, 4294901760
        %2017 = vmatpush1.msra.mxu0 %v2016
        %2018 = vmatprep.subr.mxu0 0.0
        %v2019 = vand.u32 %v771, 4294901760
        %2020 = vmatpush1.msra.mxu0 %v2019
        %2021 = vmatprep.subr.mxu0 0.0
        %v2022 = vand.u32 %v774, 4294901760
        %2023 = vmatpush1.msra.mxu0 %v2022
        %2024 = vmatprep.subr.mxu0 0.0
        %v2025 = vand.u32 %v777, 4294901760
        %2026 = vmatpush1.msra.mxu0 %v2025
        %2027 = vmatprep.subr.mxu0 0.0
        %v2028 = vand.u32 %v780, 4294901760
        %2029 = vmatpush1.msra.mxu0 %v2028
        %2030 = vmatprep.subr.mxu0 0.0
        %v2031 = vand.u32 %v783, 4294901760
        %2032 = vmatpush1.msra.mxu0 %v2031
        %2033 = vmatprep.subr.mxu0 0.0
        %v2034 = vand.u32 %v786, 4294901760
        %2035 = vmatpush1.msra.mxu0 %v2034
        %2036 = vmatprep.subr.mxu0 0.0
        %v2037 = vand.u32 %v789, 4294901760
        %2038 = vmatpush1.msra.mxu0 %v2037
        %2039 = vmatprep.subr.mxu0 0.0
        %v2040 = vand.u32 %v792, 4294901760
        %2041 = vmatpush1.msra.mxu0 %v2040
        %2042 = vmatprep.subr.mxu0 0.0
        %v2043 = vand.u32 %v795, 4294901760
        %2044 = vmatpush1.msra.mxu0 %v2043
        %2045 = vmatprep.subr.mxu0 0.0
        %v2046 = vand.u32 %v798, 4294901760
        %2047 = vmatpush1.msra.mxu0 %v2046
        %2048 = vmatprep.subr.mxu0 0.0
        %v2049 = vand.u32 %v801, 4294901760
        %2050 = vmatpush1.msra.mxu0 %v2049
        %2051 = vmatprep.subr.mxu0 0.0
        %v2052 = vand.u32 %v804, 4294901760
        %2053 = vmatpush1.msra.mxu0 %v2052
        %2054 = vmatprep.subr.mxu0 0.0
        %v2055 = vand.u32 %v807, 4294901760
        %2056 = vmatpush1.msra.mxu0 %v2055
        %2057 = vmatprep.subr.mxu0 0.0
        %v2058 = vand.u32 %v810, 4294901760
        %2059 = vmatpush1.msra.mxu0 %v2058
        %2060 = vmatprep.subr.mxu0 0.0
        %v2061 = vand.u32 %v813, 4294901760
        %2062 = vmatpush1.msra.mxu0 %v2061
        %2063 = vmatprep.subr.mxu0 0.0
        %2064 = vmatpush1.msra.mxu0 0.0
        %2065 = vmatprep.subr.mxu0 0.0
        %2066 = vmatpush1.msra.mxu0 0.0
        %2067 = vmatprep.subr.mxu0 0.0
        %2068 = vmatpush1.msra.mxu0 0.0
        %2069 = vmatprep.subr.mxu0 0.0
        %2070 = vmatpush1.msra.mxu0 0.0
        %2071 = vmatprep.subr.mxu0 0.0
        %2072 = vmatpush1.msra.mxu0 0.0
        %2073 = vmatprep.subr.mxu0 0.0
        %2074 = vmatpush1.msra.mxu0 0.0
        %2075 = vmatprep.subr.mxu0 0.0
        %2076 = vmatpush1.msra.mxu0 0.0
        %2077 = vmatprep.subr.mxu0 0.0
        %2078 = vmatpush1.msra.mxu0 0.0
        %2079 = vmatprep.subr.mxu0 0.0
        %2080 = vmatpush1.msra.mxu0 0.0
        %2081 = vmatprep.subr.mxu0 0.0
        %2082 = vmatpush1.msra.mxu0 0.0
        %2083 = vmatprep.subr.mxu0 0.0
        %2084 = vmatpush1.msra.mxu0 0.0
        %2085 = vmatprep.subr.mxu0 0.0
        %2086 = vmatpush1.msra.mxu0 0.0
        %2087 = vmatprep.subr.mxu0 0.0
        %2088 = vmatpush1.msra.mxu0 0.0
        %2089 = vmatprep.subr.mxu0 0.0
        %2090 = vmatpush1.msra.mxu0 0.0
        %2091 = vmatprep.subr.mxu0 0.0
        %2092 = vmatpush1.msra.mxu0 0.0
        %2093 = vmatprep.subr.mxu0 0.0
        %2094 = vmatpush1.msra.mxu0 0.0
        %2095 = vmatprep.mubr.f32.mxu0 0.0
        %v2096 = vand.u32 %v765, 4294901760
        %v2097 = vsub.f32 %v765, %v2096
        %v2098 = vand.u32 %v2097, 4294901760
        %2099 = vmatmul.mubr.f32.gmra.mrb[0].mxu0 %v2098
        %v2100 = vpop.f32.mrb[0].mxu0
        %v2101 = vadd.f32 %v2012, %v2100
        %v2102 = vpop.f32.mrb[0].mxu0
        %2103 = vdwg.mxu0
        %2104 = vmatprep.subr.mxu0 0.0
        %v2105 = vand.u32 %v768, 4294901760
        %v2106 = vsub.f32 %v768, %v2105
        %v2107 = vand.u32 %v2106, 4294901760
        %2108 = vmatpush1.msra.mxu0 %v2107
        %2109 = vmatprep.subr.mxu0 0.0
        %v2110 = vand.u32 %v771, 4294901760
        %v2111 = vsub.f32 %v771, %v2110
        %v2112 = vand.u32 %v2111, 4294901760
        %2113 = vmatpush1.msra.mxu0 %v2112
        %2114 = vmatprep.subr.mxu0 0.0
        %v2115 = vand.u32 %v774, 4294901760
        %v2116 = vsub.f32 %v774, %v2115
        %v2117 = vand.u32 %v2116, 4294901760
        %2118 = vmatpush1.msra.mxu0 %v2117
        %2119 = vmatprep.subr.mxu0 0.0
        %v2120 = vand.u32 %v777, 4294901760
        %v2121 = vsub.f32 %v777, %v2120
        %v2122 = vand.u32 %v2121, 4294901760
        %2123 = vmatpush1.msra.mxu0 %v2122
        %2124 = vmatprep.subr.mxu0 0.0
        %v2125 = vand.u32 %v780, 4294901760
        %v2126 = vsub.f32 %v780, %v2125
        %v2127 = vand.u32 %v2126, 4294901760
        %2128 = vmatpush1.msra.mxu0 %v2127
        %2129 = vmatprep.subr.mxu0 0.0
        %v2130 = vand.u32 %v783, 4294901760
        %v2131 = vsub.f32 %v783, %v2130
        %v2132 = vand.u32 %v2131, 4294901760
        %2133 = vmatpush1.msra.mxu0 %v2132
        %2134 = vmatprep.subr.mxu0 0.0
        %v2135 = vand.u32 %v786, 4294901760
        %v2136 = vsub.f32 %v786, %v2135
        %v2137 = vand.u32 %v2136, 4294901760
        %2138 = vmatpush1.msra.mxu0 %v2137
        %2139 = vmatprep.subr.mxu0 0.0
        %v2140 = vand.u32 %v789, 4294901760
        %v2141 = vsub.f32 %v789, %v2140
        %v2142 = vand.u32 %v2141, 4294901760
        %2143 = vmatpush1.msra.mxu0 %v2142
        %2144 = vmatprep.subr.mxu0 0.0
        %v2145 = vand.u32 %v792, 4294901760
        %v2146 = vsub.f32 %v792, %v2145
        %v2147 = vand.u32 %v2146, 4294901760
        %2148 = vmatpush1.msra.mxu0 %v2147
        %2149 = vmatprep.subr.mxu0 0.0
        %v2150 = vand.u32 %v795, 4294901760
        %v2151 = vsub.f32 %v795, %v2150
        %v2152 = vand.u32 %v2151, 4294901760
        %2153 = vmatpush1.msra.mxu0 %v2152
        %2154 = vmatprep.subr.mxu0 0.0
        %v2155 = vand.u32 %v798, 4294901760
        %v2156 = vsub.f32 %v798, %v2155
        %v2157 = vand.u32 %v2156, 4294901760
        %2158 = vmatpush1.msra.mxu0 %v2157
        %2159 = vmatprep.subr.mxu0 0.0
        %v2160 = vand.u32 %v801, 4294901760
        %v2161 = vsub.f32 %v801, %v2160
        %v2162 = vand.u32 %v2161, 4294901760
        %2163 = vmatpush1.msra.mxu0 %v2162
        %2164 = vmatprep.subr.mxu0 0.0
        %v2165 = vand.u32 %v804, 4294901760
        %v2166 = vsub.f32 %v804, %v2165
        %v2167 = vand.u32 %v2166, 4294901760
        %2168 = vmatpush1.msra.mxu0 %v2167
        %2169 = vmatprep.subr.mxu0 0.0
        %v2170 = vand.u32 %v807, 4294901760
        %v2171 = vsub.f32 %v807, %v2170
        %v2172 = vand.u32 %v2171, 4294901760
        %2173 = vmatpush1.msra.mxu0 %v2172
        %2174 = vmatprep.subr.mxu0 0.0
        %v2175 = vand.u32 %v810, 4294901760
        %v2176 = vsub.f32 %v810, %v2175
        %v2177 = vand.u32 %v2176, 4294901760
        %2178 = vmatpush1.msra.mxu0 %v2177
        %2179 = vmatprep.subr.mxu0 0.0
        %v2180 = vand.u32 %v813, 4294901760
        %v2181 = vsub.f32 %v813, %v2180
        %v2182 = vand.u32 %v2181, 4294901760
        %2183 = vmatpush1.msra.mxu0 %v2182
        %2184 = vmatprep.subr.mxu0 0.0
        %2185 = vmatpush1.msra.mxu0 0.0
        %2186 = vmatprep.subr.mxu0 0.0
        %2187 = vmatpush1.msra.mxu0 0.0
        %2188 = vmatprep.subr.mxu0 0.0
        %2189 = vmatpush1.msra.mxu0 0.0
        %2190 = vmatprep.subr.mxu0 0.0
        %2191 = vmatpush1.msra.mxu0 0.0
        %2192 = vmatprep.subr.mxu0 0.0
        %2193 = vmatpush1.msra.mxu0 0.0
        %2194 = vmatprep.subr.mxu0 0.0
        %2195 = vmatpush1.msra.mxu0 0.0
        %2196 = vmatprep.subr.mxu0 0.0
        %2197 = vmatpush1.msra.mxu0 0.0
        %2198 = vmatprep.subr.mxu0 0.0
        %2199 = vmatpush1.msra.mxu0 0.0
        %2200 = vmatprep.subr.mxu0 0.0
        %2201 = vmatpush1.msra.mxu0 0.0
        %2202 = vmatprep.subr.mxu0 0.0
        %2203 = vmatpush1.msra.mxu0 0.0
        %2204 = vmatprep.subr.mxu0 0.0
        %2205 = vmatpush1.msra.mxu0 0.0
        %2206 = vmatprep.subr.mxu0 0.0
        %2207 = vmatpush1.msra.mxu0 0.0
        %2208 = vmatprep.subr.mxu0 0.0
        %2209 = vmatpush1.msra.mxu0 0.0
        %2210 = vmatprep.subr.mxu0 0.0
        %2211 = vmatpush1.msra.mxu0 0.0
        %2212 = vmatprep.subr.mxu0 0.0
        %2213 = vmatpush1.msra.mxu0 0.0
        %2214 = vmatprep.subr.mxu0 0.0
        %2215 = vmatpush1.msra.mxu0 0.0
        %2216 = vmatprep.mubr.f32.mxu0 0.0
        %v2217 = vand.u32 %v765, 4294901760
        %2218 = vmatmul.mubr.f32.gmra.mrb[0].mxu0 %v2217
        %v2219 = vpop.f32.mrb[0].mxu0
        %v2220 = vadd.f32 %v2101, %v2219
        %v2221 = vpop.f32.mrb[0].mxu0
        %2222 = vdwg.mxu0
        %2223 = vmatprep.subr.mxu0 0.0
        %v2224 = vand.u32 %v768, 4294901760
        %2225 = vmatpush1.msra.mxu0 %v2224
        %2226 = vmatprep.subr.mxu0 0.0
        %v2227 = vand.u32 %v771, 4294901760
        %2228 = vmatpush1.msra.mxu0 %v2227
        %2229 = vmatprep.subr.mxu0 0.0
        %v2230 = vand.u32 %v774, 4294901760
        %2231 = vmatpush1.msra.mxu0 %v2230
        %2232 = vmatprep.subr.mxu0 0.0
        %v2233 = vand.u32 %v777, 4294901760
        %2234 = vmatpush1.msra.mxu0 %v2233
        %2235 = vmatprep.subr.mxu0 0.0
        %v2236 = vand.u32 %v780, 4294901760
        %2237 = vmatpush1.msra.mxu0 %v2236
        %2238 = vmatprep.subr.mxu0 0.0
        %v2239 = vand.u32 %v783, 4294901760
        %2240 = vmatpush1.msra.mxu0 %v2239
        %2241 = vmatprep.subr.mxu0 0.0
        %v2242 = vand.u32 %v786, 4294901760
        %2243 = vmatpush1.msra.mxu0 %v2242
        %2244 = vmatprep.subr.mxu0 0.0
        %v2245 = vand.u32 %v789, 4294901760
        %2246 = vmatpush1.msra.mxu0 %v2245
        %2247 = vmatprep.subr.mxu0 0.0
        %v2248 = vand.u32 %v792, 4294901760
        %2249 = vmatpush1.msra.mxu0 %v2248
        %2250 = vmatprep.subr.mxu0 0.0
        %v2251 = vand.u32 %v795, 4294901760
        %2252 = vmatpush1.msra.mxu0 %v2251
        %2253 = vmatprep.subr.mxu0 0.0
        %v2254 = vand.u32 %v798, 4294901760
        %2255 = vmatpush1.msra.mxu0 %v2254
        %2256 = vmatprep.subr.mxu0 0.0
        %v2257 = vand.u32 %v801, 4294901760
        %2258 = vmatpush1.msra.mxu0 %v2257
        %2259 = vmatprep.subr.mxu0 0.0
        %v2260 = vand.u32 %v804, 4294901760
        %2261 = vmatpush1.msra.mxu0 %v2260
        %2262 = vmatprep.subr.mxu0 0.0
        %v2263 = vand.u32 %v807, 4294901760
        %2264 = vmatpush1.msra.mxu0 %v2263
        %2265 = vmatprep.subr.mxu0 0.0
        %v2266 = vand.u32 %v810, 4294901760
        %2267 = vmatpush1.msra.mxu0 %v2266
        %2268 = vmatprep.subr.mxu0 0.0
        %v2269 = vand.u32 %v813, 4294901760
        %2270 = vmatpush1.msra.mxu0 %v2269
        %2271 = vmatprep.subr.mxu0 0.0
        %2272 = vmatpush1.msra.mxu0 0.0
        %2273 = vmatprep.subr.mxu0 0.0
        %2274 = vmatpush1.msra.mxu0 0.0
        %2275 = vmatprep.subr.mxu0 0.0
        %2276 = vmatpush1.msra.mxu0 0.0
        %2277 = vmatprep.subr.mxu0 0.0
        %2278 = vmatpush1.msra.mxu0 0.0
        %2279 = vmatprep.subr.mxu0 0.0
        %2280 = vmatpush1.msra.mxu0 0.0
        %2281 = vmatprep.subr.mxu0 0.0
        %2282 = vmatpush1.msra.mxu0 0.0
        %2283 = vmatprep.subr.mxu0 0.0
        %2284 = vmatpush1.msra.mxu0 0.0
        %2285 = vmatprep.subr.mxu0 0.0
        %2286 = vmatpush1.msra.mxu0 0.0
        %2287 = vmatprep.subr.mxu0 0.0
        %2288 = vmatpush1.msra.mxu0 0.0
        %2289 = vmatprep.subr.mxu0 0.0
        %2290 = vmatpush1.msra.mxu0 0.0
        %2291 = vmatprep.subr.mxu0 0.0
        %2292 = vmatpush1.msra.mxu0 0.0
        %2293 = vmatprep.subr.mxu0 0.0
        %2294 = vmatpush1.msra.mxu0 0.0
        %2295 = vmatprep.subr.mxu0 0.0
        %2296 = vmatpush1.msra.mxu0 0.0
        %2297 = vmatprep.subr.mxu0 0.0
        %2298 = vmatpush1.msra.mxu0 0.0
        %2299 = vmatprep.subr.mxu0 0.0
        %2300 = vmatpush1.msra.mxu0 0.0
        %2301 = vmatprep.subr.mxu0 0.0
        %2302 = vmatpush1.msra.mxu0 0.0
        %2303 = vmatprep.mubr.f32.mxu0 0.0
        %v2304 = vand.u32 %v765, 4294901760
        %2305 = vmatmul.mubr.f32.gmra.mrb[0].mxu0 %v2304
        %v2306 = vpop.f32.mrb[0].mxu0
        %v2307 = vadd.f32 %v2220, %v2306
        %v2308 = vpop.f32.mrb[0].mxu0
        %2309 = vdwg.mxu0
        %v2310 = vld [vmem:[#allocation9] sm:$0xff]
        %v2311 = vld [vmem:[#allocation9 + $0x8] sm:$0xff]
        %v2312 = vld [vmem:[#allocation9 + $0x10] sm:$0xff]
        %v2313 = vld [vmem:[#allocation9 + $0x18] sm:$0xff]
        %v2314 = vld [vmem:[#allocation9 + $0x20] sm:$0xff]
        %v2315 = vld [vmem:[#allocation9 + $0x28] sm:$0xff]
        %v2316 = vld [vmem:[#allocation9 + $0x30] sm:$0xff]
        %v2317 = vld [vmem:[#allocation9 + $0x38] sm:$0xff]
        %v2318 = vld [vmem:[#allocation9 + $0x40] sm:$0xff]
        %v2319 = vld [vmem:[#allocation9 + $0x48] sm:$0xff]
        %v2320 = vld [vmem:[#allocation9 + $0x50] sm:$0xff]
        %v2321 = vld [vmem:[#allocation9 + $0x58] sm:$0xff]
        %v2322 = vld [vmem:[#allocation9 + $0x60] sm:$0xff]
        %v2323 = vld [vmem:[#allocation9 + $0x68] sm:$0xff]
        %v2324 = vld [vmem:[#allocation9 + $0x70] sm:$0xff]
        %v2325 = vld [vmem:[#allocation9 + $0x78] sm:$0xff]
        %v2326 = vld [vmem:[#allocation9 + $0x80] sm:$0xff]
        %v2327 = vld [vmem:[#allocation9 + $0x88] sm:$0xff]
        %v2328 = vld [vmem:[#allocation9 + $0x90] sm:$0xff]
        %v2329 = vld [vmem:[#allocation9 + $0x98] sm:$0xff]
        %v2330 = vld [vmem:[#allocation9 + $0xa0] sm:$0xff]
        %v2331 = vld [vmem:[#allocation9 + $0xa8] sm:$0xff]
        %v2332 = vld [vmem:[#allocation9 + $0xb0] sm:$0xff]
        %v2333 = vld [vmem:[#allocation9 + $0xb8] sm:$0xff]
        %v2334 = vld [vmem:[#allocation9 + $0xc0] sm:$0xff]
        %v2335 = vld [vmem:[#allocation9 + $0xc8] sm:$0xff]
        %v2336 = vld [vmem:[#allocation9 + $0xd0] sm:$0xff]
        %v2337 = vld [vmem:[#allocation9 + $0xd8] sm:$0xff]
        %v2338 = vld [vmem:[#allocation9 + $0xe0] sm:$0xff]
        %v2339 = vld [vmem:[#allocation9 + $0xe8] sm:$0xff]
        %v2340 = vld [vmem:[#allocation9 + $0xf0] sm:$0xff]
        %v2341 = vld [vmem:[#allocation9 + $0xf8] sm:$0xff]
        %v2342 = vld [vmem:[#allocation9 + $0x100] sm:$0xff]
        %v2343 = vld [vmem:[#allocation9 + $0x108] sm:$0xff]
        %v2344 = vld [vmem:[#allocation9 + $0x110] sm:$0xff]
        %v2345 = vld [vmem:[#allocation9 + $0x118] sm:$0xff]
        %v2346 = vld [vmem:[#allocation9 + $0x120] sm:$0xff]
        %v2347 = vld [vmem:[#allocation9 + $0x128] sm:$0xff]
        %v2348 = vld [vmem:[#allocation9 + $0x130] sm:$0xff]
        %v2349 = vld [vmem:[#allocation9 + $0x138] sm:$0xff]
        %v2350 = vld [vmem:[#allocation9 + $0x140] sm:$0xff]
        %v2351 = vld [vmem:[#allocation9 + $0x148] sm:$0xff]
        %v2352 = vld [vmem:[#allocation9 + $0x150] sm:$0xff]
        %v2353 = vld [vmem:[#allocation9 + $0x158] sm:$0xff]
        %v2354 = vld [vmem:[#allocation9 + $0x160] sm:$0xff]
        %v2355 = vld [vmem:[#allocation9 + $0x168] sm:$0xff]
        %v2356 = vld [vmem:[#allocation9 + $0x170] sm:$0xff]
        %v2357 = vld [vmem:[#allocation9 + $0x178] sm:$0xff]
        %v2358 = vand.u32 %v2311, 4294901760
        %2359 = vmatprep.subr.mxu0 %v2358
        %v2360 = vand.u32 %v2310, 4294901760
        %2361 = vmatpush1.msra.mxu0 %v2360
        %v2362 = vand.u32 %v2314, 4294901760
        %2363 = vmatprep.subr.mxu0 %v2362
        %v2364 = vand.u32 %v2313, 4294901760
        %2365 = vmatpush1.msra.mxu0 %v2364
        %v2366 = vand.u32 %v2317, 4294901760
        %2367 = vmatprep.subr.mxu0 %v2366
        %v2368 = vand.u32 %v2316, 4294901760
        %2369 = vmatpush1.msra.mxu0 %v2368
        %v2370 = vand.u32 %v2320, 4294901760
        %2371 = vmatprep.subr.mxu0 %v2370
        %v2372 = vand.u32 %v2319, 4294901760
        %2373 = vmatpush1.msra.mxu0 %v2372
        %v2374 = vand.u32 %v2323, 4294901760
        %2375 = vmatprep.subr.mxu0 %v2374
        %v2376 = vand.u32 %v2322, 4294901760
        %2377 = vmatpush1.msra.mxu0 %v2376
        %v2378 = vand.u32 %v2326, 4294901760
        %2379 = vmatprep.subr.mxu0 %v2378
        %v2380 = vand.u32 %v2325, 4294901760
        %2381 = vmatpush1.msra.mxu0 %v2380
        %v2382 = vand.u32 %v2329, 4294901760
        %2383 = vmatprep.subr.mxu0 %v2382
        %v2384 = vand.u32 %v2328, 4294901760
        %2385 = vmatpush1.msra.mxu0 %v2384
        %v2386 = vand.u32 %v2332, 4294901760
        %2387 = vmatprep.subr.mxu0 %v2386
        %v2388 = vand.u32 %v2331, 4294901760
        %2389 = vmatpush1.msra.mxu0 %v2388
        %v2390 = vand.u32 %v2335, 4294901760
        %2391 = vmatprep.subr.mxu0 %v2390
        %v2392 = vand.u32 %v2334, 4294901760
        %2393 = vmatpush1.msra.mxu0 %v2392
        %v2394 = vand.u32 %v2338, 4294901760
        %2395 = vmatprep.subr.mxu0 %v2394
        %v2396 = vand.u32 %v2337, 4294901760
        %2397 = vmatpush1.msra.mxu0 %v2396
        %v2398 = vand.u32 %v2341, 4294901760
        %2399 = vmatprep.subr.mxu0 %v2398
        %v2400 = vand.u32 %v2340, 4294901760
        %2401 = vmatpush1.msra.mxu0 %v2400
        %v2402 = vand.u32 %v2344, 4294901760
        %2403 = vmatprep.subr.mxu0 %v2402
        %v2404 = vand.u32 %v2343, 4294901760
        %2405 = vmatpush1.msra.mxu0 %v2404
        %v2406 = vand.u32 %v2347, 4294901760
        %2407 = vmatprep.subr.mxu0 %v2406
        %v2408 = vand.u32 %v2346, 4294901760
        %2409 = vmatpush1.msra.mxu0 %v2408
        %v2410 = vand.u32 %v2350, 4294901760
        %2411 = vmatprep.subr.mxu0 %v2410
        %v2412 = vand.u32 %v2349, 4294901760
        %2413 = vmatpush1.msra.mxu0 %v2412
        %v2414 = vand.u32 %v2353, 4294901760
        %2415 = vmatprep.subr.mxu0 %v2414
        %v2416 = vand.u32 %v2352, 4294901760
        %2417 = vmatpush1.msra.mxu0 %v2416
        %v2418 = vand.u32 %v2356, 4294901760
        %2419 = vmatprep.subr.mxu0 %v2418
        %v2420 = vand.u32 %v2355, 4294901760
        %2421 = vmatpush1.msra.mxu0 %v2420
        %2422 = vmatprep.subr.mxu0 0.0
        %2423 = vmatpush1.msra.mxu0 0.0
        %2424 = vmatprep.subr.mxu0 0.0
        %2425 = vmatpush1.msra.mxu0 0.0
        %2426 = vmatprep.subr.mxu0 0.0
        %2427 = vmatpush1.msra.mxu0 0.0
        %2428 = vmatprep.subr.mxu0 0.0
        %2429 = vmatpush1.msra.mxu0 0.0
        %2430 = vmatprep.subr.mxu0 0.0
        %2431 = vmatpush1.msra.mxu0 0.0
        %2432 = vmatprep.subr.mxu0 0.0
        %2433 = vmatpush1.msra.mxu0 0.0
        %2434 = vmatprep.subr.mxu0 0.0
        %2435 = vmatpush1.msra.mxu0 0.0
        %2436 = vmatprep.subr.mxu0 0.0
        %2437 = vmatpush1.msra.mxu0 0.0
        %2438 = vmatprep.subr.mxu0 0.0
        %2439 = vmatpush1.msra.mxu0 0.0
        %2440 = vmatprep.subr.mxu0 0.0
        %2441 = vmatpush1.msra.mxu0 0.0
        %2442 = vmatprep.subr.mxu0 0.0
        %2443 = vmatpush1.msra.mxu0 0.0
        %2444 = vmatprep.subr.mxu0 0.0
        %2445 = vmatpush1.msra.mxu0 0.0
        %2446 = vmatprep.subr.mxu0 0.0
        %2447 = vmatpush1.msra.mxu0 0.0
        %2448 = vmatprep.subr.mxu0 0.0
        %2449 = vmatpush1.msra.mxu0 0.0
        %2450 = vmatprep.subr.mxu0 0.0
        %2451 = vmatpush1.msra.mxu0 0.0
        %2452 = vmatprep.subr.mxu0 0.0
        %2453 = vmatpush1.msra.mxu0 0.0
        %2454 = vmatprep.mubr.f32.mxu0 0.0
        %v2455 = vand.u32 %v765, 4294901760
        %v2456 = vsub.f32 %v765, %v2455
        %v2457 = vand.u32 %v2456, 4294901760
        %v2458 = vsub.f32 %v2456, %v2457
        %v2459 = vand.u32 %v2458, 4294901760
        %2460 = vmatmul.mubr.f32.gmra.mrb[0].mxu0 %v2459
        %v2461 = vpop.f32.mrb[0].mxu0
        %v2462 = vadd.f32 0.0, %v2461
        %v2463 = vpop.f32.mrb[0].mxu0
        %v2464 = vadd.f32 0.0, %v2463
        %2465 = vdwg.mxu0
        %v2466 = vand.u32 %v2311, 4294901760
        %v2467 = vsub.f32 %v2311, %v2466
        %v2468 = vand.u32 %v2467, 4294901760
        %v2469 = vsub.f32 %v2467, %v2468
        %v2470 = vand.u32 %v2469, 4294901760
        %2471 = vmatprep.subr.mxu0 %v2470
        %v2472 = vand.u32 %v2310, 4294901760
        %v2473 = vsub.f32 %v2310, %v2472
        %v2474 = vand.u32 %v2473, 4294901760
        %v2475 = vsub.f32 %v2473, %v2474
        %v2476 = vand.u32 %v2475, 4294901760
        %2477 = vmatpush1.msra.mxu0 %v2476
        %v2478 = vand.u32 %v2314, 4294901760
        %v2479 = vsub.f32 %v2314, %v2478
        %v2480 = vand.u32 %v2479, 4294901760
        %v2481 = vsub.f32 %v2479, %v2480
        %v2482 = vand.u32 %v2481, 4294901760
        %2483 = vmatprep.subr.mxu0 %v2482
        %v2484 = vand.u32 %v2313, 4294901760
        %v2485 = vsub.f32 %v2313, %v2484
        %v2486 = vand.u32 %v2485, 4294901760
        %v2487 = vsub.f32 %v2485, %v2486
        %v2488 = vand.u32 %v2487, 4294901760
        %2489 = vmatpush1.msra.mxu0 %v2488
        %v2490 = vand.u32 %v2317, 4294901760
        %v2491 = vsub.f32 %v2317, %v2490
        %v2492 = vand.u32 %v2491, 4294901760
        %v2493 = vsub.f32 %v2491, %v2492
        %v2494 = vand.u32 %v2493, 4294901760
        %2495 = vmatprep.subr.mxu0 %v2494
        %v2496 = vand.u32 %v2316, 4294901760
        %v2497 = vsub.f32 %v2316, %v2496
        %v2498 = vand.u32 %v2497, 4294901760
        %v2499 = vsub.f32 %v2497, %v2498
        %v2500 = vand.u32 %v2499, 4294901760
        %2501 = vmatpush1.msra.mxu0 %v2500
        %v2502 = vand.u32 %v2320, 4294901760
        %v2503 = vsub.f32 %v2320, %v2502
        %v2504 = vand.u32 %v2503, 4294901760
        %v2505 = vsub.f32 %v2503, %v2504
        %v2506 = vand.u32 %v2505, 4294901760
        %2507 = vmatprep.subr.mxu0 %v2506
        %v2508 = vand.u32 %v2319, 4294901760
        %v2509 = vsub.f32 %v2319, %v2508
        %v2510 = vand.u32 %v2509, 4294901760
        %v2511 = vsub.f32 %v2509, %v2510
        %v2512 = vand.u32 %v2511, 4294901760
        %2513 = vmatpush1.msra.mxu0 %v2512
        %v2514 = vand.u32 %v2323, 4294901760
        %v2515 = vsub.f32 %v2323, %v2514
        %v2516 = vand.u32 %v2515, 4294901760
        %v2517 = vsub.f32 %v2515, %v2516
        %v2518 = vand.u32 %v2517, 4294901760
        %2519 = vmatprep.subr.mxu0 %v2518
        %v2520 = vand.u32 %v2322, 4294901760
        %v2521 = vsub.f32 %v2322, %v2520
        %v2522 = vand.u32 %v2521, 4294901760
        %v2523 = vsub.f32 %v2521, %v2522
        %v2524 = vand.u32 %v2523, 4294901760
        %2525 = vmatpush1.msra.mxu0 %v2524
        %v2526 = vand.u32 %v2326, 4294901760
        %v2527 = vsub.f32 %v2326, %v2526
        %v2528 = vand.u32 %v2527, 4294901760
        %v2529 = vsub.f32 %v2527, %v2528
        %v2530 = vand.u32 %v2529, 4294901760
        %2531 = vmatprep.subr.mxu0 %v2530
        %v2532 = vand.u32 %v2325, 4294901760
        %v2533 = vsub.f32 %v2325, %v2532
        %v2534 = vand.u32 %v2533, 4294901760
        %v2535 = vsub.f32 %v2533, %v2534
        %v2536 = vand.u32 %v2535, 4294901760
        %2537 = vmatpush1.msra.mxu0 %v2536
        %v2538 = vand.u32 %v2329, 4294901760
        %v2539 = vsub.f32 %v2329, %v2538
        %v2540 = vand.u32 %v2539, 4294901760
        %v2541 = vsub.f32 %v2539, %v2540
        %v2542 = vand.u32 %v2541, 4294901760
        %2543 = vmatprep.subr.mxu0 %v2542
        %v2544 = vand.u32 %v2328, 4294901760
        %v2545 = vsub.f32 %v2328, %v2544
        %v2546 = vand.u32 %v2545, 4294901760
        %v2547 = vsub.f32 %v2545, %v2546
        %v2548 = vand.u32 %v2547, 4294901760
        %2549 = vmatpush1.msra.mxu0 %v2548
        %v2550 = vand.u32 %v2332, 4294901760
        %v2551 = vsub.f32 %v2332, %v2550
        %v2552 = vand.u32 %v2551, 4294901760
        %v2553 = vsub.f32 %v2551, %v2552
        %v2554 = vand.u32 %v2553, 4294901760
        %2555 = vmatprep.subr.mxu0 %v2554
        %v2556 = vand.u32 %v2331, 4294901760
        %v2557 = vsub.f32 %v2331, %v2556
        %v2558 = vand.u32 %v2557, 4294901760
        %v2559 = vsub.f32 %v2557, %v2558
        %v2560 = vand.u32 %v2559, 4294901760
        %2561 = vmatpush1.msra.mxu0 %v2560
        %v2562 = vand.u32 %v2335, 4294901760
        %v2563 = vsub.f32 %v2335, %v2562
        %v2564 = vand.u32 %v2563, 4294901760
        %v2565 = vsub.f32 %v2563, %v2564
        %v2566 = vand.u32 %v2565, 4294901760
        %2567 = vmatprep.subr.mxu0 %v2566
        %v2568 = vand.u32 %v2334, 4294901760
        %v2569 = vsub.f32 %v2334, %v2568
        %v2570 = vand.u32 %v2569, 4294901760
        %v2571 = vsub.f32 %v2569, %v2570
        %v2572 = vand.u32 %v2571, 4294901760
        %2573 = vmatpush1.msra.mxu0 %v2572
        %v2574 = vand.u32 %v2338, 4294901760
        %v2575 = vsub.f32 %v2338, %v2574
        %v2576 = vand.u32 %v2575, 4294901760
        %v2577 = vsub.f32 %v2575, %v2576
        %v2578 = vand.u32 %v2577, 4294901760
        %2579 = vmatprep.subr.mxu0 %v2578
        %v2580 = vand.u32 %v2337, 4294901760
        %v2581 = vsub.f32 %v2337, %v2580
        %v2582 = vand.u32 %v2581, 4294901760
        %v2583 = vsub.f32 %v2581, %v2582
        %v2584 = vand.u32 %v2583, 4294901760
        %2585 = vmatpush1.msra.mxu0 %v2584
        %v2586 = vand.u32 %v2341, 4294901760
        %v2587 = vsub.f32 %v2341, %v2586
        %v2588 = vand.u32 %v2587, 4294901760
        %v2589 = vsub.f32 %v2587, %v2588
        %v2590 = vand.u32 %v2589, 4294901760
        %2591 = vmatprep.subr.mxu0 %v2590
        %v2592 = vand.u32 %v2340, 4294901760
        %v2593 = vsub.f32 %v2340, %v2592
        %v2594 = vand.u32 %v2593, 4294901760
        %v2595 = vsub.f32 %v2593, %v2594
        %v2596 = vand.u32 %v2595, 4294901760
        %2597 = vmatpush1.msra.mxu0 %v2596
        %v2598 = vand.u32 %v2344, 4294901760
        %v2599 = vsub.f32 %v2344, %v2598
        %v2600 = vand.u32 %v2599, 4294901760
        %v2601 = vsub.f32 %v2599, %v2600
        %v2602 = vand.u32 %v2601, 4294901760
        %2603 = vmatprep.subr.mxu0 %v2602
        %v2604 = vand.u32 %v2343, 4294901760
        %v2605 = vsub.f32 %v2343, %v2604
        %v2606 = vand.u32 %v2605, 4294901760
        %v2607 = vsub.f32 %v2605, %v2606
        %v2608 = vand.u32 %v2607, 4294901760
        %2609 = vmatpush1.msra.mxu0 %v2608
        %v2610 = vand.u32 %v2347, 4294901760
        %v2611 = vsub.f32 %v2347, %v2610
        %v2612 = vand.u32 %v2611, 4294901760
        %v2613 = vsub.f32 %v2611, %v2612
        %v2614 = vand.u32 %v2613, 4294901760
        %2615 = vmatprep.subr.mxu0 %v2614
        %v2616 = vand.u32 %v2346, 4294901760
        %v2617 = vsub.f32 %v2346, %v2616
        %v2618 = vand.u32 %v2617, 4294901760
        %v2619 = vsub.f32 %v2617, %v2618
        %v2620 = vand.u32 %v2619, 4294901760
        %2621 = vmatpush1.msra.mxu0 %v2620
        %v2622 = vand.u32 %v2350, 4294901760
        %v2623 = vsub.f32 %v2350, %v2622
        %v2624 = vand.u32 %v2623, 4294901760
        %v2625 = vsub.f32 %v2623, %v2624
        %v2626 = vand.u32 %v2625, 4294901760
        %2627 = vmatprep.subr.mxu0 %v2626
        %v2628 = vand.u32 %v2349, 4294901760
        %v2629 = vsub.f32 %v2349, %v2628
        %v2630 = vand.u32 %v2629, 4294901760
        %v2631 = vsub.f32 %v2629, %v2630
        %v2632 = vand.u32 %v2631, 4294901760
        %2633 = vmatpush1.msra.mxu0 %v2632
        %v2634 = vand.u32 %v2353, 4294901760
        %v2635 = vsub.f32 %v2353, %v2634
        %v2636 = vand.u32 %v2635, 4294901760
        %v2637 = vsub.f32 %v2635, %v2636
        %v2638 = vand.u32 %v2637, 4294901760
        %2639 = vmatprep.subr.mxu0 %v2638
        %v2640 = vand.u32 %v2352, 4294901760
        %v2641 = vsub.f32 %v2352, %v2640
        %v2642 = vand.u32 %v2641, 4294901760
        %v2643 = vsub.f32 %v2641, %v2642
        %v2644 = vand.u32 %v2643, 4294901760
        %2645 = vmatpush1.msra.mxu0 %v2644
        %v2646 = vand.u32 %v2356, 4294901760
        %v2647 = vsub.f32 %v2356, %v2646
        %v2648 = vand.u32 %v2647, 4294901760
        %v2649 = vsub.f32 %v2647, %v2648
        %v2650 = vand.u32 %v2649, 4294901760
        %2651 = vmatprep.subr.mxu0 %v2650
        %v2652 = vand.u32 %v2355, 4294901760
        %v2653 = vsub.f32 %v2355, %v2652
        %v2654 = vand.u32 %v2653, 4294901760
        %v2655 = vsub.f32 %v2653, %v2654
        %v2656 = vand.u32 %v2655, 4294901760
        %2657 = vmatpush1.msra.mxu0 %v2656
        %2658 = vmatprep.subr.mxu0 0.0
        %2659 = vmatpush1.msra.mxu0 0.0
        %2660 = vmatprep.subr.mxu0 0.0
        %2661 = vmatpush1.msra.mxu0 0.0
        %2662 = vmatprep.subr.mxu0 0.0
        %2663 = vmatpush1.msra.mxu0 0.0
        %2664 = vmatprep.subr.mxu0 0.0
        %2665 = vmatpush1.msra.mxu0 0.0
        %2666 = vmatprep.subr.mxu0 0.0
        %2667 = vmatpush1.msra.mxu0 0.0
        %2668 = vmatprep.subr.mxu0 0.0
        %2669 = vmatpush1.msra.mxu0 0.0
        %2670 = vmatprep.subr.mxu0 0.0
        %2671 = vmatpush1.msra.mxu0 0.0
        %2672 = vmatprep.subr.mxu0 0.0
        %2673 = vmatpush1.msra.mxu0 0.0
        %2674 = vmatprep.subr.mxu0 0.0
        %2675 = vmatpush1.msra.mxu0 0.0
        %2676 = vmatprep.subr.mxu0 0.0
        %2677 = vmatpush1.msra.mxu0 0.0
        %2678 = vmatprep.subr.mxu0 0.0
        %2679 = vmatpush1.msra.mxu0 0.0
        %2680 = vmatprep.subr.mxu0 0.0
        %2681 = vmatpush1.msra.mxu0 0.0
        %2682 = vmatprep.subr.mxu0 0.0
        %2683 = vmatpush1.msra.mxu0 0.0
        %2684 = vmatprep.subr.mxu0 0.0
        %2685 = vmatpush1.msra.mxu0 0.0
        %2686 = vmatprep.subr.mxu0 0.0
        %2687 = vmatpush1.msra.mxu0 0.0
        %2688 = vmatprep.subr.mxu0 0.0
        %2689 = vmatpush1.msra.mxu0 0.0
        %2690 = vmatprep.mubr.f32.mxu0 0.0
        %v2691 = vand.u32 %v765, 4294901760
        %2692 = vmatmul.mubr.f32.gmra.mrb[0].mxu0 %v2691
        %v2693 = vpop.f32.mrb[0].mxu0
        %v2694 = vadd.f32 %v2462, %v2693
        %v2695 = vpop.f32.mrb[0].mxu0
        %v2696 = vadd.f32 %v2464, %v2695
        %2697 = vdwg.mxu0
        %v2698 = vand.u32 %v2311, 4294901760
        %v2699 = vsub.f32 %v2311, %v2698
        %2700 = vmatprep.subr.mxu0 %v2699
        %v2701 = vand.u32 %v2310, 4294901760
        %v2702 = vsub.f32 %v2310, %v2701
        %2703 = vmatpush1.msra.mxu0 %v2702
        %v2704 = vand.u32 %v2314, 4294901760
        %v2705 = vsub.f32 %v2314, %v2704
        %2706 = vmatprep.subr.mxu0 %v2705
        %v2707 = vand.u32 %v2313, 4294901760
        %v2708 = vsub.f32 %v2313, %v2707
        %2709 = vmatpush1.msra.mxu0 %v2708
        %v2710 = vand.u32 %v2317, 4294901760
        %v2711 = vsub.f32 %v2317, %v2710
        %2712 = vmatprep.subr.mxu0 %v2711
        %v2713 = vand.u32 %v2316, 4294901760
        %v2714 = vsub.f32 %v2316, %v2713
        %2715 = vmatpush1.msra.mxu0 %v2714
        %v2716 = vand.u32 %v2320, 4294901760
        %v2717 = vsub.f32 %v2320, %v2716
        %2718 = vmatprep.subr.mxu0 %v2717
        %v2719 = vand.u32 %v2319, 4294901760
        %v2720 = vsub.f32 %v2319, %v2719
        %2721 = vmatpush1.msra.mxu0 %v2720
        %v2722 = vand.u32 %v2323, 4294901760
        %v2723 = vsub.f32 %v2323, %v2722
        %2724 = vmatprep.subr.mxu0 %v2723
        %v2725 = vand.u32 %v2322, 4294901760
        %v2726 = vsub.f32 %v2322, %v2725
        %2727 = vmatpush1.msra.mxu0 %v2726
        %v2728 = vand.u32 %v2326, 4294901760
        %v2729 = vsub.f32 %v2326, %v2728
        %2730 = vmatprep.subr.mxu0 %v2729
        %v2731 = vand.u32 %v2325, 4294901760
        %v2732 = vsub.f32 %v2325, %v2731
        %2733 = vmatpush1.msra.mxu0 %v2732
        %v2734 = vand.u32 %v2329, 4294901760
        %v2735 = vsub.f32 %v2329, %v2734
        %2736 = vmatprep.subr.mxu0 %v2735
        %v2737 = vand.u32 %v2328, 4294901760
        %v2738 = vsub.f32 %v2328, %v2737
        %2739 = vmatpush1.msra.mxu0 %v2738
        %v2740 = vand.u32 %v2332, 4294901760
        %v2741 = vsub.f32 %v2332, %v2740
        %2742 = vmatprep.subr.mxu0 %v2741
        %v2743 = vand.u32 %v2331, 4294901760
        %v2744 = vsub.f32 %v2331, %v2743
        %2745 = vmatpush1.msra.mxu0 %v2744
        %v2746 = vand.u32 %v2335, 4294901760
        %v2747 = vsub.f32 %v2335, %v2746
        %2748 = vmatprep.subr.mxu0 %v2747
        %v2749 = vand.u32 %v2334, 4294901760
        %v2750 = vsub.f32 %v2334, %v2749
        %2751 = vmatpush1.msra.mxu0 %v2750
        %v2752 = vand.u32 %v2338, 4294901760
        %v2753 = vsub.f32 %v2338, %v2752
        %2754 = vmatprep.subr.mxu0 %v2753
        %v2755 = vand.u32 %v2337, 4294901760
        %v2756 = vsub.f32 %v2337, %v2755
        %2757 = vmatpush1.msra.mxu0 %v2756
        %v2758 = vand.u32 %v2341, 4294901760
        %v2759 = vsub.f32 %v2341, %v2758
        %2760 = vmatprep.subr.mxu0 %v2759
        %v2761 = vand.u32 %v2340, 4294901760
        %v2762 = vsub.f32 %v2340, %v2761
        %2763 = vmatpush1.msra.mxu0 %v2762
        %v2764 = vand.u32 %v2344, 4294901760
        %v2765 = vsub.f32 %v2344, %v2764
        %2766 = vmatprep.subr.mxu0 %v2765
        %v2767 = vand.u32 %v2343, 4294901760
        %v2768 = vsub.f32 %v2343, %v2767
        %2769 = vmatpush1.msra.mxu0 %v2768
        %v2770 = vand.u32 %v2347, 4294901760
        %v2771 = vsub.f32 %v2347, %v2770
        %2772 = vmatprep.subr.mxu0 %v2771
        %v2773 = vand.u32 %v2346, 4294901760
        %v2774 = vsub.f32 %v2346, %v2773
        %2775 = vmatpush1.msra.mxu0 %v2774
        %v2776 = vand.u32 %v2350, 4294901760
        %v2777 = vsub.f32 %v2350, %v2776
        %2778 = vmatprep.subr.mxu0 %v2777
        %v2779 = vand.u32 %v2349, 4294901760
        %v2780 = vsub.f32 %v2349, %v2779
        %2781 = vmatpush1.msra.mxu0 %v2780
        %v2782 = vand.u32 %v2353, 4294901760
        %v2783 = vsub.f32 %v2353, %v2782
        %2784 = vmatprep.subr.mxu0 %v2783
        %v2785 = vand.u32 %v2352, 4294901760
        %v2786 = vsub.f32 %v2352, %v2785
        %2787 = vmatpush1.msra.mxu0 %v2786
        %v2788 = vand.u32 %v2356, 4294901760
        %v2789 = vsub.f32 %v2356, %v2788
        %2790 = vmatprep.subr.mxu0 %v2789
        %v2791 = vand.u32 %v2355, 4294901760
        %v2792 = vsub.f32 %v2355, %v2791
        %2793 = vmatpush1.msra.mxu0 %v2792
        %2794 = vmatprep.subr.mxu0 0.0
        %2795 = vmatpush1.msra.mxu0 0.0
        %2796 = vmatprep.subr.mxu0 0.0
        %2797 = vmatpush1.msra.mxu0 0.0
        %2798 = vmatprep.subr.mxu0 0.0
        %2799 = vmatpush1.msra.mxu0 0.0
        %2800 = vmatprep.subr.mxu0 0.0
        %2801 = vmatpush1.msra.mxu0 0.0
        %2802 = vmatprep.subr.mxu0 0.0
        %2803 = vmatpush1.msra.mxu0 0.0
        %2804 = vmatprep.subr.mxu0 0.0
        %2805 = vmatpush1.msra.mxu0 0.0
        %2806 = vmatprep.subr.mxu0 0.0
        %2807 = vmatpush1.msra.mxu0 0.0
        %2808 = vmatprep.subr.mxu0 0.0
        %2809 = vmatpush1.msra.mxu0 0.0
        %2810 = vmatprep.subr.mxu0 0.0
        %2811 = vmatpush1.msra.mxu0 0.0
        %2812 = vmatprep.subr.mxu0 0.0
        %2813 = vmatpush1.msra.mxu0 0.0
        %2814 = vmatprep.subr.mxu0 0.0
        %2815 = vmatpush1.msra.mxu0 0.0
        %2816 = vmatprep.subr.mxu0 0.0
        %2817 = vmatpush1.msra.mxu0 0.0
        %2818 = vmatprep.subr.mxu0 0.0
        %2819 = vmatpush1.msra.mxu0 0.0
        %2820 = vmatprep.subr.mxu0 0.0
        %2821 = vmatpush1.msra.mxu0 0.0
        %2822 = vmatprep.subr.mxu0 0.0
        %2823 = vmatpush1.msra.mxu0 0.0
        %2824 = vmatprep.subr.mxu0 0.0
        %2825 = vmatpush1.msra.mxu0 0.0
        %2826 = vmatprep.mubr.f32.mxu0 0.0
        %v2827 = vand.u32 %v765, 4294901760
        %v2828 = vsub.f32 %v765, %v2827
        %2829 = vmatmul.mubr.f32.gmra.mrb[0].mxu0 %v2828
        %v2830 = vpop.f32.mrb[0].mxu0
        %v2831 = vadd.f32 %v2694, %v2830
        %v2832 = vpop.f32.mrb[0].mxu0
        %v2833 = vadd.f32 %v2696, %v2832
        %2834 = vdwg.mxu0
        %v2835 = vand.u32 %v2311, 4294901760
        %2836 = vmatprep.subr.mxu0 %v2835
        %v2837 = vand.u32 %v2310, 4294901760
        %2838 = vmatpush1.msra.mxu0 %v2837
        %v2839 = vand.u32 %v2314, 4294901760
        %2840 = vmatprep.subr.mxu0 %v2839
        %v2841 = vand.u32 %v2313, 4294901760
        %2842 = vmatpush1.msra.mxu0 %v2841
        %v2843 = vand.u32 %v2317, 4294901760
        %2844 = vmatprep.subr.mxu0 %v2843
        %v2845 = vand.u32 %v2316, 4294901760
        %2846 = vmatpush1.msra.mxu0 %v2845
        %v2847 = vand.u32 %v2320, 4294901760
        %2848 = vmatprep.subr.mxu0 %v2847
        %v2849 = vand.u32 %v2319, 4294901760
        %2850 = vmatpush1.msra.mxu0 %v2849
        %v2851 = vand.u32 %v2323, 4294901760
        %2852 = vmatprep.subr.mxu0 %v2851
        %v2853 = vand.u32 %v2322, 4294901760
        %2854 = vmatpush1.msra.mxu0 %v2853
        %v2855 = vand.u32 %v2326, 4294901760
        %2856 = vmatprep.subr.mxu0 %v2855
        %v2857 = vand.u32 %v2325, 4294901760
        %2858 = vmatpush1.msra.mxu0 %v2857
        %v2859 = vand.u32 %v2329, 4294901760
        %2860 = vmatprep.subr.mxu0 %v2859
        %v2861 = vand.u32 %v2328, 4294901760
        %2862 = vmatpush1.msra.mxu0 %v2861
        %v2863 = vand.u32 %v2332, 4294901760
        %2864 = vmatprep.subr.mxu0 %v2863
        %v2865 = vand.u32 %v2331, 4294901760
        %2866 = vmatpush1.msra.mxu0 %v2865
        %v2867 = vand.u32 %v2335, 4294901760
        %2868 = vmatprep.subr.mxu0 %v2867
        %v2869 = vand.u32 %v2334, 4294901760
        %2870 = vmatpush1.msra.mxu0 %v2869
        %v2871 = vand.u32 %v2338, 4294901760
        %2872 = vmatprep.subr.mxu0 %v2871
        %v2873 = vand.u32 %v2337, 4294901760
        %2874 = vmatpush1.msra.mxu0 %v2873
        %v2875 = vand.u32 %v2341, 4294901760
        %2876 = vmatprep.subr.mxu0 %v2875
        %v2877 = vand.u32 %v2340, 4294901760
        %2878 = vmatpush1.msra.mxu0 %v2877
        %v2879 = vand.u32 %v2344, 4294901760
        %2880 = vmatprep.subr.mxu0 %v2879
        %v2881 = vand.u32 %v2343, 4294901760
        %2882 = vmatpush1.msra.mxu0 %v2881
        %v2883 = vand.u32 %v2347, 4294901760
        %2884 = vmatprep.subr.mxu0 %v2883
        %v2885 = vand.u32 %v2346, 4294901760
        %2886 = vmatpush1.msra.mxu0 %v2885
        %v2887 = vand.u32 %v2350, 4294901760
        %2888 = vmatprep.subr.mxu0 %v2887
        %v2889 = vand.u32 %v2349, 4294901760
        %2890 = vmatpush1.msra.mxu0 %v2889
        %v2891 = vand.u32 %v2353, 4294901760
        %2892 = vmatprep.subr.mxu0 %v2891
        %v2893 = vand.u32 %v2352, 4294901760
        %2894 = vmatpush1.msra.mxu0 %v2893
        %v2895 = vand.u32 %v2356, 4294901760
        %2896 = vmatprep.subr.mxu0 %v2895
        %v2897 = vand.u32 %v2355, 4294901760
        %2898 = vmatpush1.msra.mxu0 %v2897
        %2899 = vmatprep.subr.mxu0 0.0
        %2900 = vmatpush1.msra.mxu0 0.0
        %2901 = vmatprep.subr.mxu0 0.0
        %2902 = vmatpush1.msra.mxu0 0.0
        %2903 = vmatprep.subr.mxu0 0.0
        %2904 = vmatpush1.msra.mxu0 0.0
        %2905 = vmatprep.subr.mxu0 0.0
        %2906 = vmatpush1.msra.mxu0 0.0
        %2907 = vmatprep.subr.mxu0 0.0
        %2908 = vmatpush1.msra.mxu0 0.0
        %2909 = vmatprep.subr.mxu0 0.0
        %2910 = vmatpush1.msra.mxu0 0.0
        %2911 = vmatprep.subr.mxu0 0.0
        %2912 = vmatpush1.msra.mxu0 0.0
        %2913 = vmatprep.subr.mxu0 0.0
        %2914 = vmatpush1.msra.mxu0 0.0
        %2915 = vmatprep.subr.mxu0 0.0
        %2916 = vmatpush1.msra.mxu0 0.0
        %2917 = vmatprep.subr.mxu0 0.0
        %2918 = vmatpush1.msra.mxu0 0.0
        %2919 = vmatprep.subr.mxu0 0.0
        %2920 = vmatpush1.msra.mxu0 0.0
        %2921 = vmatprep.subr.mxu0 0.0
        %2922 = vmatpush1.msra.mxu0 0.0
        %2923 = vmatprep.subr.mxu0 0.0
        %2924 = vmatpush1.msra.mxu0 0.0
        %2925 = vmatprep.subr.mxu0 0.0
        %2926 = vmatpush1.msra.mxu0 0.0
        %2927 = vmatprep.subr.mxu0 0.0
        %2928 = vmatpush1.msra.mxu0 0.0
        %2929 = vmatprep.subr.mxu0 0.0
        %2930 = vmatpush1.msra.mxu0 0.0
        %2931 = vmatprep.mubr.f32.mxu0 0.0
        %v2932 = vand.u32 %v765, 4294901760
        %v2933 = vsub.f32 %v765, %v2932
        %v2934 = vand.u32 %v2933, 4294901760
        %2935 = vmatmul.mubr.f32.gmra.mrb[0].mxu0 %v2934
        %v2936 = vpop.f32.mrb[0].mxu0
        %v2937 = vadd.f32 %v2831, %v2936
        %v2938 = vpop.f32.mrb[0].mxu0
        %v2939 = vadd.f32 %v2833, %v2938
        %2940 = vdwg.mxu0
        %v2941 = vand.u32 %v2311, 4294901760
        %v2942 = vsub.f32 %v2311, %v2941
        %v2943 = vand.u32 %v2942, 4294901760
        %2944 = vmatprep.subr.mxu0 %v2943
        %v2945 = vand.u32 %v2310, 4294901760
        %v2946 = vsub.f32 %v2310, %v2945
        %v2947 = vand.u32 %v2946, 4294901760
        %2948 = vmatpush1.msra.mxu0 %v2947
        %v2949 = vand.u32 %v2314, 4294901760
        %v2950 = vsub.f32 %v2314, %v2949
        %v2951 = vand.u32 %v2950, 4294901760
        %2952 = vmatprep.subr.mxu0 %v2951
        %v2953 = vand.u32 %v2313, 4294901760
        %v2954 = vsub.f32 %v2313, %v2953
        %v2955 = vand.u32 %v2954, 4294901760
        %2956 = vmatpush1.msra.mxu0 %v2955
        %v2957 = vand.u32 %v2317, 4294901760
        %v2958 = vsub.f32 %v2317, %v2957
        %v2959 = vand.u32 %v2958, 4294901760
        %2960 = vmatprep.subr.mxu0 %v2959
        %v2961 = vand.u32 %v2316, 4294901760
        %v2962 = vsub.f32 %v2316, %v2961
        %v2963 = vand.u32 %v2962, 4294901760
        %2964 = vmatpush1.msra.mxu0 %v2963
        %v2965 = vand.u32 %v2320, 4294901760
        %v2966 = vsub.f32 %v2320, %v2965
        %v2967 = vand.u32 %v2966, 4294901760
        %2968 = vmatprep.subr.mxu0 %v2967
        %v2969 = vand.u32 %v2319, 4294901760
        %v2970 = vsub.f32 %v2319, %v2969
        %v2971 = vand.u32 %v2970, 4294901760
        %2972 = vmatpush1.msra.mxu0 %v2971
        %v2973 = vand.u32 %v2323, 4294901760
        %v2974 = vsub.f32 %v2323, %v2973
        %v2975 = vand.u32 %v2974, 4294901760
        %2976 = vmatprep.subr.mxu0 %v2975
        %v2977 = vand.u32 %v2322, 4294901760
        %v2978 = vsub.f32 %v2322, %v2977
        %v2979 = vand.u32 %v2978, 4294901760
        %2980 = vmatpush1.msra.mxu0 %v2979
        %v2981 = vand.u32 %v2326, 4294901760
        %v2982 = vsub.f32 %v2326, %v2981
        %v2983 = vand.u32 %v2982, 4294901760
        %2984 = vmatprep.subr.mxu0 %v2983
        %v2985 = vand.u32 %v2325, 4294901760
        %v2986 = vsub.f32 %v2325, %v2985
        %v2987 = vand.u32 %v2986, 4294901760
        %2988 = vmatpush1.msra.mxu0 %v2987
        %v2989 = vand.u32 %v2329, 4294901760
        %v2990 = vsub.f32 %v2329, %v2989
        %v2991 = vand.u32 %v2990, 4294901760
        %2992 = vmatprep.subr.mxu0 %v2991
        %v2993 = vand.u32 %v2328, 4294901760
        %v2994 = vsub.f32 %v2328, %v2993
        %v2995 = vand.u32 %v2994, 4294901760
        %2996 = vmatpush1.msra.mxu0 %v2995
        %v2997 = vand.u32 %v2332, 4294901760
        %v2998 = vsub.f32 %v2332, %v2997
        %v2999 = vand.u32 %v2998, 4294901760
        %3000 = vmatprep.subr.mxu0 %v2999
        %v3001 = vand.u32 %v2331, 4294901760
        %v3002 = vsub.f32 %v2331, %v3001
        %v3003 = vand.u32 %v3002, 4294901760
        %3004 = vmatpush1.msra.mxu0 %v3003
        %v3005 = vand.u32 %v2335, 4294901760
        %v3006 = vsub.f32 %v2335, %v3005
        %v3007 = vand.u32 %v3006, 4294901760
        %3008 = vmatprep.subr.mxu0 %v3007
        %v3009 = vand.u32 %v2334, 4294901760
        %v3010 = vsub.f32 %v2334, %v3009
        %v3011 = vand.u32 %v3010, 4294901760
        %3012 = vmatpush1.msra.mxu0 %v3011
        %v3013 = vand.u32 %v2338, 4294901760
        %v3014 = vsub.f32 %v2338, %v3013
        %v3015 = vand.u32 %v3014, 4294901760
        %3016 = vmatprep.subr.mxu0 %v3015
        %v3017 = vand.u32 %v2337, 4294901760
        %v3018 = vsub.f32 %v2337, %v3017
        %v3019 = vand.u32 %v3018, 4294901760
        %3020 = vmatpush1.msra.mxu0 %v3019
        %v3021 = vand.u32 %v2341, 4294901760
        %v3022 = vsub.f32 %v2341, %v3021
        %v3023 = vand.u32 %v3022, 4294901760
        %3024 = vmatprep.subr.mxu0 %v3023
        %v3025 = vand.u32 %v2340, 4294901760
        %v3026 = vsub.f32 %v2340, %v3025
        %v3027 = vand.u32 %v3026, 4294901760
        %3028 = vmatpush1.msra.mxu0 %v3027
        %v3029 = vand.u32 %v2344, 4294901760
        %v3030 = vsub.f32 %v2344, %v3029
        %v3031 = vand.u32 %v3030, 4294901760
        %3032 = vmatprep.subr.mxu0 %v3031
        %v3033 = vand.u32 %v2343, 4294901760
        %v3034 = vsub.f32 %v2343, %v3033
        %v3035 = vand.u32 %v3034, 4294901760
        %3036 = vmatpush1.msra.mxu0 %v3035
        %v3037 = vand.u32 %v2347, 4294901760
        %v3038 = vsub.f32 %v2347, %v3037
        %v3039 = vand.u32 %v3038, 4294901760
        %3040 = vmatprep.subr.mxu0 %v3039
        %v3041 = vand.u32 %v2346, 4294901760
        %v3042 = vsub.f32 %v2346, %v3041
        %v3043 = vand.u32 %v3042, 4294901760
        %3044 = vmatpush1.msra.mxu0 %v3043
        %v3045 = vand.u32 %v2350, 4294901760
        %v3046 = vsub.f32 %v2350, %v3045
        %v3047 = vand.u32 %v3046, 4294901760
        %3048 = vmatprep.subr.mxu0 %v3047
        %v3049 = vand.u32 %v2349, 4294901760
        %v3050 = vsub.f32 %v2349, %v3049
        %v3051 = vand.u32 %v3050, 4294901760
        %3052 = vmatpush1.msra.mxu0 %v3051
        %v3053 = vand.u32 %v2353, 4294901760
        %v3054 = vsub.f32 %v2353, %v3053
        %v3055 = vand.u32 %v3054, 4294901760
        %3056 = vmatprep.subr.mxu0 %v3055
        %v3057 = vand.u32 %v2352, 4294901760
        %v3058 = vsub.f32 %v2352, %v3057
        %v3059 = vand.u32 %v3058, 4294901760
        %3060 = vmatpush1.msra.mxu0 %v3059
        %v3061 = vand.u32 %v2356, 4294901760
        %v3062 = vsub.f32 %v2356, %v3061
        %v3063 = vand.u32 %v3062, 4294901760
        %3064 = vmatprep.subr.mxu0 %v3063
        %v3065 = vand.u32 %v2355, 4294901760
        %v3066 = vsub.f32 %v2355, %v3065
        %v3067 = vand.u32 %v3066, 4294901760
        %3068 = vmatpush1.msra.mxu0 %v3067
        %3069 = vmatprep.subr.mxu0 0.0
        %3070 = vmatpush1.msra.mxu0 0.0
        %3071 = vmatprep.subr.mxu0 0.0
        %3072 = vmatpush1.msra.mxu0 0.0
        %3073 = vmatprep.subr.mxu0 0.0
        %3074 = vmatpush1.msra.mxu0 0.0
        %3075 = vmatprep.subr.mxu0 0.0
        %3076 = vmatpush1.msra.mxu0 0.0
        %3077 = vmatprep.subr.mxu0 0.0
        %3078 = vmatpush1.msra.mxu0 0.0
        %3079 = vmatprep.subr.mxu0 0.0
        %3080 = vmatpush1.msra.mxu0 0.0
        %3081 = vmatprep.subr.mxu0 0.0
        %3082 = vmatpush1.msra.mxu0 0.0
        %3083 = vmatprep.subr.mxu0 0.0
        %3084 = vmatpush1.msra.mxu0 0.0
        %3085 = vmatprep.subr.mxu0 0.0
        %3086 = vmatpush1.msra.mxu0 0.0
        %3087 = vmatprep.subr.mxu0 0.0
        %3088 = vmatpush1.msra.mxu0 0.0
        %3089 = vmatprep.subr.mxu0 0.0
        %3090 = vmatpush1.msra.mxu0 0.0
        %3091 = vmatprep.subr.mxu0 0.0
        %3092 = vmatpush1.msra.mxu0 0.0
        %3093 = vmatprep.subr.mxu0 0.0
        %3094 = vmatpush1.msra.mxu0 0.0
        %3095 = vmatprep.subr.mxu0 0.0
        %3096 = vmatpush1.msra.mxu0 0.0
        %3097 = vmatprep.subr.mxu0 0.0
        %3098 = vmatpush1.msra.mxu0 0.0
        %3099 = vmatprep.subr.mxu0 0.0
        %3100 = vmatpush1.msra.mxu0 0.0
        %3101 = vmatprep.mubr.f32.mxu0 0.0
        %v3102 = vand.u32 %v765, 4294901760
        %3103 = vmatmul.mubr.f32.gmra.mrb[0].mxu0 %v3102
        %v3104 = vpop.f32.mrb[0].mxu0
        %v3105 = vadd.f32 %v2937, %v3104
        %v3106 = vpop.f32.mrb[0].mxu0
        %v3107 = vadd.f32 %v2939, %v3106
        %3108 = vdwg.mxu0
        %v3109 = vand.u32 %v2311, 4294901760
        %3110 = vmatprep.subr.mxu0 %v3109
        %v3111 = vand.u32 %v2310, 4294901760
        %3112 = vmatpush1.msra.mxu0 %v3111
        %v3113 = vand.u32 %v2314, 4294901760
        %3114 = vmatprep.subr.mxu0 %v3113
        %v3115 = vand.u32 %v2313, 4294901760
        %3116 = vmatpush1.msra.mxu0 %v3115
        %v3117 = vand.u32 %v2317, 4294901760
        %3118 = vmatprep.subr.mxu0 %v3117
        %v3119 = vand.u32 %v2316, 4294901760
        %3120 = vmatpush1.msra.mxu0 %v3119
        %v3121 = vand.u32 %v2320, 4294901760
        %3122 = vmatprep.subr.mxu0 %v3121
        %v3123 = vand.u32 %v2319, 4294901760
        %3124 = vmatpush1.msra.mxu0 %v3123
        %v3125 = vand.u32 %v2323, 4294901760
        %3126 = vmatprep.subr.mxu0 %v3125
        %v3127 = vand.u32 %v2322, 4294901760
        %3128 = vmatpush1.msra.mxu0 %v3127
        %v3129 = vand.u32 %v2326, 4294901760
        %3130 = vmatprep.subr.mxu0 %v3129
        %v3131 = vand.u32 %v2325, 4294901760
        %3132 = vmatpush1.msra.mxu0 %v3131
        %v3133 = vand.u32 %v2329, 4294901760
        %3134 = vmatprep.subr.mxu0 %v3133
        %v3135 = vand.u32 %v2328, 4294901760
        %3136 = vmatpush1.msra.mxu0 %v3135
        %v3137 = vand.u32 %v2332, 4294901760
        %3138 = vmatprep.subr.mxu0 %v3137
        %v3139 = vand.u32 %v2331, 4294901760
        %3140 = vmatpush1.msra.mxu0 %v3139
        %v3141 = vand.u32 %v2335, 4294901760
        %3142 = vmatprep.subr.mxu0 %v3141
        %v3143 = vand.u32 %v2334, 4294901760
        %3144 = vmatpush1.msra.mxu0 %v3143
        %v3145 = vand.u32 %v2338, 4294901760
        %3146 = vmatprep.subr.mxu0 %v3145
        %v3147 = vand.u32 %v2337, 4294901760
        %3148 = vmatpush1.msra.mxu0 %v3147
        %v3149 = vand.u32 %v2341, 4294901760
        %3150 = vmatprep.subr.mxu0 %v3149
        %v3151 = vand.u32 %v2340, 4294901760
        %3152 = vmatpush1.msra.mxu0 %v3151
        %v3153 = vand.u32 %v2344, 4294901760
        %3154 = vmatprep.subr.mxu0 %v3153
        %v3155 = vand.u32 %v2343, 4294901760
        %3156 = vmatpush1.msra.mxu0 %v3155
        %v3157 = vand.u32 %v2347, 4294901760
        %3158 = vmatprep.subr.mxu0 %v3157
        %v3159 = vand.u32 %v2346, 4294901760
        %3160 = vmatpush1.msra.mxu0 %v3159
        %v3161 = vand.u32 %v2350, 4294901760
        %3162 = vmatprep.subr.mxu0 %v3161
        %v3163 = vand.u32 %v2349, 4294901760
        %3164 = vmatpush1.msra.mxu0 %v3163
        %v3165 = vand.u32 %v2353, 4294901760
        %3166 = vmatprep.subr.mxu0 %v3165
        %v3167 = vand.u32 %v2352, 4294901760
        %3168 = vmatpush1.msra.mxu0 %v3167
        %v3169 = vand.u32 %v2356, 4294901760
        %3170 = vmatprep.subr.mxu0 %v3169
        %v3171 = vand.u32 %v2355, 4294901760
        %3172 = vmatpush1.msra.mxu0 %v3171
        %3173 = vmatprep.subr.mxu0 0.0
        %3174 = vmatpush1.msra.mxu0 0.0
        %3175 = vmatprep.subr.mxu0 0.0
        %3176 = vmatpush1.msra.mxu0 0.0
        %3177 = vmatprep.subr.mxu0 0.0
        %3178 = vmatpush1.msra.mxu0 0.0
        %3179 = vmatprep.subr.mxu0 0.0
        %3180 = vmatpush1.msra.mxu0 0.0
        %3181 = vmatprep.subr.mxu0 0.0
        %3182 = vmatpush1.msra.mxu0 0.0
        %3183 = vmatprep.subr.mxu0 0.0
        %3184 = vmatpush1.msra.mxu0 0.0
        %3185 = vmatprep.subr.mxu0 0.0
        %3186 = vmatpush1.msra.mxu0 0.0
        %3187 = vmatprep.subr.mxu0 0.0
        %3188 = vmatpush1.msra.mxu0 0.0
        %3189 = vmatprep.subr.mxu0 0.0
        %3190 = vmatpush1.msra.mxu0 0.0
        %3191 = vmatprep.subr.mxu0 0.0
        %3192 = vmatpush1.msra.mxu0 0.0
        %3193 = vmatprep.subr.mxu0 0.0
        %3194 = vmatpush1.msra.mxu0 0.0
        %3195 = vmatprep.subr.mxu0 0.0
        %3196 = vmatpush1.msra.mxu0 0.0
        %3197 = vmatprep.subr.mxu0 0.0
        %3198 = vmatpush1.msra.mxu0 0.0
        %3199 = vmatprep.subr.mxu0 0.0
        %3200 = vmatpush1.msra.mxu0 0.0
        %3201 = vmatprep.subr.mxu0 0.0
        %3202 = vmatpush1.msra.mxu0 0.0
        %3203 = vmatprep.subr.mxu0 0.0
        %3204 = vmatpush1.msra.mxu0 0.0
        %3205 = vmatprep.mubr.f32.mxu0 0.0
        %v3206 = vand.u32 %v765, 4294901760
        %3207 = vmatmul.mubr.f32.gmra.mrb[0].mxu0 %v3206
        %v3208 = vpop.f32.mrb[0].mxu0
        %v3209 = vadd.f32 %v3105, %v3208
        %v3210 = vpop.f32.mrb[0].mxu0
        %v3211 = vadd.f32 %v3107, %v3210
        %3212 = vdwg.mxu0
        %3213 = vmatprep.subr.mxu0 0.0
        %v3214 = vand.u32 %v2312, 4294901760
        %3215 = vmatpush1.msra.mxu0 %v3214
        %3216 = vmatprep.subr.mxu0 0.0
        %v3217 = vand.u32 %v2315, 4294901760
        %3218 = vmatpush1.msra.mxu0 %v3217
        %3219 = vmatprep.subr.mxu0 0.0
        %v3220 = vand.u32 %v2318, 4294901760
        %3221 = vmatpush1.msra.mxu0 %v3220
        %3222 = vmatprep.subr.mxu0 0.0
        %v3223 = vand.u32 %v2321, 4294901760
        %3224 = vmatpush1.msra.mxu0 %v3223
        %3225 = vmatprep.subr.mxu0 0.0
        %v3226 = vand.u32 %v2324, 4294901760
        %3227 = vmatpush1.msra.mxu0 %v3226
        %3228 = vmatprep.subr.mxu0 0.0
        %v3229 = vand.u32 %v2327, 4294901760
        %3230 = vmatpush1.msra.mxu0 %v3229
        %3231 = vmatprep.subr.mxu0 0.0
        %v3232 = vand.u32 %v2330, 4294901760
        %3233 = vmatpush1.msra.mxu0 %v3232
        %3234 = vmatprep.subr.mxu0 0.0
        %v3235 = vand.u32 %v2333, 4294901760
        %3236 = vmatpush1.msra.mxu0 %v3235
        %3237 = vmatprep.subr.mxu0 0.0
        %v3238 = vand.u32 %v2336, 4294901760
        %3239 = vmatpush1.msra.mxu0 %v3238
        %3240 = vmatprep.subr.mxu0 0.0
        %v3241 = vand.u32 %v2339, 4294901760
        %3242 = vmatpush1.msra.mxu0 %v3241
        %3243 = vmatprep.subr.mxu0 0.0
        %v3244 = vand.u32 %v2342, 4294901760
        %3245 = vmatpush1.msra.mxu0 %v3244
        %3246 = vmatprep.subr.mxu0 0.0
        %v3247 = vand.u32 %v2345, 4294901760
        %3248 = vmatpush1.msra.mxu0 %v3247
        %3249 = vmatprep.subr.mxu0 0.0
        %v3250 = vand.u32 %v2348, 4294901760
        %3251 = vmatpush1.msra.mxu0 %v3250
        %3252 = vmatprep.subr.mxu0 0.0
        %v3253 = vand.u32 %v2351, 4294901760
        %3254 = vmatpush1.msra.mxu0 %v3253
        %3255 = vmatprep.subr.mxu0 0.0
        %v3256 = vand.u32 %v2354, 4294901760
        %3257 = vmatpush1.msra.mxu0 %v3256
        %3258 = vmatprep.subr.mxu0 0.0
        %v3259 = vand.u32 %v2357, 4294901760
        %3260 = vmatpush1.msra.mxu0 %v3259
        %3261 = vmatprep.subr.mxu0 0.0
        %3262 = vmatpush1.msra.mxu0 0.0
        %3263 = vmatprep.subr.mxu0 0.0
        %3264 = vmatpush1.msra.mxu0 0.0
        %3265 = vmatprep.subr.mxu0 0.0
        %3266 = vmatpush1.msra.mxu0 0.0
        %3267 = vmatprep.subr.mxu0 0.0
        %3268 = vmatpush1.msra.mxu0 0.0
        %3269 = vmatprep.subr.mxu0 0.0
        %3270 = vmatpush1.msra.mxu0 0.0
        %3271 = vmatprep.subr.mxu0 0.0
        %3272 = vmatpush1.msra.mxu0 0.0
        %3273 = vmatprep.subr.mxu0 0.0
        %3274 = vmatpush1.msra.mxu0 0.0
        %3275 = vmatprep.subr.mxu0 0.0
        %3276 = vmatpush1.msra.mxu0 0.0
        %3277 = vmatprep.subr.mxu0 0.0
        %3278 = vmatpush1.msra.mxu0 0.0
        %3279 = vmatprep.subr.mxu0 0.0
        %3280 = vmatpush1.msra.mxu0 0.0
        %3281 = vmatprep.subr.mxu0 0.0
        %3282 = vmatpush1.msra.mxu0 0.0
        %3283 = vmatprep.subr.mxu0 0.0
        %3284 = vmatpush1.msra.mxu0 0.0
        %3285 = vmatprep.subr.mxu0 0.0
        %3286 = vmatpush1.msra.mxu0 0.0
        %3287 = vmatprep.subr.mxu0 0.0
        %3288 = vmatpush1.msra.mxu0 0.0
        %3289 = vmatprep.subr.mxu0 0.0
        %3290 = vmatpush1.msra.mxu0 0.0
        %3291 = vmatprep.subr.mxu0 0.0
        %3292 = vmatpush1.msra.mxu0 0.0
        %3293 = vmatprep.mubr.f32.mxu0 0.0
        %v3294 = vand.u32 %v765, 4294901760
        %v3295 = vsub.f32 %v765, %v3294
        %v3296 = vand.u32 %v3295, 4294901760
        %v3297 = vsub.f32 %v3295, %v3296
        %v3298 = vand.u32 %v3297, 4294901760
        %3299 = vmatmul.mubr.f32.gmra.mrb[0].mxu0 %v3298
        %v3300 = vpop.f32.mrb[0].mxu0
        %v3301 = vadd.f32 0.0, %v3300
        %v3302 = vpop.f32.mrb[0].mxu0
        %3303 = vdwg.mxu0
        %3304 = vmatprep.subr.mxu0 0.0
        %v3305 = vand.u32 %v2312, 4294901760
        %v3306 = vsub.f32 %v2312, %v3305
        %v3307 = vand.u32 %v3306, 4294901760
        %v3308 = vsub.f32 %v3306, %v3307
        %v3309 = vand.u32 %v3308, 4294901760
        %3310 = vmatpush1.msra.mxu0 %v3309
        %3311 = vmatprep.subr.mxu0 0.0
        %v3312 = vand.u32 %v2315, 4294901760
        %v3313 = vsub.f32 %v2315, %v3312
        %v3314 = vand.u32 %v3313, 4294901760
        %v3315 = vsub.f32 %v3313, %v3314
        %v3316 = vand.u32 %v3315, 4294901760
        %3317 = vmatpush1.msra.mxu0 %v3316
        %3318 = vmatprep.subr.mxu0 0.0
        %v3319 = vand.u32 %v2318, 4294901760
        %v3320 = vsub.f32 %v2318, %v3319
        %v3321 = vand.u32 %v3320, 4294901760
        %v3322 = vsub.f32 %v3320, %v3321
        %v3323 = vand.u32 %v3322, 4294901760
        %3324 = vmatpush1.msra.mxu0 %v3323
        %3325 = vmatprep.subr.mxu0 0.0
        %v3326 = vand.u32 %v2321, 4294901760
        %v3327 = vsub.f32 %v2321, %v3326
        %v3328 = vand.u32 %v3327, 4294901760
        %v3329 = vsub.f32 %v3327, %v3328
        %v3330 = vand.u32 %v3329, 4294901760
        %3331 = vmatpush1.msra.mxu0 %v3330
        %3332 = vmatprep.subr.mxu0 0.0
        %v3333 = vand.u32 %v2324, 4294901760
        %v3334 = vsub.f32 %v2324, %v3333
        %v3335 = vand.u32 %v3334, 4294901760
        %v3336 = vsub.f32 %v3334, %v3335
        %v3337 = vand.u32 %v3336, 4294901760
        %3338 = vmatpush1.msra.mxu0 %v3337
        %3339 = vmatprep.subr.mxu0 0.0
        %v3340 = vand.u32 %v2327, 4294901760
        %v3341 = vsub.f32 %v2327, %v3340
        %v3342 = vand.u32 %v3341, 4294901760
        %v3343 = vsub.f32 %v3341, %v3342
        %v3344 = vand.u32 %v3343, 4294901760
        %3345 = vmatpush1.msra.mxu0 %v3344
        %3346 = vmatprep.subr.mxu0 0.0
        %v3347 = vand.u32 %v2330, 4294901760
        %v3348 = vsub.f32 %v2330, %v3347
        %v3349 = vand.u32 %v3348, 4294901760
        %v3350 = vsub.f32 %v3348, %v3349
        %v3351 = vand.u32 %v3350, 4294901760
        %3352 = vmatpush1.msra.mxu0 %v3351
        %3353 = vmatprep.subr.mxu0 0.0
        %v3354 = vand.u32 %v2333, 4294901760
        %v3355 = vsub.f32 %v2333, %v3354
        %v3356 = vand.u32 %v3355, 4294901760
        %v3357 = vsub.f32 %v3355, %v3356
        %v3358 = vand.u32 %v3357, 4294901760
        %3359 = vmatpush1.msra.mxu0 %v3358
        %3360 = vmatprep.subr.mxu0 0.0
        %v3361 = vand.u32 %v2336, 4294901760
        %v3362 = vsub.f32 %v2336, %v3361
        %v3363 = vand.u32 %v3362, 4294901760
        %v3364 = vsub.f32 %v3362, %v3363
        %v3365 = vand.u32 %v3364, 4294901760
        %3366 = vmatpush1.msra.mxu0 %v3365
        %3367 = vmatprep.subr.mxu0 0.0
        %v3368 = vand.u32 %v2339, 4294901760
        %v3369 = vsub.f32 %v2339, %v3368
        %v3370 = vand.u32 %v3369, 4294901760
        %v3371 = vsub.f32 %v3369, %v3370
        %v3372 = vand.u32 %v3371, 4294901760
        %3373 = vmatpush1.msra.mxu0 %v3372
        %3374 = vmatprep.subr.mxu0 0.0
        %v3375 = vand.u32 %v2342, 4294901760
        %v3376 = vsub.f32 %v2342, %v3375
        %v3377 = vand.u32 %v3376, 4294901760
        %v3378 = vsub.f32 %v3376, %v3377
        %v3379 = vand.u32 %v3378, 4294901760
        %3380 = vmatpush1.msra.mxu0 %v3379
        %3381 = vmatprep.subr.mxu0 0.0
        %v3382 = vand.u32 %v2345, 4294901760
        %v3383 = vsub.f32 %v2345, %v3382
        %v3384 = vand.u32 %v3383, 4294901760
        %v3385 = vsub.f32 %v3383, %v3384
        %v3386 = vand.u32 %v3385, 4294901760
        %3387 = vmatpush1.msra.mxu0 %v3386
        %3388 = vmatprep.subr.mxu0 0.0
        %v3389 = vand.u32 %v2348, 4294901760
        %v3390 = vsub.f32 %v2348, %v3389
        %v3391 = vand.u32 %v3390, 4294901760
        %v3392 = vsub.f32 %v3390, %v3391
        %v3393 = vand.u32 %v3392, 4294901760
        %3394 = vmatpush1.msra.mxu0 %v3393
        %3395 = vmatprep.subr.mxu0 0.0
        %v3396 = vand.u32 %v2351, 4294901760
        %v3397 = vsub.f32 %v2351, %v3396
        %v3398 = vand.u32 %v3397, 4294901760
        %v3399 = vsub.f32 %v3397, %v3398
        %v3400 = vand.u32 %v3399, 4294901760
        %3401 = vmatpush1.msra.mxu0 %v3400
        %3402 = vmatprep.subr.mxu0 0.0
        %v3403 = vand.u32 %v2354, 4294901760
        %v3404 = vsub.f32 %v2354, %v3403
        %v3405 = vand.u32 %v3404, 4294901760
        %v3406 = vsub.f32 %v3404, %v3405
        %v3407 = vand.u32 %v3406, 4294901760
        %3408 = vmatpush1.msra.mxu0 %v3407
        %3409 = vmatprep.subr.mxu0 0.0
        %v3410 = vand.u32 %v2357, 4294901760
        %v3411 = vsub.f32 %v2357, %v3410
        %v3412 = vand.u32 %v3411, 4294901760
        %v3413 = vsub.f32 %v3411, %v3412
        %v3414 = vand.u32 %v3413, 4294901760
        %3415 = vmatpush1.msra.mxu0 %v3414
        %3416 = vmatprep.subr.mxu0 0.0
        %3417 = vmatpush1.msra.mxu0 0.0
        %3418 = vmatprep.subr.mxu0 0.0
        %3419 = vmatpush1.msra.mxu0 0.0
        %3420 = vmatprep.subr.mxu0 0.0
        %3421 = vmatpush1.msra.mxu0 0.0
        %3422 = vmatprep.subr.mxu0 0.0
        %3423 = vmatpush1.msra.mxu0 0.0
        %3424 = vmatprep.subr.mxu0 0.0
        %3425 = vmatpush1.msra.mxu0 0.0
        %3426 = vmatprep.subr.mxu0 0.0
        %3427 = vmatpush1.msra.mxu0 0.0
        %3428 = vmatprep.subr.mxu0 0.0
        %3429 = vmatpush1.msra.mxu0 0.0
        %3430 = vmatprep.subr.mxu0 0.0
        %3431 = vmatpush1.msra.mxu0 0.0
        %3432 = vmatprep.subr.mxu0 0.0
        %3433 = vmatpush1.msra.mxu0 0.0
        %3434 = vmatprep.subr.mxu0 0.0
        %3435 = vmatpush1.msra.mxu0 0.0
        %3436 = vmatprep.subr.mxu0 0.0
        %3437 = vmatpush1.msra.mxu0 0.0
        %3438 = vmatprep.subr.mxu0 0.0
        %3439 = vmatpush1.msra.mxu0 0.0
        %3440 = vmatprep.subr.mxu0 0.0
        %3441 = vmatpush1.msra.mxu0 0.0
        %3442 = vmatprep.subr.mxu0 0.0
        %3443 = vmatpush1.msra.mxu0 0.0
        %3444 = vmatprep.subr.mxu0 0.0
        %3445 = vmatpush1.msra.mxu0 0.0
        %3446 = vmatprep.subr.mxu0 0.0
        %3447 = vmatpush1.msra.mxu0 0.0
        %3448 = vmatprep.mubr.f32.mxu0 0.0
        %v3449 = vand.u32 %v765, 4294901760
        %3450 = vmatmul.mubr.f32.gmra.mrb[0].mxu0 %v3449
        %v3451 = vpop.f32.mrb[0].mxu0
        %v3452 = vadd.f32 %v3301, %v3451
        %v3453 = vpop.f32.mrb[0].mxu0
        %3454 = vdwg.mxu0
        %3455 = vmatprep.subr.mxu0 0.0
        %v3456 = vand.u32 %v2312, 4294901760
        %v3457 = vsub.f32 %v2312, %v3456
        %3458 = vmatpush1.msra.mxu0 %v3457
        %3459 = vmatprep.subr.mxu0 0.0
        %v3460 = vand.u32 %v2315, 4294901760
        %v3461 = vsub.f32 %v2315, %v3460
        %3462 = vmatpush1.msra.mxu0 %v3461
        %3463 = vmatprep.subr.mxu0 0.0
        %v3464 = vand.u32 %v2318, 4294901760
        %v3465 = vsub.f32 %v2318, %v3464
        %3466 = vmatpush1.msra.mxu0 %v3465
        %3467 = vmatprep.subr.mxu0 0.0
        %v3468 = vand.u32 %v2321, 4294901760
        %v3469 = vsub.f32 %v2321, %v3468
        %3470 = vmatpush1.msra.mxu0 %v3469
        %3471 = vmatprep.subr.mxu0 0.0
        %v3472 = vand.u32 %v2324, 4294901760
        %v3473 = vsub.f32 %v2324, %v3472
        %3474 = vmatpush1.msra.mxu0 %v3473
        %3475 = vmatprep.subr.mxu0 0.0
        %v3476 = vand.u32 %v2327, 4294901760
        %v3477 = vsub.f32 %v2327, %v3476
        %3478 = vmatpush1.msra.mxu0 %v3477
        %3479 = vmatprep.subr.mxu0 0.0
        %v3480 = vand.u32 %v2330, 4294901760
        %v3481 = vsub.f32 %v2330, %v3480
        %3482 = vmatpush1.msra.mxu0 %v3481
        %3483 = vmatprep.subr.mxu0 0.0
        %v3484 = vand.u32 %v2333, 4294901760
        %v3485 = vsub.f32 %v2333, %v3484
        %3486 = vmatpush1.msra.mxu0 %v3485
        %3487 = vmatprep.subr.mxu0 0.0
        %v3488 = vand.u32 %v2336, 4294901760
        %v3489 = vsub.f32 %v2336, %v3488
        %3490 = vmatpush1.msra.mxu0 %v3489
        %3491 = vmatprep.subr.mxu0 0.0
        %v3492 = vand.u32 %v2339, 4294901760
        %v3493 = vsub.f32 %v2339, %v3492
        %3494 = vmatpush1.msra.mxu0 %v3493
        %3495 = vmatprep.subr.mxu0 0.0
        %v3496 = vand.u32 %v2342, 4294901760
        %v3497 = vsub.f32 %v2342, %v3496
        %3498 = vmatpush1.msra.mxu0 %v3497
        %3499 = vmatprep.subr.mxu0 0.0
        %v3500 = vand.u32 %v2345, 4294901760
        %v3501 = vsub.f32 %v2345, %v3500
        %3502 = vmatpush1.msra.mxu0 %v3501
        %3503 = vmatprep.subr.mxu0 0.0
        %v3504 = vand.u32 %v2348, 4294901760
        %v3505 = vsub.f32 %v2348, %v3504
        %3506 = vmatpush1.msra.mxu0 %v3505
        %3507 = vmatprep.subr.mxu0 0.0
        %v3508 = vand.u32 %v2351, 4294901760
        %v3509 = vsub.f32 %v2351, %v3508
        %3510 = vmatpush1.msra.mxu0 %v3509
        %3511 = vmatprep.subr.mxu0 0.0
        %v3512 = vand.u32 %v2354, 4294901760
        %v3513 = vsub.f32 %v2354, %v3512
        %3514 = vmatpush1.msra.mxu0 %v3513
        %3515 = vmatprep.subr.mxu0 0.0
        %v3516 = vand.u32 %v2357, 4294901760
        %v3517 = vsub.f32 %v2357, %v3516
        %3518 = vmatpush1.msra.mxu0 %v3517
        %3519 = vmatprep.subr.mxu0 0.0
        %3520 = vmatpush1.msra.mxu0 0.0
        %3521 = vmatprep.subr.mxu0 0.0
        %3522 = vmatpush1.msra.mxu0 0.0
        %3523 = vmatprep.subr.mxu0 0.0
        %3524 = vmatpush1.msra.mxu0 0.0
        %3525 = vmatprep.subr.mxu0 0.0
        %3526 = vmatpush1.msra.mxu0 0.0
        %3527 = vmatprep.subr.mxu0 0.0
        %3528 = vmatpush1.msra.mxu0 0.0
        %3529 = vmatprep.subr.mxu0 0.0
        %3530 = vmatpush1.msra.mxu0 0.0
        %3531 = vmatprep.subr.mxu0 0.0
        %3532 = vmatpush1.msra.mxu0 0.0
        %3533 = vmatprep.subr.mxu0 0.0
        %3534 = vmatpush1.msra.mxu0 0.0
        %3535 = vmatprep.subr.mxu0 0.0
        %3536 = vmatpush1.msra.mxu0 0.0
        %3537 = vmatprep.subr.mxu0 0.0
        %3538 = vmatpush1.msra.mxu0 0.0
        %3539 = vmatprep.subr.mxu0 0.0
        %3540 = vmatpush1.msra.mxu0 0.0
        %3541 = vmatprep.subr.mxu0 0.0
        %3542 = vmatpush1.msra.mxu0 0.0
        %3543 = vmatprep.subr.mxu0 0.0
        %3544 = vmatpush1.msra.mxu0 0.0
        %3545 = vmatprep.subr.mxu0 0.0
        %3546 = vmatpush1.msra.mxu0 0.0
        %3547 = vmatprep.subr.mxu0 0.0
        %3548 = vmatpush1.msra.mxu0 0.0
        %3549 = vmatprep.subr.mxu0 0.0
        %3550 = vmatpush1.msra.mxu0 0.0
        %3551 = vmatprep.mubr.f32.mxu0 0.0
        %v3552 = vand.u32 %v765, 4294901760
        %v3553 = vsub.f32 %v765, %v3552
        %3554 = vmatmul.mubr.f32.gmra.mrb[0].mxu0 %v3553
        %v3555 = vpop.f32.mrb[0].mxu0
        %v3556 = vadd.f32 %v3452, %v3555
        %v3557 = vpop.f32.mrb[0].mxu0
        %3558 = vdwg.mxu0
        %3559 = vmatprep.subr.mxu0 0.0
        %v3560 = vand.u32 %v2312, 4294901760
        %3561 = vmatpush1.msra.mxu0 %v3560
        %3562 = vmatprep.subr.mxu0 0.0
        %v3563 = vand.u32 %v2315, 4294901760
        %3564 = vmatpush1.msra.mxu0 %v3563
        %3565 = vmatprep.subr.mxu0 0.0
        %v3566 = vand.u32 %v2318, 4294901760
        %3567 = vmatpush1.msra.mxu0 %v3566
        %3568 = vmatprep.subr.mxu0 0.0
        %v3569 = vand.u32 %v2321, 4294901760
        %3570 = vmatpush1.msra.mxu0 %v3569
        %3571 = vmatprep.subr.mxu0 0.0
        %v3572 = vand.u32 %v2324, 4294901760
        %3573 = vmatpush1.msra.mxu0 %v3572
        %3574 = vmatprep.subr.mxu0 0.0
        %v3575 = vand.u32 %v2327, 4294901760
        %3576 = vmatpush1.msra.mxu0 %v3575
        %3577 = vmatprep.subr.mxu0 0.0
        %v3578 = vand.u32 %v2330, 4294901760
        %3579 = vmatpush1.msra.mxu0 %v3578
        %3580 = vmatprep.subr.mxu0 0.0
        %v3581 = vand.u32 %v2333, 4294901760
        %3582 = vmatpush1.msra.mxu0 %v3581
        %3583 = vmatprep.subr.mxu0 0.0
        %v3584 = vand.u32 %v2336, 4294901760
        %3585 = vmatpush1.msra.mxu0 %v3584
        %3586 = vmatprep.subr.mxu0 0.0
        %v3587 = vand.u32 %v2339, 4294901760
        %3588 = vmatpush1.msra.mxu0 %v3587
        %3589 = vmatprep.subr.mxu0 0.0
        %v3590 = vand.u32 %v2342, 4294901760
        %3591 = vmatpush1.msra.mxu0 %v3590
        %3592 = vmatprep.subr.mxu0 0.0
        %v3593 = vand.u32 %v2345, 4294901760
        %3594 = vmatpush1.msra.mxu0 %v3593
        %3595 = vmatprep.subr.mxu0 0.0
        %v3596 = vand.u32 %v2348, 4294901760
        %3597 = vmatpush1.msra.mxu0 %v3596
        %3598 = vmatprep.subr.mxu0 0.0
        %v3599 = vand.u32 %v2351, 4294901760
        %3600 = vmatpush1.msra.mxu0 %v3599
        %3601 = vmatprep.subr.mxu0 0.0
        %v3602 = vand.u32 %v2354, 4294901760
        %3603 = vmatpush1.msra.mxu0 %v3602
        %3604 = vmatprep.subr.mxu0 0.0
        %v3605 = vand.u32 %v2357, 4294901760
        %3606 = vmatpush1.msra.mxu0 %v3605
        %3607 = vmatprep.subr.mxu0 0.0
        %3608 = vmatpush1.msra.mxu0 0.0
        %3609 = vmatprep.subr.mxu0 0.0
        %3610 = vmatpush1.msra.mxu0 0.0
        %3611 = vmatprep.subr.mxu0 0.0
        %3612 = vmatpush1.msra.mxu0 0.0
        %3613 = vmatprep.subr.mxu0 0.0
        %3614 = vmatpush1.msra.mxu0 0.0
        %3615 = vmatprep.subr.mxu0 0.0
        %3616 = vmatpush1.msra.mxu0 0.0
        %3617 = vmatprep.subr.mxu0 0.0
        %3618 = vmatpush1.msra.mxu0 0.0
        %3619 = vmatprep.subr.mxu0 0.0
        %3620 = vmatpush1.msra.mxu0 0.0
        %3621 = vmatprep.subr.mxu0 0.0
        %3622 = vmatpush1.msra.mxu0 0.0
        %3623 = vmatprep.subr.mxu0 0.0
        %3624 = vmatpush1.msra.mxu0 0.0
        %3625 = vmatprep.subr.mxu0 0.0
        %3626 = vmatpush1.msra.mxu0 0.0
        %3627 = vmatprep.subr.mxu0 0.0
        %3628 = vmatpush1.msra.mxu0 0.0
        %3629 = vmatprep.subr.mxu0 0.0
        %3630 = vmatpush1.msra.mxu0 0.0
        %3631 = vmatprep.subr.mxu0 0.0
        %3632 = vmatpush1.msra.mxu0 0.0
        %3633 = vmatprep.subr.mxu0 0.0
        %3634 = vmatpush1.msra.mxu0 0.0
        %3635 = vmatprep.subr.mxu0 0.0
        %3636 = vmatpush1.msra.mxu0 0.0
        %3637 = vmatprep.subr.mxu0 0.0
        %3638 = vmatpush1.msra.mxu0 0.0
        %3639 = vmatprep.mubr.f32.mxu0 0.0
        %v3640 = vand.u32 %v765, 4294901760
        %v3641 = vsub.f32 %v765, %v3640
        %v3642 = vand.u32 %v3641, 4294901760
        %3643 = vmatmul.mubr.f32.gmra.mrb[0].mxu0 %v3642
        %v3644 = vpop.f32.mrb[0].mxu0
        %v3645 = vadd.f32 %v3556, %v3644
        %v3646 = vpop.f32.mrb[0].mxu0
        %3647 = vdwg.mxu0
        %3648 = vmatprep.subr.mxu0 0.0
        %v3649 = vand.u32 %v2312, 4294901760
        %v3650 = vsub.f32 %v2312, %v3649
        %v3651 = vand.u32 %v3650, 4294901760
        %3652 = vmatpush1.msra.mxu0 %v3651
        %3653 = vmatprep.subr.mxu0 0.0
        %v3654 = vand.u32 %v2315, 4294901760
        %v3655 = vsub.f32 %v2315, %v3654
        %v3656 = vand.u32 %v3655, 4294901760
        %3657 = vmatpush1.msra.mxu0 %v3656
        %3658 = vmatprep.subr.mxu0 0.0
        %v3659 = vand.u32 %v2318, 4294901760
        %v3660 = vsub.f32 %v2318, %v3659
        %v3661 = vand.u32 %v3660, 4294901760
        %3662 = vmatpush1.msra.mxu0 %v3661
        %3663 = vmatprep.subr.mxu0 0.0
        %v3664 = vand.u32 %v2321, 4294901760
        %v3665 = vsub.f32 %v2321, %v3664
        %v3666 = vand.u32 %v3665, 4294901760
        %3667 = vmatpush1.msra.mxu0 %v3666
        %3668 = vmatprep.subr.mxu0 0.0
        %v3669 = vand.u32 %v2324, 4294901760
        %v3670 = vsub.f32 %v2324, %v3669
        %v3671 = vand.u32 %v3670, 4294901760
        %3672 = vmatpush1.msra.mxu0 %v3671
        %3673 = vmatprep.subr.mxu0 0.0
        %v3674 = vand.u32 %v2327, 4294901760
        %v3675 = vsub.f32 %v2327, %v3674
        %v3676 = vand.u32 %v3675, 4294901760
        %3677 = vmatpush1.msra.mxu0 %v3676
        %3678 = vmatprep.subr.mxu0 0.0
        %v3679 = vand.u32 %v2330, 4294901760
        %v3680 = vsub.f32 %v2330, %v3679
        %v3681 = vand.u32 %v3680, 4294901760
        %3682 = vmatpush1.msra.mxu0 %v3681
        %3683 = vmatprep.subr.mxu0 0.0
        %v3684 = vand.u32 %v2333, 4294901760
        %v3685 = vsub.f32 %v2333, %v3684
        %v3686 = vand.u32 %v3685, 4294901760
        %3687 = vmatpush1.msra.mxu0 %v3686
        %3688 = vmatprep.subr.mxu0 0.0
        %v3689 = vand.u32 %v2336, 4294901760
        %v3690 = vsub.f32 %v2336, %v3689
        %v3691 = vand.u32 %v3690, 4294901760
        %3692 = vmatpush1.msra.mxu0 %v3691
        %3693 = vmatprep.subr.mxu0 0.0
        %v3694 = vand.u32 %v2339, 4294901760
        %v3695 = vsub.f32 %v2339, %v3694
        %v3696 = vand.u32 %v3695, 4294901760
        %3697 = vmatpush1.msra.mxu0 %v3696
        %3698 = vmatprep.subr.mxu0 0.0
        %v3699 = vand.u32 %v2342, 4294901760
        %v3700 = vsub.f32 %v2342, %v3699
        %v3701 = vand.u32 %v3700, 4294901760
        %3702 = vmatpush1.msra.mxu0 %v3701
        %3703 = vmatprep.subr.mxu0 0.0
        %v3704 = vand.u32 %v2345, 4294901760
        %v3705 = vsub.f32 %v2345, %v3704
        %v3706 = vand.u32 %v3705, 4294901760
        %3707 = vmatpush1.msra.mxu0 %v3706
        %3708 = vmatprep.subr.mxu0 0.0
        %v3709 = vand.u32 %v2348, 4294901760
        %v3710 = vsub.f32 %v2348, %v3709
        %v3711 = vand.u32 %v3710, 4294901760
        %3712 = vmatpush1.msra.mxu0 %v3711
        %3713 = vmatprep.subr.mxu0 0.0
        %v3714 = vand.u32 %v2351, 4294901760
        %v3715 = vsub.f32 %v2351, %v3714
        %v3716 = vand.u32 %v3715, 4294901760
        %3717 = vmatpush1.msra.mxu0 %v3716
        %3718 = vmatprep.subr.mxu0 0.0
        %v3719 = vand.u32 %v2354, 4294901760
        %v3720 = vsub.f32 %v2354, %v3719
        %v3721 = vand.u32 %v3720, 4294901760
        %3722 = vmatpush1.msra.mxu0 %v3721
        %3723 = vmatprep.subr.mxu0 0.0
        %v3724 = vand.u32 %v2357, 4294901760
        %v3725 = vsub.f32 %v2357, %v3724
        %v3726 = vand.u32 %v3725, 4294901760
        %3727 = vmatpush1.msra.mxu0 %v3726
        %3728 = vmatprep.subr.mxu0 0.0
        %3729 = vmatpush1.msra.mxu0 0.0
        %3730 = vmatprep.subr.mxu0 0.0
        %3731 = vmatpush1.msra.mxu0 0.0
        %3732 = vmatprep.subr.mxu0 0.0
        %3733 = vmatpush1.msra.mxu0 0.0
        %3734 = vmatprep.subr.mxu0 0.0
        %3735 = vmatpush1.msra.mxu0 0.0
        %3736 = vmatprep.subr.mxu0 0.0
        %3737 = vmatpush1.msra.mxu0 0.0
        %3738 = vmatprep.subr.mxu0 0.0
        %3739 = vmatpush1.msra.mxu0 0.0
        %3740 = vmatprep.subr.mxu0 0.0
        %3741 = vmatpush1.msra.mxu0 0.0
        %3742 = vmatprep.subr.mxu0 0.0
        %3743 = vmatpush1.msra.mxu0 0.0
        %3744 = vmatprep.subr.mxu0 0.0
        %3745 = vmatpush1.msra.mxu0 0.0
        %3746 = vmatprep.subr.mxu0 0.0
        %3747 = vmatpush1.msra.mxu0 0.0
        %3748 = vmatprep.subr.mxu0 0.0
        %3749 = vmatpush1.msra.mxu0 0.0
        %3750 = vmatprep.subr.mxu0 0.0
        %3751 = vmatpush1.msra.mxu0 0.0
        %3752 = vmatprep.subr.mxu0 0.0
        %3753 = vmatpush1.msra.mxu0 0.0
        %3754 = vmatprep.subr.mxu0 0.0
        %3755 = vmatpush1.msra.mxu0 0.0
        %3756 = vmatprep.subr.mxu0 0.0
        %3757 = vmatpush1.msra.mxu0 0.0
        %3758 = vmatprep.subr.mxu0 0.0
        %3759 = vmatpush1.msra.mxu0 0.0
        %3760 = vmatprep.mubr.f32.mxu0 0.0
        %v3761 = vand.u32 %v765, 4294901760
        %3762 = vmatmul.mubr.f32.gmra.mrb[0].mxu0 %v3761
        %v3763 = vpop.f32.mrb[0].mxu0
        %v3764 = vadd.f32 %v3645, %v3763
        %v3765 = vpop.f32.mrb[0].mxu0
        %3766 = vdwg.mxu0
        %3767 = vmatprep.subr.mxu0 0.0
        %v3768 = vand.u32 %v2312, 4294901760
        %3769 = vmatpush1.msra.mxu0 %v3768
        %3770 = vmatprep.subr.mxu0 0.0
        %v3771 = vand.u32 %v2315, 4294901760
        %3772 = vmatpush1.msra.mxu0 %v3771
        %3773 = vmatprep.subr.mxu0 0.0
        %v3774 = vand.u32 %v2318, 4294901760
        %3775 = vmatpush1.msra.mxu0 %v3774
        %3776 = vmatprep.subr.mxu0 0.0
        %v3777 = vand.u32 %v2321, 4294901760
        %3778 = vmatpush1.msra.mxu0 %v3777
        %3779 = vmatprep.subr.mxu0 0.0
        %v3780 = vand.u32 %v2324, 4294901760
        %3781 = vmatpush1.msra.mxu0 %v3780
        %3782 = vmatprep.subr.mxu0 0.0
        %v3783 = vand.u32 %v2327, 4294901760
        %3784 = vmatpush1.msra.mxu0 %v3783
        %3785 = vmatprep.subr.mxu0 0.0
        %v3786 = vand.u32 %v2330, 4294901760
        %3787 = vmatpush1.msra.mxu0 %v3786
        %3788 = vmatprep.subr.mxu0 0.0
        %v3789 = vand.u32 %v2333, 4294901760
        %3790 = vmatpush1.msra.mxu0 %v3789
        %3791 = vmatprep.subr.mxu0 0.0
        %v3792 = vand.u32 %v2336, 4294901760
        %3793 = vmatpush1.msra.mxu0 %v3792
        %3794 = vmatprep.subr.mxu0 0.0
        %v3795 = vand.u32 %v2339, 4294901760
        %3796 = vmatpush1.msra.mxu0 %v3795
        %3797 = vmatprep.subr.mxu0 0.0
        %v3798 = vand.u32 %v2342, 4294901760
        %3799 = vmatpush1.msra.mxu0 %v3798
        %3800 = vmatprep.subr.mxu0 0.0
        %v3801 = vand.u32 %v2345, 4294901760
        %3802 = vmatpush1.msra.mxu0 %v3801
        %3803 = vmatprep.subr.mxu0 0.0
        %v3804 = vand.u32 %v2348, 4294901760
        %3805 = vmatpush1.msra.mxu0 %v3804
        %3806 = vmatprep.subr.mxu0 0.0
        %v3807 = vand.u32 %v2351, 4294901760
        %3808 = vmatpush1.msra.mxu0 %v3807
        %3809 = vmatprep.subr.mxu0 0.0
        %v3810 = vand.u32 %v2354, 4294901760
        %3811 = vmatpush1.msra.mxu0 %v3810
        %3812 = vmatprep.subr.mxu0 0.0
        %v3813 = vand.u32 %v2357, 4294901760
        %3814 = vmatpush1.msra.mxu0 %v3813
        %3815 = vmatprep.subr.mxu0 0.0
        %3816 = vmatpush1.msra.mxu0 0.0
        %3817 = vmatprep.subr.mxu0 0.0
        %3818 = vmatpush1.msra.mxu0 0.0
        %3819 = vmatprep.subr.mxu0 0.0
        %3820 = vmatpush1.msra.mxu0 0.0
        %3821 = vmatprep.subr.mxu0 0.0
        %3822 = vmatpush1.msra.mxu0 0.0
        %3823 = vmatprep.subr.mxu0 0.0
        %3824 = vmatpush1.msra.mxu0 0.0
        %3825 = vmatprep.subr.mxu0 0.0
        %3826 = vmatpush1.msra.mxu0 0.0
        %3827 = vmatprep.subr.mxu0 0.0
        %3828 = vmatpush1.msra.mxu0 0.0
        %3829 = vmatprep.subr.mxu0 0.0
        %3830 = vmatpush1.msra.mxu0 0.0
        %3831 = vmatprep.subr.mxu0 0.0
        %3832 = vmatpush1.msra.mxu0 0.0
        %3833 = vmatprep.subr.mxu0 0.0
        %3834 = vmatpush1.msra.mxu0 0.0
        %3835 = vmatprep.subr.mxu0 0.0
        %3836 = vmatpush1.msra.mxu0 0.0
        %3837 = vmatprep.subr.mxu0 0.0
        %3838 = vmatpush1.msra.mxu0 0.0
        %3839 = vmatprep.subr.mxu0 0.0
        %3840 = vmatpush1.msra.mxu0 0.0
        %3841 = vmatprep.subr.mxu0 0.0
        %3842 = vmatpush1.msra.mxu0 0.0
        %3843 = vmatprep.subr.mxu0 0.0
        %3844 = vmatpush1.msra.mxu0 0.0
        %3845 = vmatprep.subr.mxu0 0.0
        %3846 = vmatpush1.msra.mxu0 0.0
        %3847 = vmatprep.mubr.f32.mxu0 0.0
        %v3848 = vand.u32 %v765, 4294901760
        %3849 = vmatmul.mubr.f32.gmra.mrb[0].mxu0 %v3848
        %v3850 = vpop.f32.mrb[0].mxu0
        %v3851 = vadd.f32 %v3764, %v3850
        %v3852 = vpop.f32.mrb[0].mxu0
        %3853 = vdwg.mxu0
        %v3854 = vmul.f32 %v1665, %v3209
        %v3855 = vmul.f32 %v1667, %v3211
        %v3856 = vmul.f32 %v2307, %v3851
        %v3857 = vadd.f32 %v3854, %v3855
        %v3858 = vadd.f32 %v3857, %v3856
        %v3859 = vld [vmem:[%s6 + $0x4] sm:$0x1]
        %v3860 = vlaneseq
        %v3861 = vshrl.u32 %v3860, 7
        %v3862 = vsub.s32 0, %v3861
        %v3863 = vrot.slane %v3859, %v3862
        %v3864 = vadd.f32 %v3858, %v3863
        %vm3865 = vcmp.lt.s32.totalorder %v748, 16
        %v3866 = vsel %vm3865, %v744, %v3864
        %v3867 = vsel %vm749, %v759, %v3866
        %3868 = vst [vmem:[%s369] sm:$0xff] %v3867
        %s3869 = sand.u32 %s207, 1
        %s3870 = scalar_lea.sflag [#allocation4], %s3869
        %s3871 = sand.u32 %s207, 1
        %s3872 = smul.addr %s3871, 8
        %s3873 = scalar_lea.vmem [#allocation12], %s3872
        // Predicated region
        $region73: #{tpu_custom_call.1} parent=51 // pred_check
          %p3874 = pneg %p217
        $region74: #{tpu_custom_call.1} parent=51 // pred_check_branch
          %3876 = sbr.rel (%p3874) target = $region76
        $region75: #{tpu_custom_call.1} parent=51 // pred_region
          %s3878 = ssub.s32 128, 128
          %3879 = vsyncadd %s3870, %s3878
          %s3880 = smul.addr %s26, 128
          %s3881 = scalar_lea.hbm %s8, %s3880
          %s3883 = sshll.u32 %s3873, 4
          %s3884 = int_to_ptr.vmem [resolvable:$true] %s3883
          %3886 = dma.vmem_to_hbm [thread:$0]  %s3884, 128, %s3881, %s3870
        $region76: #{tpu_custom_call.1} parent=51 // pred_fallthru
          _
      $region52: #{tpu_custom_call.1} parent=5 // pred_fallthru
        _
      %p3887 = scmp.le.s32.totalorder 2, %s21
      // Predicated region
      $region77: #{tpu_custom_call.1} parent=5 // pred_check
        %p3888 = pneg %p3887
      $region78: #{tpu_custom_call.1} parent=5 // pred_check_branch
        %3890 = sbr.rel (%p3888) target = $region80
      $region79: #{tpu_custom_call.1} parent=5 // pred_region
        %s3891 = ssub.s32 %s21, 2
        // Predicated region
        $region81: #{tpu_custom_call.1} parent=79 // pred_check
          %p3892 = pneg %p223
        $region82: #{tpu_custom_call.1} parent=79 // pred_check_branch
          %3894 = sbr.rel (%p3892) target = $region84
        $region83: #{tpu_custom_call.1} parent=79 // pred_region
          %s3895 = sand.u32 %s208, 1
          %s3896 = scalar_lea.sflag [#allocation4], %s3895
          %s3897 = sand.u32 %s208, 1
          %s3898 = smul.addr %s3897, 8
          %s3899 = scalar_lea.vmem [#allocation12], %s3898
          %3900 = dma.done %s3896, 128
        $region84: #{tpu_custom_call.1} parent=79 // pred_fallthru
          _
      $region80: #{tpu_custom_call.1} parent=5 // pred_fallthru
        _
    $region6: #{tpu_custom_call.1} parent=1 // loop_footer
      %s25 = sadd.s32 1, %s21
    $region7: #{tpu_custom_call.1} parent=1 // loop_footer_branch
      %20 = sbr.rel target = $region3
    $region8: #{tpu_custom_call.1} parent=1 // loop_exit
      _
    %3901 = vsyncpa [#allocation3], 1
    %s3902 = scalar_lea.sflag [#allocation3], 1
    %3903 = vsyncpa %s3902, 1
    %3904 = vsyncpa [#allocation7], 1
    %3905 = vsyncpa [#allocation10], 1
    %3906 = vsyncpa [#allocation4], 1
    %s3907 = scalar_lea.sflag [#allocation4], 1
    %3908 = vsyncpa %s3907, 1
    %3909 = vsyncpa [#allocation5], 1
    %s3910 = scalar_lea.sflag [#allocation5], 1
    %3911 = vsyncpa %s3910, 1

</llo_original>
